<compile_context>
chip_gen: v7x
topology: tpu7x:2x2x1
jax: 0.10.0
libtpu: 0.0.40
codegen_flags: <defaults>
</compile_context>

<pallas_src>
import jax
import jax.numpy as jnp
from jax.experimental import pallas as pl
from jax.experimental.pallas import tpu as pltpu

NORM_CLAMP = 2.0 ** -24
LN_EPS = 1e-5


# ---------------- in-kernel math (lists of [C, T] tiles, nodes on lanes) -----

def _norm_se3(xs, gamma, beta):
    """xs: list of [C, T] f32 (one per m); gamma/beta: [C, 1]."""
    sumsq = xs[0] * xs[0]
    for x in xs[1:]:
        sumsq = sumsq + x * x                                   # [C, T]
    sumsq = jnp.maximum(sumsq, NORM_CLAMP * NORM_CLAMP)         # clamp on norm^2
    inv_norm = jax.lax.rsqrt(sumsq)                             # EUP (free slot)
    norm = sumsq * inv_norm                                     # = sqrt(sumsq)
    # LayerNorm over the channel (sublane) axis, biased variance, per-ch affine
    mu = jnp.mean(norm, axis=0, keepdims=True)                  # [1, T]
    var = jnp.mean(jnp.square(norm - mu), axis=0, keepdims=True)
    ln = (norm - mu) * jax.lax.rsqrt(var + LN_EPS) * gamma + beta
    scale = jnp.maximum(ln, 0.0) * inv_norm                     # ReLU, then /norm
    return [x * scale for x in xs]


def _linear_se3(xs, w):
    """xs: list of [Cin, T]; w: [Cout, Cin] -> list of [Cout, T] (channel mix)."""
    return [jnp.dot(w, x, preferred_element_type=jnp.float32) for x in xs]


def linear_module_kernel(x0_ref, x1_ref, ln1_ref, ln2_ref, wa_ref, wb_ref,
                         y0_ref, y1_ref):
    # Packed LN affine tables: columns = (gamma_d0, beta_d0, gamma_d1, beta_d1)
    ln1 = ln1_ref[...]                                          # [C_in, 4]
    ln2 = ln2_ref[...]                                          # [C_hid, 4]
    g0a, b0a, g1a, b1a = ln1[:, 0:1], ln1[:, 1:2], ln1[:, 2:3], ln1[:, 3:4]
    g0b, b0b, g1b, b1b = ln2[:, 0:1], ln2[:, 1:2], ln2[:, 2:3], ln2[:, 3:4]
    # Packed weights: index 0 = degree 0, index 1 = degree 1
    w0a, w1a = wa_ref[0], wa_ref[1]                             # [C_hid, C_in]
    w0b, w1b = wb_ref[0], wb_ref[1]                             # [C_out, C_hid]

    # degree 0 (m = 1):  Norm -> Linear -> Norm -> Linear
    x0 = [x0_ref[0]]                                            # [[C_in, T]]
    h0 = _linear_se3(_norm_se3(x0, g0a, b0a), w0a)              # [[C_hid, T]]
    y0 = _linear_se3(_norm_se3(h0, g0b, b0b), w0b)              # [[C_out, T]]
    y0_ref[0] = y0[0]

    # degree 1 (m = 3)
    x1 = [x1_ref[mi] for mi in range(3)]
    h1 = _linear_se3(_norm_se3(x1, g1a, b1a), w1a)
    y1 = _linear_se3(_norm_se3(h1, g1b, b1b), w1b)
    for mi in range(3):
        y1_ref[mi] = y1[mi]


# ---------------- wrapper -----------------------------------------------------

def linear_module_forward(x0, x1, params, *, tile_n=512):
    """x0: [1, C_in, N], x1: [3, C_in, N]  (nodes on the last / lane dim).

    params: dict with 1-D LN affines g*/b* and 2-D weights w* (Cout, Cin).
    Returns (y0 [1, C_out, N], y1 [3, C_out, N]).
    """
    _, c_in, n_nodes = x0.shape
    c_hid = params["w0a"].shape[0]
    c_out = params["w0b"].shape[0]
    assert x1.shape == (3, c_in, n_nodes)
    assert n_nodes % tile_n == 0 and tile_n % 128 == 0

    # Pack the 12 tiny parameter arrays into 4 inputs (fewer DMA descriptors;
    # constant index_maps keep them VMEM-resident across the whole grid).
    ln1 = jnp.stack([params["g0a"], params["b0a"],
                     params["g1a"], params["b1a"]], axis=1)        # [C_in, 4]
    ln2 = jnp.stack([params["g0b"], params["b0b"],
                     params["g1b"], params["b1b"]], axis=1)        # [C_hid, 4]
    wa = jnp.stack([params["w0a"], params["w1a"]], axis=0)         # [2, C_hid, C_in]
    wb = jnp.stack([params["w0b"], params["w1b"]], axis=0)         # [2, C_out, C_hid]

    def feat_spec(m, c):
        return pl.BlockSpec((m, c, tile_n), lambda i: (0, 0, i))

    def full_spec(p):
        nd = p.ndim
        return pl.BlockSpec(p.shape, lambda i, _nd=nd: (0,) * _nd)

    grid_spec = pltpu.PrefetchScalarGridSpec(
        num_scalar_prefetch=0,
        grid=(n_nodes // tile_n,),
        in_specs=[feat_spec(1, c_in), feat_spec(3, c_in),
                  full_spec(ln1), full_spec(ln2), full_spec(wa), full_spec(wb)],
        out_specs=[feat_spec(1, c_out), feat_spec(3, c_out)],
    )

    y0, y1 = pl.pallas_call(
        linear_module_kernel,
        out_shape=(jax.ShapeDtypeStruct((1, c_out, n_nodes), jnp.float32),
                   jax.ShapeDtypeStruct((3, c_out, n_nodes), jnp.float32)),
        grid_spec=grid_spec,
        compiler_params=pltpu.CompilerParams(
            dimension_semantics=("parallel",)),
    )(x0, x1, ln1, ln2, wa, wb)
    return y0, y1


# ---------------- independent pure-JAX reference (torch layout) ---------------

def _reference(x0, x1, p):
    # Convert kernel layout [m, C, N] -> torch layout [N, C, m].
    def to_torch(x):
        return jnp.transpose(x, (2, 1, 0))

    def norm_se3(x, g, b):                 # x: [N, C, m], g/b: [C]
        norm = jnp.sqrt(jnp.sum(x * x, axis=-1))                # [N, C]
        norm = jnp.maximum(norm, NORM_CLAMP)
        mu = jnp.mean(norm, axis=-1, keepdims=True)
        var = jnp.mean(jnp.square(norm - mu), axis=-1, keepdims=True)
        ln = (norm - mu) / jnp.sqrt(var + LN_EPS) * g + b
        new_norm = jax.nn.relu(ln)
        return x * (new_norm / norm)[..., None]

    def lin(x, w):                          # out[n,o,m] = sum_c W[o,c] x[n,c,m]
        return jnp.einsum("oc,ncm->nom", w, x)

    a0, a1 = to_torch(x0), to_torch(x1)
    h0 = lin(norm_se3(a0, p["g0a"], p["b0a"]), p["w0a"])
    h1 = lin(norm_se3(a1, p["g1a"], p["b1a"]), p["w1a"])
    y0 = lin(norm_se3(h0, p["g0b"], p["b0b"]), p["w0b"])
    y1 = lin(norm_se3(h1, p["g1b"], p["b1b"]), p["w1b"])

    def from_torch(y):
        return jnp.transpose(y, (2, 1, 0))

    return from_torch(y0), from_torch(y1)


if __name__ == "__main__":
    key = jax.random.PRNGKey(0)
    N, C_IN, C_HID, C_OUT = 2048, 16, 32, 16   # fiber_in=16, fiber_hidden=32, fiber_out=16
    TILE_N = 512                                # 4 grid steps (>= 2 for v7x megacore)

    k_x0, k_x1, k_w0a, k_w1a, k_w0b, k_w1b = jax.random.split(key, 6)

    # Features stored lane-dense: [m, channels, nodes]  (torch: [nodes, channels, m])
    x0 = jax.random.normal(k_x0, (1, C_IN, N), dtype=jnp.float32)
    x1 = jax.random.normal(k_x1, (3, C_IN, N), dtype=jnp.float32)

    # LinearSE3 weights ~ randn(Cout, Cin)/sqrt(Cin); LayerNorm affine: gamma=1, beta=0.
    params = {
        "g0a": jnp.ones((C_IN,), jnp.float32),  "b0a": jnp.zeros((C_IN,), jnp.float32),
        "g1a": jnp.ones((C_IN,), jnp.float32),  "b1a": jnp.zeros((C_IN,), jnp.float32),
        "w0a": jax.random.normal(k_w0a, (C_HID, C_IN), jnp.float32) / jnp.sqrt(C_IN),
        "w1a": jax.random.normal(k_w1a, (C_HID, C_IN), jnp.float32) / jnp.sqrt(C_IN),
        "g0b": jnp.ones((C_HID,), jnp.float32), "b0b": jnp.zeros((C_HID,), jnp.float32),
        "g1b": jnp.ones((C_HID,), jnp.float32), "b1b": jnp.zeros((C_HID,), jnp.float32),
        "w0b": jax.random.normal(k_w0b, (C_OUT, C_HID), jnp.float32) / jnp.sqrt(C_HID),
        "w1b": jax.random.normal(k_w1b, (C_OUT, C_HID), jnp.float32) / jnp.sqrt(C_HID),
    }

    y0, y1 = linear_module_forward(x0, x1, params, tile_n=TILE_N)
    jax.block_until_ready((y0, y1))

    r0, r1 = _reference(x0, x1, params)
    assert y0.shape == (1, C_OUT, N) and y1.shape == (3, C_OUT, N)
    assert jnp.allclose(y0, r0, atol=1e-4, rtol=1e-4)
    assert jnp.allclose(y1, r1, atol=1e-4, rtol=1e-4)

    print("KERNEL_OK")
</pallas_src>

<mosaic_0001>
module attributes {stable_mosaic.version = 11 : i64} {
  func.func @linear_module_kernel(%arg0: i32, %arg1: memref<1x16x512xf32, #tpu.memory_space<vmem>>, %arg2: memref<3x16x512xf32, #tpu.memory_space<vmem>>, %arg3: memref<16x4xf32, #tpu.memory_space<vmem>>, %arg4: memref<32x4xf32, #tpu.memory_space<vmem>>, %arg5: memref<2x32x16xf32, #tpu.memory_space<vmem>>, %arg6: memref<2x16x32xf32, #tpu.memory_space<vmem>>, %arg7: memref<1x16x512xf32, #tpu.memory_space<vmem>>, %arg8: memref<3x16x512xf32, #tpu.memory_space<vmem>>) attributes {dimension_semantics = [#tpu.dimension_semantics<parallel>], iteration_bounds = array<i64: 4>, scalar_prefetch = 0 : i64, scratch_operands = 0 : i64, tpu.core_type = #tpu.core_type<tc>, window_params = [{transform_indices = @transform_0, window_bounds = array<i64: 1, 16, 512>}, {transform_indices = @transform_1, window_bounds = array<i64: 3, 16, 512>}, {pipeline_mode = #tpu.pipeline_mode<synchronous>, transform_indices = @transform_2, window_bounds = array<i64: 16, 4>}, {pipeline_mode = #tpu.pipeline_mode<synchronous>, transform_indices = @transform_3, window_bounds = array<i64: 32, 4>}, {pipeline_mode = #tpu.pipeline_mode<synchronous>, transform_indices = @transform_4, window_bounds = array<i64: 2, 32, 16>}, {pipeline_mode = #tpu.pipeline_mode<synchronous>, transform_indices = @transform_5, window_bounds = array<i64: 2, 16, 32>}, {transform_indices = @transform_6, window_bounds = array<i64: 1, 16, 512>}, {transform_indices = @transform_7, window_bounds = array<i64: 3, 16, 512>}]} {
    %c0 = arith.constant 0 : index
    %c0_0 = arith.constant 0 : index
    %0 = vector.load %arg3[%c0, %c0_0] : memref<16x4xf32, #tpu.memory_space<vmem>>, vector<16x4xf32>
    %c0_1 = arith.constant 0 : index
    %c0_2 = arith.constant 0 : index
    %1 = vector.load %arg4[%c0_1, %c0_2] : memref<32x4xf32, #tpu.memory_space<vmem>>, vector<32x4xf32>
    %2 = vector.extract_strided_slice %0 {offsets = [0, 0], sizes = [16, 1], strides = [1, 1]} : vector<16x4xf32> to vector<16x1xf32>
    %3 = vector.extract_strided_slice %0 {offsets = [0, 1], sizes = [16, 1], strides = [1, 1]} : vector<16x4xf32> to vector<16x1xf32>
    %4 = vector.extract_strided_slice %0 {offsets = [0, 2], sizes = [16, 1], strides = [1, 1]} : vector<16x4xf32> to vector<16x1xf32>
    %5 = vector.extract_strided_slice %0 {offsets = [0, 3], sizes = [16, 1], strides = [1, 1]} : vector<16x4xf32> to vector<16x1xf32>
    %6 = vector.extract_strided_slice %1 {offsets = [0, 0], sizes = [32, 1], strides = [1, 1]} : vector<32x4xf32> to vector<32x1xf32>
    %7 = vector.extract_strided_slice %1 {offsets = [0, 1], sizes = [32, 1], strides = [1, 1]} : vector<32x4xf32> to vector<32x1xf32>
    %8 = vector.extract_strided_slice %1 {offsets = [0, 2], sizes = [32, 1], strides = [1, 1]} : vector<32x4xf32> to vector<32x1xf32>
    %9 = vector.extract_strided_slice %1 {offsets = [0, 3], sizes = [32, 1], strides = [1, 1]} : vector<32x4xf32> to vector<32x1xf32>
    %c0_3 = arith.constant 0 : index
    %c0_4 = arith.constant 0 : index
    %c0_5 = arith.constant 0 : index
    %10 = vector.load %arg5[%c0_3, %c0_4, %c0_5] : memref<2x32x16xf32, #tpu.memory_space<vmem>>, vector<1x32x16xf32>
    %11 = vector.shape_cast %10 : vector<1x32x16xf32> to vector<32x16xf32>
    %c1 = arith.constant 1 : index
    %c0_6 = arith.constant 0 : index
    %c0_7 = arith.constant 0 : index
    %12 = vector.load %arg5[%c1, %c0_6, %c0_7] : memref<2x32x16xf32, #tpu.memory_space<vmem>>, vector<1x32x16xf32>
    %13 = vector.shape_cast %12 : vector<1x32x16xf32> to vector<32x16xf32>
    %c0_8 = arith.constant 0 : index
    %c0_9 = arith.constant 0 : index
    %c0_10 = arith.constant 0 : index
    %14 = vector.load %arg6[%c0_8, %c0_9, %c0_10] : memref<2x16x32xf32, #tpu.memory_space<vmem>>, vector<1x16x32xf32>
    %15 = vector.shape_cast %14 : vector<1x16x32xf32> to vector<16x32xf32>
    %c1_11 = arith.constant 1 : index
    %c0_12 = arith.constant 0 : index
    %c0_13 = arith.constant 0 : index
    %16 = vector.load %arg6[%c1_11, %c0_12, %c0_13] : memref<2x16x32xf32, #tpu.memory_space<vmem>>, vector<1x16x32xf32>
    %17 = vector.shape_cast %16 : vector<1x16x32xf32> to vector<16x32xf32>
    %c0_14 = arith.constant 0 : index
    %c0_15 = arith.constant 0 : index
    %c0_16 = arith.constant 0 : index
    %18 = vector.load %arg1[%c0_14, %c0_15, %c0_16] : memref<1x16x512xf32, #tpu.memory_space<vmem>>, vector<1x16x512xf32>
    %19 = vector.shape_cast %18 : vector<1x16x512xf32> to vector<16x512xf32>
    %20 = arith.mulf %19, %19 : vector<16x512xf32>
    %cst = arith.constant 3.55271368E-15 : f32
    %21 = vector.broadcast %cst : f32 to vector<16x512xf32>
    %22 = arith.maximumf %20, %21 : vector<16x512xf32>
    %23 = math.rsqrt %22 : vector<16x512xf32>
    %24 = arith.mulf %22, %23 : vector<16x512xf32>
    %cst_17 = arith.constant dense<0.000000e+00> : vector<512xf32>
    %25 = vector.multi_reduction <add>, %24, %cst_17 [0] : vector<16x512xf32> to vector<512xf32>
    %26 = vector.shape_cast %25 : vector<512xf32> to vector<1x512xf32>
    %cst_18 = arith.constant 1.600000e+01 : f32
    %27 = vector.broadcast %cst_18 : f32 to vector<1x512xf32>
    %28 = arith.divf %26, %27 : vector<1x512xf32>
    %29 = vector.broadcast %28 : vector<1x512xf32> to vector<16x512xf32>
    %30 = arith.subf %24, %29 : vector<16x512xf32>
    %31 = arith.mulf %30, %30 : vector<16x512xf32>
    %cst_19 = arith.constant dense<0.000000e+00> : vector<512xf32>
    %32 = vector.multi_reduction <add>, %31, %cst_19 [0] : vector<16x512xf32> to vector<512xf32>
    %33 = vector.shape_cast %32 : vector<512xf32> to vector<1x512xf32>
    %cst_20 = arith.constant 1.600000e+01 : f32
    %34 = vector.broadcast %cst_20 : f32 to vector<1x512xf32>
    %35 = arith.divf %33, %34 : vector<1x512xf32>
    %36 = vector.broadcast %28 : vector<1x512xf32> to vector<16x512xf32>
    %37 = arith.subf %24, %36 : vector<16x512xf32>
    %cst_21 = arith.constant 9.99999974E-6 : f32
    %38 = vector.broadcast %cst_21 : f32 to vector<1x512xf32>
    %39 = arith.addf %35, %38 : vector<1x512xf32>
    %40 = math.rsqrt %39 : vector<1x512xf32>
    %41 = vector.broadcast %40 : vector<1x512xf32> to vector<16x512xf32>
    %42 = arith.mulf %37, %41 : vector<16x512xf32>
    %43 = vector.broadcast %2 : vector<16x1xf32> to vector<16x512xf32>
    %44 = arith.mulf %42, %43 : vector<16x512xf32>
    %45 = vector.broadcast %3 : vector<16x1xf32> to vector<16x512xf32>
    %46 = arith.addf %44, %45 : vector<16x512xf32>
    %cst_22 = arith.constant 0.000000e+00 : f32
    %47 = vector.broadcast %cst_22 : f32 to vector<16x512xf32>
    %48 = arith.maximumf %46, %47 : vector<16x512xf32>
    %49 = arith.mulf %48, %23 : vector<16x512xf32>
    %50 = arith.mulf %19, %49 : vector<16x512xf32>
    %cst_23 = arith.constant dense<0.000000e+00> : vector<32x512xf32>
    %51 = tpu.matmul %11, %50, %cst_23 {dimension_numbers = #tpu.dot_dimension_numbers<[1], [0], [0], [1], [0, 0, 1, 1], [], []>} : vector<32x16xf32>, vector<16x512xf32>, vector<32x512xf32> -> vector<32x512xf32>
    %52 = arith.mulf %51, %51 : vector<32x512xf32>
    %cst_24 = arith.constant 3.55271368E-15 : f32
    %53 = vector.broadcast %cst_24 : f32 to vector<32x512xf32>
    %54 = arith.maximumf %52, %53 : vector<32x512xf32>
    %55 = math.rsqrt %54 : vector<32x512xf32>
    %56 = arith.mulf %54, %55 : vector<32x512xf32>
    %cst_25 = arith.constant dense<0.000000e+00> : vector<512xf32>
    %57 = vector.multi_reduction <add>, %56, %cst_25 [0] : vector<32x512xf32> to vector<512xf32>
    %58 = vector.shape_cast %57 : vector<512xf32> to vector<1x512xf32>
    %cst_26 = arith.constant 3.200000e+01 : f32
    %59 = vector.broadcast %cst_26 : f32 to vector<1x512xf32>
    %60 = arith.divf %58, %59 : vector<1x512xf32>
    %61 = vector.broadcast %60 : vector<1x512xf32> to vector<32x512xf32>
    %62 = arith.subf %56, %61 : vector<32x512xf32>
    %63 = arith.mulf %62, %62 : vector<32x512xf32>
    %cst_27 = arith.constant dense<0.000000e+00> : vector<512xf32>
    %64 = vector.multi_reduction <add>, %63, %cst_27 [0] : vector<32x512xf32> to vector<512xf32>
    %65 = vector.shape_cast %64 : vector<512xf32> to vector<1x512xf32>
    %cst_28 = arith.constant 3.200000e+01 : f32
    %66 = vector.broadcast %cst_28 : f32 to vector<1x512xf32>
    %67 = arith.divf %65, %66 : vector<1x512xf32>
    %68 = vector.broadcast %60 : vector<1x512xf32> to vector<32x512xf32>
    %69 = arith.subf %56, %68 : vector<32x512xf32>
    %cst_29 = arith.constant 9.99999974E-6 : f32
    %70 = vector.broadcast %cst_29 : f32 to vector<1x512xf32>
    %71 = arith.addf %67, %70 : vector<1x512xf32>
    %72 = math.rsqrt %71 : vector<1x512xf32>
    %73 = vector.broadcast %72 : vector<1x512xf32> to vector<32x512xf32>
    %74 = arith.mulf %69, %73 : vector<32x512xf32>
    %75 = vector.broadcast %6 : vector<32x1xf32> to vector<32x512xf32>
    %76 = arith.mulf %74, %75 : vector<32x512xf32>
    %77 = vector.broadcast %7 : vector<32x1xf32> to vector<32x512xf32>
    %78 = arith.addf %76, %77 : vector<32x512xf32>
    %cst_30 = arith.constant 0.000000e+00 : f32
    %79 = vector.broadcast %cst_30 : f32 to vector<32x512xf32>
    %80 = arith.maximumf %78, %79 : vector<32x512xf32>
    %81 = arith.mulf %80, %55 : vector<32x512xf32>
    %82 = arith.mulf %51, %81 : vector<32x512xf32>
    %cst_31 = arith.constant dense<0.000000e+00> : vector<16x512xf32>
    %83 = tpu.matmul %15, %82, %cst_31 {dimension_numbers = #tpu.dot_dimension_numbers<[1], [0], [0], [1], [0, 0, 1, 1], [], []>} : vector<16x32xf32>, vector<32x512xf32>, vector<16x512xf32> -> vector<16x512xf32>
    %c0_32 = arith.constant 0 : index
    %c0_33 = arith.constant 0 : index
    %c0_34 = arith.constant 0 : index
    %84 = vector.load %arg7[%c0_32, %c0_33, %c0_34] : memref<1x16x512xf32, #tpu.memory_space<vmem>>, vector<1x16x512xf32>
    %85 = vector.shape_cast %84 : vector<1x16x512xf32> to vector<16x512xf32>
    %86 = vector.shape_cast %83 : vector<16x512xf32> to vector<1x16x512xf32>
    tpu.vector_store %arg7[%c0_32, %c0_33, %c0_34], %86 {strides = array<i32>} : memref<1x16x512xf32, #tpu.memory_space<vmem>>, vector<1x16x512xf32>,
    %c0_35 = arith.constant 0 : index
    %c0_36 = arith.constant 0 : index
    %c0_37 = arith.constant 0 : index
    %87 = vector.load %arg2[%c0_35, %c0_36, %c0_37] : memref<3x16x512xf32, #tpu.memory_space<vmem>>, vector<1x16x512xf32>
    %88 = vector.shape_cast %87 : vector<1x16x512xf32> to vector<16x512xf32>
    %c1_38 = arith.constant 1 : index
    %c0_39 = arith.constant 0 : index
    %c0_40 = arith.constant 0 : index
    %89 = vector.load %arg2[%c1_38, %c0_39, %c0_40] : memref<3x16x512xf32, #tpu.memory_space<vmem>>, vector<1x16x512xf32>
    %90 = vector.shape_cast %89 : vector<1x16x512xf32> to vector<16x512xf32>
    %c2 = arith.constant 2 : index
    %c0_41 = arith.constant 0 : index
    %c0_42 = arith.constant 0 : index
    %91 = vector.load %arg2[%c2, %c0_41, %c0_42] : memref<3x16x512xf32, #tpu.memory_space<vmem>>, vector<1x16x512xf32>
    %92 = vector.shape_cast %91 : vector<1x16x512xf32> to vector<16x512xf32>
    %93 = arith.mulf %88, %88 : vector<16x512xf32>
    %94 = arith.mulf %90, %90 : vector<16x512xf32>
    %95 = arith.addf %93, %94 : vector<16x512xf32>
    %96 = arith.mulf %92, %92 : vector<16x512xf32>
    %97 = arith.addf %95, %96 : vector<16x512xf32>
    %cst_43 = arith.constant 3.55271368E-15 : f32
    %98 = vector.broadcast %cst_43 : f32 to vector<16x512xf32>
    %99 = arith.maximumf %97, %98 : vector<16x512xf32>
    %100 = math.rsqrt %99 : vector<16x512xf32>
    %101 = arith.mulf %99, %100 : vector<16x512xf32>
    %cst_44 = arith.constant dense<0.000000e+00> : vector<512xf32>
    %102 = vector.multi_reduction <add>, %101, %cst_44 [0] : vector<16x512xf32> to vector<512xf32>
    %103 = vector.shape_cast %102 : vector<512xf32> to vector<1x512xf32>
    %cst_45 = arith.constant 1.600000e+01 : f32
    %104 = vector.broadcast %cst_45 : f32 to vector<1x512xf32>
    %105 = arith.divf %103, %104 : vector<1x512xf32>
    %106 = vector.broadcast %105 : vector<1x512xf32> to vector<16x512xf32>
    %107 = arith.subf %101, %106 : vector<16x512xf32>
    %108 = arith.mulf %107, %107 : vector<16x512xf32>
    %cst_46 = arith.constant dense<0.000000e+00> : vector<512xf32>
    %109 = vector.multi_reduction <add>, %108, %cst_46 [0] : vector<16x512xf32> to vector<512xf32>
    %110 = vector.shape_cast %109 : vector<512xf32> to vector<1x512xf32>
    %cst_47 = arith.constant 1.600000e+01 : f32
    %111 = vector.broadcast %cst_47 : f32 to vector<1x512xf32>
    %112 = arith.divf %110, %111 : vector<1x512xf32>
    %113 = vector.broadcast %105 : vector<1x512xf32> to vector<16x512xf32>
    %114 = arith.subf %101, %113 : vector<16x512xf32>
    %cst_48 = arith.constant 9.99999974E-6 : f32
    %115 = vector.broadcast %cst_48 : f32 to vector<1x512xf32>
    %116 = arith.addf %112, %115 : vector<1x512xf32>
    %117 = math.rsqrt %116 : vector<1x512xf32>
    %118 = vector.broadcast %117 : vector<1x512xf32> to vector<16x512xf32>
    %119 = arith.mulf %114, %118 : vector<16x512xf32>
    %120 = vector.broadcast %4 : vector<16x1xf32> to vector<16x512xf32>
    %121 = arith.mulf %119, %120 : vector<16x512xf32>
    %122 = vector.broadcast %5 : vector<16x1xf32> to vector<16x512xf32>
    %123 = arith.addf %121, %122 : vector<16x512xf32>
    %cst_49 = arith.constant 0.000000e+00 : f32
    %124 = vector.broadcast %cst_49 : f32 to vector<16x512xf32>
    %125 = arith.maximumf %123, %124 : vector<16x512xf32>
    %126 = arith.mulf %125, %100 : vector<16x512xf32>
    %127 = arith.mulf %88, %126 : vector<16x512xf32>
    %128 = arith.mulf %90, %126 : vector<16x512xf32>
    %129 = arith.mulf %92, %126 : vector<16x512xf32>
    %cst_50 = arith.constant dense<0.000000e+00> : vector<32x512xf32>
    %130 = tpu.matmul %13, %127, %cst_50 {dimension_numbers = #tpu.dot_dimension_numbers<[1], [0], [0], [1], [0, 0, 1, 1], [], []>} : vector<32x16xf32>, vector<16x512xf32>, vector<32x512xf32> -> vector<32x512xf32>
    %cst_51 = arith.constant dense<0.000000e+00> : vector<32x512xf32>
    %131 = tpu.matmul %13, %128, %cst_51 {dimension_numbers = #tpu.dot_dimension_numbers<[1], [0], [0], [1], [0, 0, 1, 1], [], []>} : vector<32x16xf32>, vector<16x512xf32>, vector<32x512xf32> -> vector<32x512xf32>
    %cst_52 = arith.constant dense<0.000000e+00> : vector<32x512xf32>
    %132 = tpu.matmul %13, %129, %cst_52 {dimension_numbers = #tpu.dot_dimension_numbers<[1], [0], [0], [1], [0, 0, 1, 1], [], []>} : vector<32x16xf32>, vector<16x512xf32>, vector<32x512xf32> -> vector<32x512xf32>
    %133 = arith.mulf %130, %130 : vector<32x512xf32>
    %134 = arith.mulf %131, %131 : vector<32x512xf32>
    %135 = arith.addf %133, %134 : vector<32x512xf32>
    %136 = arith.mulf %132, %132 : vector<32x512xf32>
    %137 = arith.addf %135, %136 : vector<32x512xf32>
    %cst_53 = arith.constant 3.55271368E-15 : f32
    %138 = vector.broadcast %cst_53 : f32 to vector<32x512xf32>
    %139 = arith.maximumf %137, %138 : vector<32x512xf32>
    %140 = math.rsqrt %139 : vector<32x512xf32>
    %141 = arith.mulf %139, %140 : vector<32x512xf32>
    %cst_54 = arith.constant dense<0.000000e+00> : vector<512xf32>
    %142 = vector.multi_reduction <add>, %141, %cst_54 [0] : vector<32x512xf32> to vector<512xf32>
    %143 = vector.shape_cast %142 : vector<512xf32> to vector<1x512xf32>
    %cst_55 = arith.constant 3.200000e+01 : f32
    %144 = vector.broadcast %cst_55 : f32 to vector<1x512xf32>
    %145 = arith.divf %143, %144 : vector<1x512xf32>
    %146 = vector.broadcast %145 : vector<1x512xf32> to vector<32x512xf32>
    %147 = arith.subf %141, %146 : vector<32x512xf32>
    %148 = arith.mulf %147, %147 : vector<32x512xf32>
    %cst_56 = arith.constant dense<0.000000e+00> : vector<512xf32>
    %149 = vector.multi_reduction <add>, %148, %cst_56 [0] : vector<32x512xf32> to vector<512xf32>
    %150 = vector.shape_cast %149 : vector<512xf32> to vector<1x512xf32>
    %cst_57 = arith.constant 3.200000e+01 : f32
    %151 = vector.broadcast %cst_57 : f32 to vector<1x512xf32>
    %152 = arith.divf %150, %151 : vector<1x512xf32>
    %153 = vector.broadcast %145 : vector<1x512xf32> to vector<32x512xf32>
    %154 = arith.subf %141, %153 : vector<32x512xf32>
    %cst_58 = arith.constant 9.99999974E-6 : f32
    %155 = vector.broadcast %cst_58 : f32 to vector<1x512xf32>
    %156 = arith.addf %152, %155 : vector<1x512xf32>
    %157 = math.rsqrt %156 : vector<1x512xf32>
    %158 = vector.broadcast %157 : vector<1x512xf32> to vector<32x512xf32>
    %159 = arith.mulf %154, %158 : vector<32x512xf32>
    %160 = vector.broadcast %8 : vector<32x1xf32> to vector<32x512xf32>
    %161 = arith.mulf %159, %160 : vector<32x512xf32>
    %162 = vector.broadcast %9 : vector<32x1xf32> to vector<32x512xf32>
    %163 = arith.addf %161, %162 : vector<32x512xf32>
    %cst_59 = arith.constant 0.000000e+00 : f32
    %164 = vector.broadcast %cst_59 : f32 to vector<32x512xf32>
    %165 = arith.maximumf %163, %164 : vector<32x512xf32>
    %166 = arith.mulf %165, %140 : vector<32x512xf32>
    %167 = arith.mulf %130, %166 : vector<32x512xf32>
    %168 = arith.mulf %131, %166 : vector<32x512xf32>
    %169 = arith.mulf %132, %166 : vector<32x512xf32>
    %cst_60 = arith.constant dense<0.000000e+00> : vector<16x512xf32>
    %170 = tpu.matmul %17, %167, %cst_60 {dimension_numbers = #tpu.dot_dimension_numbers<[1], [0], [0], [1], [0, 0, 1, 1], [], []>} : vector<16x32xf32>, vector<32x512xf32>, vector<16x512xf32> -> vector<16x512xf32>
    %cst_61 = arith.constant dense<0.000000e+00> : vector<16x512xf32>
    %171 = tpu.matmul %17, %168, %cst_61 {dimension_numbers = #tpu.dot_dimension_numbers<[1], [0], [0], [1], [0, 0, 1, 1], [], []>} : vector<16x32xf32>, vector<32x512xf32>, vector<16x512xf32> -> vector<16x512xf32>
    %cst_62 = arith.constant dense<0.000000e+00> : vector<16x512xf32>
    %172 = tpu.matmul %17, %169, %cst_62 {dimension_numbers = #tpu.dot_dimension_numbers<[1], [0], [0], [1], [0, 0, 1, 1], [], []>} : vector<16x32xf32>, vector<32x512xf32>, vector<16x512xf32> -> vector<16x512xf32>
    %c0_63 = arith.constant 0 : index
    %c0_64 = arith.constant 0 : index
    %c0_65 = arith.constant 0 : index
    %173 = vector.load %arg8[%c0_63, %c0_64, %c0_65] : memref<3x16x512xf32, #tpu.memory_space<vmem>>, vector<1x16x512xf32>
    %174 = vector.shape_cast %173 : vector<1x16x512xf32> to vector<16x512xf32>
    %175 = vector.shape_cast %170 : vector<16x512xf32> to vector<1x16x512xf32>
    tpu.vector_store %arg8[%c0_63, %c0_64, %c0_65], %175 {strides = array<i32>} : memref<3x16x512xf32, #tpu.memory_space<vmem>>, vector<1x16x512xf32>,
    %c1_66 = arith.constant 1 : index
    %c0_67 = arith.constant 0 : index
    %c0_68 = arith.constant 0 : index
    %176 = vector.load %arg8[%c1_66, %c0_67, %c0_68] : memref<3x16x512xf32, #tpu.memory_space<vmem>>, vector<1x16x512xf32>
    %177 = vector.shape_cast %176 : vector<1x16x512xf32> to vector<16x512xf32>
    %178 = vector.shape_cast %171 : vector<16x512xf32> to vector<1x16x512xf32>
    tpu.vector_store %arg8[%c1_66, %c0_67, %c0_68], %178 {strides = array<i32>} : memref<3x16x512xf32, #tpu.memory_space<vmem>>, vector<1x16x512xf32>,
    %c2_69 = arith.constant 2 : index
    %c0_70 = arith.constant 0 : index
    %c0_71 = arith.constant 0 : index
    %179 = vector.load %arg8[%c2_69, %c0_70, %c0_71] : memref<3x16x512xf32, #tpu.memory_space<vmem>>, vector<1x16x512xf32>
    %180 = vector.shape_cast %179 : vector<1x16x512xf32> to vector<16x512xf32>
    %181 = vector.shape_cast %172 : vector<16x512xf32> to vector<1x16x512xf32>
    tpu.vector_store %arg8[%c2_69, %c0_70, %c0_71], %181 {strides = array<i32>} : memref<3x16x512xf32, #tpu.memory_space<vmem>>, vector<1x16x512xf32>,
    return
  }
  func.func @transform_0(%arg0: i32) -> (i32, i32, i32) {
    %c0_i32 = arith.constant 0 : i32
    %c0_i32_0 = arith.constant 0 : i32
    %c0_i32_1 = arith.constant 0 : i32
    return %c0_i32, %c0_i32_0, %arg0 : i32, i32, i32
  }
  func.func @transform_1(%arg0: i32) -> (i32, i32, i32) {
    %c0_i32 = arith.constant 0 : i32
    %c0_i32_0 = arith.constant 0 : i32
    %c0_i32_1 = arith.constant 0 : i32
    return %c0_i32, %c0_i32_0, %arg0 : i32, i32, i32
  }
  func.func @transform_2(%arg0: i32) -> (i32, i32) {
    %c0_i32 = arith.constant 0 : i32
    %c0_i32_0 = arith.constant 0 : i32
    %c0_i32_1 = arith.constant 0 : i32
    return %c0_i32, %c0_i32_0 : i32, i32
  }
  func.func @transform_3(%arg0: i32) -> (i32, i32) {
    %c0_i32 = arith.constant 0 : i32
    %c0_i32_0 = arith.constant 0 : i32
    %c0_i32_1 = arith.constant 0 : i32
    return %c0_i32, %c0_i32_0 : i32, i32
  }
  func.func @transform_4(%arg0: i32) -> (i32, i32, i32) {
    %c0_i32 = arith.constant 0 : i32
    %c0_i32_0 = arith.constant 0 : i32
    %c0_i32_1 = arith.constant 0 : i32
    %c0_i32_2 = arith.constant 0 : i32
    return %c0_i32, %c0_i32_0, %c0_i32_1 : i32, i32, i32
  }
  func.func @transform_5(%arg0: i32) -> (i32, i32, i32) {
    %c0_i32 = arith.constant 0 : i32
    %c0_i32_0 = arith.constant 0 : i32
    %c0_i32_1 = arith.constant 0 : i32
    %c0_i32_2 = arith.constant 0 : i32
    return %c0_i32, %c0_i32_0, %c0_i32_1 : i32, i32, i32
  }
  func.func @transform_6(%arg0: i32) -> (i32, i32, i32) {
    %c0_i32 = arith.constant 0 : i32
    %c0_i32_0 = arith.constant 0 : i32
    %c0_i32_1 = arith.constant 0 : i32
    return %c0_i32, %c0_i32_0, %arg0 : i32, i32, i32
  }
  func.func @transform_7(%arg0: i32) -> (i32, i32, i32) {
    %c0_i32 = arith.constant 0 : i32
    %c0_i32_0 = arith.constant 0 : i32
    %c0_i32_1 = arith.constant 0 : i32
    return %c0_i32, %c0_i32_0, %arg0 : i32, i32, i32
  }
}

</mosaic_0001>

<llo_original>
// kernel: tpu_custom_call.1
$region0: #{tpu_custom_call.1}
  #allocation0 [shape = 'u32[]', space=smem, size = 0x4, offset = 0x4, fixed_abs, tag = 'smem constant byte address 0x4 - core index']
  #allocation1 [shape = 'u32[144,128]{1,0:T(1,128)}', space=vmem, size = 0x12000, scoped, tag = 'internal scratch']
  %s0 = inlined_call_operand.hbm [shape: f32[1,16,2048], index: 0, kind: input, shape index: {}]
  %s1 = inlined_call_operand.hbm [shape: f32[3,16,2048], index: 1, kind: input, shape index: {}]
  %s2 = inlined_call_operand.vmem [shape: f32[16,4], index: 2, kind: input, shape index: {}]
  %s3 = inlined_call_operand.vmem [shape: f32[32,4], index: 3, kind: input, shape index: {}]
  %s4 = inlined_call_operand.vmem [shape: f32[2,32,16], index: 4, kind: input, shape index: {}]
  %s5 = inlined_call_operand.vmem [shape: f32[2,16,32], index: 5, kind: input, shape index: {}]
  %s6 = inlined_call_operand.hbm [shape: f32[1,16,2048], index: 6, kind: output, shape index: {0}]
  %s7 = inlined_call_operand.hbm [shape: f32[3,16,2048], index: 7, kind: output, shape index: {1}]
  %8 = xla_tuple %s6, %s7
  %s9 = sld [smem:[#allocation0]]
  $region73: #{tpu_custom_call.1} parent=0
    _
  %s11 = ssub.s32 1, %s9
  %s12 = scalar_select 0, %s11, %s9
  $region1: #{tpu_custom_call.1} parent=0
    #allocation2 [shape = 'u8[65536]{0}', space=vmem, size = 0x10000, scoped, tag = 'input window, operand 0']
    #allocation3 [shape = 's32[2]{0}', space=sflag, size = 0x8, scoped, tag = 'scoped memory for tpu_custom_call.1']
    #allocation4 [shape = 's32[2]{0}', space=sflag, size = 0x8, scoped, tag = 'scoped memory for tpu_custom_call.1']
    #allocation5 [shape = 'u8[196608]{0}', space=vmem, size = 0x30000, scoped, tag = 'input window, operand 1']
    #allocation6 [shape = 's32[2]{0}', space=sflag, size = 0x8, scoped, tag = 'scoped memory for tpu_custom_call.1']
    #allocation7 [shape = 'u8[65536]{0}', space=vmem, size = 0x10000, scoped, tag = 'output window, operand 0']
    #allocation8 [shape = 'u8[196608]{0}', space=vmem, size = 0x30000, scoped, tag = 'output window, operand 1']
    #allocation9 [shape = 's32[2]{0}', space=sflag, size = 0x8, scoped, tag = 'scoped memory for tpu_custom_call.1']
    %13 = vsyncpa [#allocation3], 0
    %s14 = scalar_lea.sflag [#allocation3], 1
    %15 = vsyncpa %s14, 0
    %16 = vsyncpa [#allocation6], 0
    %s17 = scalar_lea.sflag [#allocation6], 1
    %18 = vsyncpa %s17, 0
    %19 = vsyncpa [#allocation4], 0
    %s20 = scalar_lea.sflag [#allocation4], 1
    %21 = vsyncpa %s20, 0
    %22 = vsyncpa [#allocation9], 0
    %s23 = scalar_lea.sflag [#allocation9], 1
    %24 = vsyncpa %s23, 0
    loop: start=0, step=1, limit=6
    $region2: #{tpu_custom_call.1} parent=1 // loop_pre_header
      _
    $region3: #{tpu_custom_call.1} parent=1 // loop_header
      %s26 = sphi 0, %s30
      %p27 = scmp.ge.s32.totalorder %s26, 6
      %s36 = sphi 0, %s38
      %s39 = sphi 0, %s36
      %s40 = sphi 0, %s39
      %s56 = sphi 0, %s40
      %s62 = sphi 0, %s64
      %s65 = sphi 0, %s62
      %s66 = sphi 0, %s65
      %s82 = sphi 0, %s66
      %s86 = sphi 0, %s86
      %s88 = sphi 0, %s86
      %s89 = sphi 0, %s88
      %s103 = sphi 0, %s89
      %s107 = sphi 0, %s107
      %s109 = sphi 0, %s107
      %s110 = sphi 0, %s109
      %s124 = sphi 0, %s110
      %s128 = sphi 0, %s128
      %s130 = sphi 0, %s128
      %s131 = sphi 0, %s130
      %s145 = sphi 0, %s131
      %s149 = sphi 0, %s149
      %s151 = sphi 0, %s149
      %s152 = sphi 0, %s151
      %s166 = sphi 0, %s152
      %s172 = sphi 0, %s174
      %s175 = sphi 0, %s172
      %s176 = sphi 0, %s175
      %s192 = sphi 0, %s176
      %s198 = sphi 0, %s200
      %s201 = sphi 0, %s198
      %s202 = sphi 0, %s201
      %s218 = sphi 0, %s202
    $region4: #{tpu_custom_call.1} parent=1 // loop_header_branch
      %29 = sbr.rel (%p27) target = $region8
    $region5: #{tpu_custom_call.1} parent=1 // loop_body
      %s31 = ssub.s32 %s26, 1
      %s32 = ssub.s32 %s26, 2
      %s33 = sadd.s32 %s26, 1
      %s34 = ssub.s32 %s26, %s33
      %p35 = scmp.eq.s32.totalorder %s34, 0
      %s37 = sadd.s32 %s36, 1
      %s38 = scalar_select %p35, %s36, %s37
      %p41 = pneg %p35
      %p42 = scmp.eq.s32.totalorder %s26, 3
      %p43 = por %p41, %p42
      %p44 = scmp.ne.s32.totalorder %s36, %s39
      %p45 = scmp.eq.s32.totalorder %s26, 0
      %p46 = por %p44, %p45
      %p47 = scmp.ne.s32.totalorder %s36, %s39
      %p48 = scmp.eq.s32.totalorder %s31, 3
      %p49 = por %p47, %p48
      %p50 = scmp.ne.s32.totalorder %s39, %s40
      %p51 = scmp.eq.s32.totalorder %s31, 0
      %p52 = por %p50, %p51
      %p53 = scmp.ne.s32.totalorder %s39, %s40
      %p54 = scmp.eq.s32.totalorder %s32, 3
      %p55 = por %p53, %p54
      %p57 = scmp.ne.s32.totalorder %s40, %s56
      %p58 = scmp.eq.s32.totalorder %s32, 0
      %p59 = por %p57, %p58
      %s60 = ssub.s32 %s26, %s33
      %p61 = scmp.eq.s32.totalorder %s60, 0
      %s63 = sadd.s32 %s62, 1
      %s64 = scalar_select %p61, %s62, %s63
      %p67 = pneg %p61
      %p68 = scmp.eq.s32.totalorder %s26, 3
      %p69 = por %p67, %p68
      %p70 = scmp.ne.s32.totalorder %s62, %s65
      %p71 = scmp.eq.s32.totalorder %s26, 0
      %p72 = por %p70, %p71
      %p73 = scmp.ne.s32.totalorder %s62, %s65
      %p74 = scmp.eq.s32.totalorder %s31, 3
      %p75 = por %p73, %p74
      %p76 = scmp.ne.s32.totalorder %s65, %s66
      %p77 = scmp.eq.s32.totalorder %s31, 0
      %p78 = por %p76, %p77
      %p79 = scmp.ne.s32.totalorder %s65, %s66
      %p80 = scmp.eq.s32.totalorder %s32, 3
      %p81 = por %p79, %p80
      %p83 = scmp.ne.s32.totalorder %s66, %s82
      %p84 = scmp.eq.s32.totalorder %s32, 0
      %p85 = por %p83, %p84
      %s87 = sadd.s32 %s86, 1
      %p90 = scmp.eq.s32.totalorder %s26, 3
      %p91 = scmp.ne.s32.totalorder %s86, %s88
      %p92 = scmp.eq.s32.totalorder %s26, 0
      %p93 = por %p91, %p92
      %p94 = scmp.ne.s32.totalorder %s86, %s88
      %p95 = scmp.eq.s32.totalorder %s31, 3
      %p96 = por %p94, %p95
      %p97 = scmp.ne.s32.totalorder %s88, %s89
      %p98 = scmp.eq.s32.totalorder %s31, 0
      %p99 = por %p97, %p98
      %p100 = scmp.ne.s32.totalorder %s88, %s89
      %p101 = scmp.eq.s32.totalorder %s32, 3
      %p102 = por %p100, %p101
      %p104 = scmp.ne.s32.totalorder %s89, %s103
      %p105 = scmp.eq.s32.totalorder %s32, 0
      %p106 = por %p104, %p105
      %s108 = sadd.s32 %s107, 1
      %p111 = scmp.eq.s32.totalorder %s26, 3
      %p112 = scmp.ne.s32.totalorder %s107, %s109
      %p113 = scmp.eq.s32.totalorder %s26, 0
      %p114 = por %p112, %p113
      %p115 = scmp.ne.s32.totalorder %s107, %s109
      %p116 = scmp.eq.s32.totalorder %s31, 3
      %p117 = por %p115, %p116
      %p118 = scmp.ne.s32.totalorder %s109, %s110
      %p119 = scmp.eq.s32.totalorder %s31, 0
      %p120 = por %p118, %p119
      %p121 = scmp.ne.s32.totalorder %s109, %s110
      %p122 = scmp.eq.s32.totalorder %s32, 3
      %p123 = por %p121, %p122
      %p125 = scmp.ne.s32.totalorder %s110, %s124
      %p126 = scmp.eq.s32.totalorder %s32, 0
      %p127 = por %p125, %p126
      %s129 = sadd.s32 %s128, 1
      %p132 = scmp.eq.s32.totalorder %s26, 3
      %p133 = scmp.ne.s32.totalorder %s128, %s130
      %p134 = scmp.eq.s32.totalorder %s26, 0
      %p135 = por %p133, %p134
      %p136 = scmp.ne.s32.totalorder %s128, %s130
      %p137 = scmp.eq.s32.totalorder %s31, 3
      %p138 = por %p136, %p137
      %p139 = scmp.ne.s32.totalorder %s130, %s131
      %p140 = scmp.eq.s32.totalorder %s31, 0
      %p141 = por %p139, %p140
      %p142 = scmp.ne.s32.totalorder %s130, %s131
      %p143 = scmp.eq.s32.totalorder %s32, 3
      %p144 = por %p142, %p143
      %p146 = scmp.ne.s32.totalorder %s131, %s145
      %p147 = scmp.eq.s32.totalorder %s32, 0
      %p148 = por %p146, %p147
      %s150 = sadd.s32 %s149, 1
      %p153 = scmp.eq.s32.totalorder %s26, 3
      %p154 = scmp.ne.s32.totalorder %s149, %s151
      %p155 = scmp.eq.s32.totalorder %s26, 0
      %p156 = por %p154, %p155
      %p157 = scmp.ne.s32.totalorder %s149, %s151
      %p158 = scmp.eq.s32.totalorder %s31, 3
      %p159 = por %p157, %p158
      %p160 = scmp.ne.s32.totalorder %s151, %s152
      %p161 = scmp.eq.s32.totalorder %s31, 0
      %p162 = por %p160, %p161
      %p163 = scmp.ne.s32.totalorder %s151, %s152
      %p164 = scmp.eq.s32.totalorder %s32, 3
      %p165 = por %p163, %p164
      %p167 = scmp.ne.s32.totalorder %s152, %s166
      %p168 = scmp.eq.s32.totalorder %s32, 0
      %p169 = por %p167, %p168
      %s170 = ssub.s32 %s26, %s33
      %p171 = scmp.eq.s32.totalorder %s170, 0
      %s173 = sadd.s32 %s172, 1
      %s174 = scalar_select %p171, %s172, %s173
      %p177 = pneg %p171
      %p178 = scmp.eq.s32.totalorder %s26, 3
      %p179 = por %p177, %p178
      %p180 = scmp.ne.s32.totalorder %s172, %s175
      %p181 = scmp.eq.s32.totalorder %s26, 0
      %p182 = por %p180, %p181
      %p183 = scmp.ne.s32.totalorder %s172, %s175
      %p184 = scmp.eq.s32.totalorder %s31, 3
      %p185 = por %p183, %p184
      %p186 = scmp.ne.s32.totalorder %s175, %s176
      %p187 = scmp.eq.s32.totalorder %s31, 0
      %p188 = por %p186, %p187
      %p189 = scmp.ne.s32.totalorder %s175, %s176
      %p190 = scmp.eq.s32.totalorder %s32, 3
      %p191 = por %p189, %p190
      %p193 = scmp.ne.s32.totalorder %s176, %s192
      %p194 = scmp.eq.s32.totalorder %s32, 0
      %p195 = por %p193, %p194
      %s196 = ssub.s32 %s26, %s33
      %p197 = scmp.eq.s32.totalorder %s196, 0
      %s199 = sadd.s32 %s198, 1
      %s200 = scalar_select %p197, %s198, %s199
      %p203 = pneg %p197
      %p204 = scmp.eq.s32.totalorder %s26, 3
      %p205 = por %p203, %p204
      %p206 = scmp.ne.s32.totalorder %s198, %s201
      %p207 = scmp.eq.s32.totalorder %s26, 0
      %p208 = por %p206, %p207
      %p209 = scmp.ne.s32.totalorder %s198, %s201
      %p210 = scmp.eq.s32.totalorder %s31, 3
      %p211 = por %p209, %p210
      %p212 = scmp.ne.s32.totalorder %s201, %s202
      %p213 = scmp.eq.s32.totalorder %s31, 0
      %p214 = por %p212, %p213
      %p215 = scmp.ne.s32.totalorder %s201, %s202
      %p216 = scmp.eq.s32.totalorder %s32, 3
      %p217 = por %p215, %p216
      %p219 = scmp.ne.s32.totalorder %s202, %s218
      %p220 = scmp.eq.s32.totalorder %s32, 0
      %p221 = por %p219, %p220
      %p222 = scmp.le.s32.totalorder 1, %s26
      %p223 = scmp.lt.s32.totalorder %s26, 5
      %p224 = pnand %p222, %p223
      %p225 = pneg %p224
      // Predicated region
      $region9: #{tpu_custom_call.1} parent=5 // pred_check
        _
      $region10: #{tpu_custom_call.1} parent=5 // pred_check_branch
        %227 = sbr.rel (%p224) target = $region12
      $region11: #{tpu_custom_call.1} parent=5 // pred_region
        %s228 = ssub.s32 %s26, 1
        // Predicated region
        $region13: #{tpu_custom_call.1} parent=11 // pred_check
          %p229 = pneg %p99
        $region14: #{tpu_custom_call.1} parent=11 // pred_check_branch
          %231 = sbr.rel (%p229) target = $region16
        $region15: #{tpu_custom_call.1} parent=11 // pred_region
          _
        $region16: #{tpu_custom_call.1} parent=11 // pred_fallthru
          _
        // Predicated region
        $region17: #{tpu_custom_call.1} parent=11 // pred_check
          %p232 = pneg %p120
        $region18: #{tpu_custom_call.1} parent=11 // pred_check_branch
          %234 = sbr.rel (%p232) target = $region20
        $region19: #{tpu_custom_call.1} parent=11 // pred_region
          _
        $region20: #{tpu_custom_call.1} parent=11 // pred_fallthru
          _
        // Predicated region
        $region21: #{tpu_custom_call.1} parent=11 // pred_check
          %p235 = pneg %p141
        $region22: #{tpu_custom_call.1} parent=11 // pred_check_branch
          %237 = sbr.rel (%p235) target = $region24
        $region23: #{tpu_custom_call.1} parent=11 // pred_region
          _
        $region24: #{tpu_custom_call.1} parent=11 // pred_fallthru
          _
        // Predicated region
        $region25: #{tpu_custom_call.1} parent=11 // pred_check
          %p238 = pneg %p162
        $region26: #{tpu_custom_call.1} parent=11 // pred_check_branch
          %240 = sbr.rel (%p238) target = $region28
        $region27: #{tpu_custom_call.1} parent=11 // pred_region
          _
        $region28: #{tpu_custom_call.1} parent=11 // pred_fallthru
          _
      $region12: #{tpu_custom_call.1} parent=5 // pred_fallthru
        _
      %p241 = scmp.lt.s32.totalorder %s26, 4
      // Predicated region
      $region29: #{tpu_custom_call.1} parent=5 // pred_check
        %p242 = pneg %p241
      $region30: #{tpu_custom_call.1} parent=5 // pred_check_branch
        %244 = sbr.rel (%p242) target = $region32
      $region31: #{tpu_custom_call.1} parent=5 // pred_region
        // Predicated region
        $region33: #{tpu_custom_call.1} parent=31 // pred_check
          %p245 = pneg %p46
        $region34: #{tpu_custom_call.1} parent=31 // pred_check_branch
          %247 = sbr.rel (%p245) target = $region36
        $region35: #{tpu_custom_call.1} parent=31 // pred_region
          %s248 = sand.u32 %s36, 1
          %s249 = scalar_lea.sflag [#allocation3], %s248
          %s250 = sand.u32 %s36, 1
          %s251 = smul.addr %s250, 64
          %s252 = scalar_lea.vmem [#allocation2], %s251
          %s253 = smul.u32 4, %s26
          %s255 = ssub.s32 1024, 1024
          %256 = vsyncadd %s249, %s255
          %s257 = smul.addr %s253, 128
          %s258 = scalar_lea.hbm %s0, %s257
          %s259 = sshll.u32 %s252, 4
          %s260 = int_to_ptr.vmem [resolvable:$true] %s259
          %265 = dma.hbm_to_vmem [thread:$0]  %s258, 1024, %s260, %s249, 2048, 512, 32
        $region36: #{tpu_custom_call.1} parent=31 // pred_fallthru
          _
        // Predicated region
        $region37: #{tpu_custom_call.1} parent=31 // pred_check
          %p266 = pneg %p72
        $region38: #{tpu_custom_call.1} parent=31 // pred_check_branch
          %268 = sbr.rel (%p266) target = $region40
        $region39: #{tpu_custom_call.1} parent=31 // pred_region
          %s269 = sand.u32 %s62, 1
          %s270 = scalar_lea.sflag [#allocation6], %s269
          %s271 = sand.u32 %s62, 1
          %s272 = smul.addr %s271, 192
          %s273 = scalar_lea.vmem [#allocation5], %s272
          %s274 = smul.u32 4, %s26
          %s276 = ssub.s32 3072, 3072
          %277 = vsyncadd %s270, %s276
          %s278 = smul.addr %s274, 128
          %s279 = scalar_lea.hbm %s1, %s278
          %s280 = sshll.u32 %s273, 4
          %s281 = int_to_ptr.vmem [resolvable:$true] %s280
          %286 = dma.hbm_to_vmem [thread:$0]  %s279, 3072, %s281, %s270, 2048, 512, 32
        $region40: #{tpu_custom_call.1} parent=31 // pred_fallthru
          _
      $region32: #{tpu_custom_call.1} parent=5 // pred_fallthru
        _
      %p287 = scmp.le.s32.totalorder 1, %s26
      %p288 = scmp.lt.s32.totalorder %s26, 5
      %p289 = pnand %p287, %p288
      %p290 = pneg %p289
      // Predicated region
      $region41: #{tpu_custom_call.1} parent=5 // pred_check
        _
      $region42: #{tpu_custom_call.1} parent=5 // pred_check_branch
        %292 = sbr.rel (%p289) target = $region44
      $region43: #{tpu_custom_call.1} parent=5 // pred_region
        %s293 = ssub.s32 %s26, 1
        %s294 = sand.u32 %s39, 1
        %s295 = scalar_lea.sflag [#allocation3], %s294
        %s296 = sand.u32 %s39, 1
        %s297 = smul.addr %s296, 64
        %s298 = scalar_lea.vmem [#allocation2], %s297
        // Predicated region
        $region45: #{tpu_custom_call.1} parent=43 // pred_check
          %p299 = pneg %p52
        $region46: #{tpu_custom_call.1} parent=43 // pred_check_branch
          %301 = sbr.rel (%p299) target = $region48
        $region47: #{tpu_custom_call.1} parent=43 // pred_region
          %302 = dma.done %s295, 1024
        $region48: #{tpu_custom_call.1} parent=43 // pred_fallthru
          _
        %s303 = sand.u32 %s65, 1
        %s304 = scalar_lea.sflag [#allocation6], %s303
        %s305 = sand.u32 %s65, 1
        %s306 = smul.addr %s305, 192
        %s307 = scalar_lea.vmem [#allocation5], %s306
        // Predicated region
        $region49: #{tpu_custom_call.1} parent=43 // pred_check
          %p308 = pneg %p78
        $region50: #{tpu_custom_call.1} parent=43 // pred_check_branch
          %310 = sbr.rel (%p308) target = $region52
        $region51: #{tpu_custom_call.1} parent=43 // pred_region
          %311 = dma.done %s304, 3072
        $region52: #{tpu_custom_call.1} parent=43 // pred_fallthru
          _
        %s312 = sand.u32 %s39, 1
        %s313 = scalar_lea.sflag [#allocation3], %s312
        %s314 = sand.u32 %s39, 1
        %s315 = smul.addr %s314, 64
        %s316 = scalar_lea.vmem [#allocation2], %s315
        %p317 = pneg %p52
        %p318 = pneg %p49
        %s319 = sand.u32 %s65, 1
        %s320 = scalar_lea.sflag [#allocation6], %s319
        %s321 = sand.u32 %s65, 1
        %s322 = smul.addr %s321, 192
        %s323 = scalar_lea.vmem [#allocation5], %s322
        %p324 = pneg %p78
        %p325 = pneg %p75
        %p326 = pneg %p99
        %p327 = pneg %p96
        %p328 = pneg %p120
        %p329 = pneg %p117
        %p330 = pneg %p141
        %p331 = pneg %p138
        %p332 = pneg %p162
        %p333 = pneg %p159
        %p334 = pneg %p188
        %p335 = pneg %p185
        %s336 = sand.u32 %s175, 1
        %s337 = scalar_lea.sflag [#allocation4], %s336
        %s338 = sand.u32 %s175, 1
        %s339 = smul.addr %s338, 64
        %s340 = scalar_lea.vmem [#allocation7], %s339
        %p341 = pneg %p214
        %p342 = pneg %p211
        %s343 = sand.u32 %s201, 1
        %s344 = scalar_lea.sflag [#allocation9], %s343
        %s345 = sand.u32 %s201, 1
        %s346 = smul.addr %s345, 192
        %s347 = scalar_lea.vmem [#allocation8], %s346
        %s348 = smul.u32 4, %s31
        %s349 = smul.u32 4, %s31
        %s350 = smul.u32 4, %s31
        %s351 = smul.u32 4, %s31
        %v352 = vld [vmem:[%s2] sm:$0xff]
        %v353 = vld [vmem:[%s2 + $0x8] sm:$0xff]
        %v354 = vld [vmem:[%s3] sm:$0xff]
        %v355 = vld [vmem:[%s3 + $0x8] sm:$0xff]
        %v356 = vld [vmem:[%s3 + $0x10] sm:$0xff]
        %v357 = vld [vmem:[%s3 + $0x18] sm:$0xff]
        %v358 = vld [vmem:[%s4] sm:$0xff]
        %v359 = vld [vmem:[%s4 + $0x8] sm:$0xff]
        %v360 = vld [vmem:[%s4 + $0x10] sm:$0xff]
        %v361 = vld [vmem:[%s4 + $0x18] sm:$0xff]
        %s362 = scalar_lea.vmem %s4, 32
        %v363 = vld [vmem:[%s362] sm:$0xff]
        %v364 = vld [vmem:[%s362 + $0x8] sm:$0xff]
        %v365 = vld [vmem:[%s362 + $0x10] sm:$0xff]
        %v366 = vld [vmem:[%s362 + $0x18] sm:$0xff]
        %v367 = vld [vmem:[%s5] sm:$0xff]
        %v368 = vld [vmem:[%s5 + $0x8] sm:$0xff]
        %s369 = scalar_lea.vmem %s5, 16
        %v370 = vld [vmem:[%s369] sm:$0xff]
        %v371 = vld [vmem:[%s369 + $0x8] sm:$0xff]
        %v372 = vld [vmem:[%s298] sm:$0xff]
        %v373 = vld [vmem:[%s298 + $0x8] sm:$0xff]
        %v374 = vld [vmem:[%s298 + $0x10] sm:$0xff]
        %v375 = vld [vmem:[%s298 + $0x18] sm:$0xff]
        %v376 = vld [vmem:[%s298 + $0x20] sm:$0xff]
        %v377 = vld [vmem:[%s298 + $0x28] sm:$0xff]
        %v378 = vld [vmem:[%s298 + $0x30] sm:$0xff]
        %v379 = vld [vmem:[%s298 + $0x38] sm:$0xff]
        %v380 = vmul.f32 %v372, %v372
        %v381 = vmul.f32 %v373, %v373
        %v382 = vmul.f32 %v374, %v374
        %v383 = vmul.f32 %v375, %v375
        %v384 = vmul.f32 %v376, %v376
        %v385 = vmul.f32 %v377, %v377
        %v386 = vmul.f32 %v378, %v378
        %v387 = vmul.f32 %v379, %v379
        %v388 = vmax.f32 %v380, 3.5527137e-15
        %v389 = vmax.f32 %v381, 3.5527137e-15
        %v390 = vmax.f32 %v382, 3.5527137e-15
        %v391 = vmax.f32 %v383, 3.5527137e-15
        %v392 = vmax.f32 %v384, 3.5527137e-15
        %v393 = vmax.f32 %v385, 3.5527137e-15
        %v394 = vmax.f32 %v386, 3.5527137e-15
        %v395 = vmax.f32 %v387, 3.5527137e-15
        %v396 = vrsqrt.pop %v388
        %v397 = vrsqrt.pop %v389
        %v398 = vrsqrt.pop %v390
        %v399 = vrsqrt.pop %v391
        %v400 = vrsqrt.pop %v392
        %v401 = vrsqrt.pop %v393
        %v402 = vrsqrt.pop %v394
        %v403 = vrsqrt.pop %v395
        %v404 = vmul.f32 %v388, %v396
        %v405 = vmul.f32 %v389, %v397
        %v406 = vmul.f32 %v390, %v398
        %v407 = vmul.f32 %v391, %v399
        %v408 = vmul.f32 %v392, %v400
        %v409 = vmul.f32 %v393, %v401
        %v410 = vmul.f32 %v394, %v402
        %v411 = vmul.f32 %v395, %v403
        %v412 = vadd.f32 %v404, %v408
        %v413 = vrot.slane %v412, 4
        %v414 = vadd.f32 %v412, %v413
        %v415 = vrot.slane %v414, 2
        %v416 = vadd.f32 %v414, %v415
        %v417 = vrot.slane %v416, 1
        %v418 = vadd.f32 %v416, %v417
        %v419 = vadd.f32 %v405, %v409
        %v420 = vrot.slane %v419, 4
        %v421 = vadd.f32 %v419, %v420
        %v422 = vrot.slane %v421, 2
        %v423 = vadd.f32 %v421, %v422
        %v424 = vrot.slane %v423, 1
        %v425 = vadd.f32 %v423, %v424
        %v426 = vadd.f32 %v406, %v410
        %v427 = vrot.slane %v426, 4
        %v428 = vadd.f32 %v426, %v427
        %v429 = vrot.slane %v428, 2
        %v430 = vadd.f32 %v428, %v429
        %v431 = vrot.slane %v430, 1
        %v432 = vadd.f32 %v430, %v431
        %v433 = vadd.f32 %v407, %v411
        %v434 = vrot.slane %v433, 4
        %v435 = vadd.f32 %v433, %v434
        %v436 = vrot.slane %v435, 2
        %v437 = vadd.f32 %v435, %v436
        %v438 = vrot.slane %v437, 1
        %v439 = vadd.f32 %v437, %v438
        %v440 = vrcp.pop 16.0
        %v441 = vmul.f32 %v418, %v440
        %v442 = vmul.f32 %v425, %v440
        %v443 = vmul.f32 %v432, %v440
        %v444 = vmul.f32 %v439, %v440
        %v445 = vsub.f32 %v404, %v441
        %v446 = vsub.f32 %v405, %v442
        %v447 = vsub.f32 %v406, %v443
        %v448 = vsub.f32 %v407, %v444
        %v449 = vsub.f32 %v408, %v441
        %v450 = vsub.f32 %v409, %v442
        %v451 = vsub.f32 %v410, %v443
        %v452 = vsub.f32 %v411, %v444
        %v453 = vmul.f32 %v445, %v445
        %v454 = vmul.f32 %v446, %v446
        %v455 = vmul.f32 %v447, %v447
        %v456 = vmul.f32 %v448, %v448
        %v457 = vmul.f32 %v449, %v449
        %v458 = vmul.f32 %v450, %v450
        %v459 = vmul.f32 %v451, %v451
        %v460 = vmul.f32 %v452, %v452
        %v461 = vadd.f32 %v453, %v457
        %v462 = vrot.slane %v461, 4
        %v463 = vadd.f32 %v461, %v462
        %v464 = vrot.slane %v463, 2
        %v465 = vadd.f32 %v463, %v464
        %v466 = vrot.slane %v465, 1
        %v467 = vadd.f32 %v465, %v466
        %v468 = vadd.f32 %v454, %v458
        %v469 = vrot.slane %v468, 4
        %v470 = vadd.f32 %v468, %v469
        %v471 = vrot.slane %v470, 2
        %v472 = vadd.f32 %v470, %v471
        %v473 = vrot.slane %v472, 1
        %v474 = vadd.f32 %v472, %v473
        %v475 = vadd.f32 %v455, %v459
        %v476 = vrot.slane %v475, 4
        %v477 = vadd.f32 %v475, %v476
        %v478 = vrot.slane %v477, 2
        %v479 = vadd.f32 %v477, %v478
        %v480 = vrot.slane %v479, 1
        %v481 = vadd.f32 %v479, %v480
        %v482 = vadd.f32 %v456, %v460
        %v483 = vrot.slane %v482, 4
        %v484 = vadd.f32 %v482, %v483
        %v485 = vrot.slane %v484, 2
        %v486 = vadd.f32 %v484, %v485
        %v487 = vrot.slane %v486, 1
        %v488 = vadd.f32 %v486, %v487
        %v489 = vmul.f32 %v467, %v440
        %v490 = vmul.f32 %v474, %v440
        %v491 = vmul.f32 %v481, %v440
        %v492 = vmul.f32 %v488, %v440
        %v493 = vadd.f32 %v489, 1e-05
        %v494 = vadd.f32 %v490, 1e-05
        %v495 = vadd.f32 %v491, 1e-05
        %v496 = vadd.f32 %v492, 1e-05
        %v497 = vrsqrt.pop %v493
        %v498 = vrsqrt.pop %v494
        %v499 = vrsqrt.pop %v495
        %v500 = vrsqrt.pop %v496
        %v501 = vmul.f32 %v445, %v497
        %v502 = vmul.f32 %v446, %v498
        %v503 = vmul.f32 %v447, %v499
        %v504 = vmul.f32 %v448, %v500
        %v505 = vmul.f32 %v449, %v497
        %v506 = vmul.f32 %v450, %v498
        %v507 = vmul.f32 %v451, %v499
        %v508 = vmul.f32 %v452, %v500
        %510 = vset.pattern.permute.xlu0 0
        %511 = vperm.xlu0 %510, %v352
        %v512 = vpop.permute.xlu0 %511
        %515 = vset.pattern.permute.xlu0 0
        %516 = vperm.xlu0 %515, %v353
        %v517 = vpop.permute.xlu0 %516
        %v519 = vmul.f32 %v501, %v512
        %v520 = vmul.f32 %v502, %v512
        %v521 = vmul.f32 %v503, %v512
        %v522 = vmul.f32 %v504, %v512
        %v523 = vmul.f32 %v505, %v517
        %v524 = vmul.f32 %v506, %v517
        %v525 = vmul.f32 %v507, %v517
        %v526 = vmul.f32 %v508, %v517
        %527 = vset.pattern.permute.xlu0 1
        %528 = vperm.xlu0 %527, %v352
        %v529 = vpop.permute.xlu0 %528
        %531 = vset.pattern.permute.xlu0 1
        %532 = vperm.xlu0 %531, %v353
        %v533 = vpop.permute.xlu0 %532
        %v535 = vadd.f32 %v519, %v529
        %v536 = vadd.f32 %v520, %v529
        %v537 = vadd.f32 %v521, %v529
        %v538 = vadd.f32 %v522, %v529
        %v539 = vadd.f32 %v523, %v533
        %v540 = vadd.f32 %v524, %v533
        %v541 = vadd.f32 %v525, %v533
        %v542 = vadd.f32 %v526, %v533
        %v543 = vmax.f32 %v535, 0.0
        %v544 = vmax.f32 %v536, 0.0
        %v545 = vmax.f32 %v537, 0.0
        %v546 = vmax.f32 %v538, 0.0
        %v547 = vmax.f32 %v539, 0.0
        %v548 = vmax.f32 %v540, 0.0
        %v549 = vmax.f32 %v541, 0.0
        %v550 = vmax.f32 %v542, 0.0
        %v551 = vmul.f32 %v543, %v396
        %v552 = vmul.f32 %v544, %v397
        %v553 = vmul.f32 %v545, %v398
        %v554 = vmul.f32 %v546, %v399
        %v555 = vmul.f32 %v547, %v400
        %v556 = vmul.f32 %v548, %v401
        %v557 = vmul.f32 %v549, %v402
        %v558 = vmul.f32 %v550, %v403
        %v559 = vmul.f32 %v372, %v551
        %v560 = vmul.f32 %v373, %v552
        %v561 = vmul.f32 %v374, %v553
        %v562 = vmul.f32 %v375, %v554
        %v563 = vmul.f32 %v376, %v555
        %v564 = vmul.f32 %v377, %v556
        %v565 = vmul.f32 %v378, %v557
        %v566 = vmul.f32 %v379, %v558
        %vm567 = vcmask 130048
        %v569 = vsel %vm567, %v358, 0
        %v572 = vsel %vm567, %v359, 0
        %v575 = vsel %vm567, %v360, 0
        %v578 = vsel %vm567, %v361, 0
        %580 = vmatprep.subr.mxu0 %v560
        %581 = vmatpush1.msra.mxu0 %v559
        %582 = vmatprep.subr.mxu0 %v564
        %583 = vmatpush1.msra.mxu0 %v563
        %584 = vmatprep.subr.mxu0 0.0
        %585 = vmatpush1.msra.mxu0 0.0
        %586 = vmatprep.subr.mxu0 0.0
        %587 = vmatpush1.msra.mxu0 0.0
        %588 = vmatprep.subr.mxu0 0.0
        %589 = vmatpush1.msra.mxu0 0.0
        %590 = vmatprep.subr.mxu0 0.0
        %591 = vmatpush1.msra.mxu0 0.0
        %592 = vmatprep.subr.mxu0 0.0
        %593 = vmatpush1.msra.mxu0 0.0
        %594 = vmatprep.subr.mxu0 0.0
        %595 = vmatpush1.msra.mxu0 0.0
        %596 = vmatprep.subr.mxu0 0.0
        %597 = vmatpush1.msra.mxu0 0.0
        %598 = vmatprep.subr.mxu0 0.0
        %599 = vmatpush1.msra.mxu0 0.0
        %600 = vmatprep.subr.mxu0 0.0
        %601 = vmatpush1.msra.mxu0 0.0
        %602 = vmatprep.subr.mxu0 0.0
        %603 = vmatpush1.msra.mxu0 0.0
        %604 = vmatprep.subr.mxu0 0.0
        %605 = vmatpush1.msra.mxu0 0.0
        %606 = vmatprep.subr.mxu0 0.0
        %607 = vmatpush1.msra.mxu0 0.0
        %608 = vmatprep.subr.mxu0 0.0
        %609 = vmatpush1.msra.mxu0 0.0
        %610 = vmatprep.subr.mxu0 0.0
        %611 = vmatpush1.msra.mxu0 0.0
        %612 = vmatprep.subr.mxu0 0.0
        %613 = vmatpush1.msra.mxu0 0.0
        %614 = vmatprep.subr.mxu0 0.0
        %615 = vmatpush1.msra.mxu0 0.0
        %616 = vmatprep.subr.mxu0 0.0
        %617 = vmatpush1.msra.mxu0 0.0
        %618 = vmatprep.subr.mxu0 0.0
        %619 = vmatpush1.msra.mxu0 0.0
        %620 = vmatprep.subr.mxu0 0.0
        %621 = vmatpush1.msra.mxu0 0.0
        %622 = vmatprep.subr.mxu0 0.0
        %623 = vmatpush1.msra.mxu0 0.0
        %624 = vmatprep.subr.mxu0 0.0
        %625 = vmatpush1.msra.mxu0 0.0
        %626 = vmatprep.subr.mxu0 0.0
        %627 = vmatpush1.msra.mxu0 0.0
        %628 = vmatprep.subr.mxu0 0.0
        %629 = vmatpush1.msra.mxu0 0.0
        %630 = vmatprep.subr.mxu0 0.0
        %631 = vmatpush1.msra.mxu0 0.0
        %632 = vmatprep.subr.mxu0 0.0
        %633 = vmatpush1.msra.mxu0 0.0
        %634 = vmatprep.subr.mxu0 0.0
        %635 = vmatpush1.msra.mxu0 0.0
        %636 = vmatprep.subr.mxu0 0.0
        %637 = vmatpush1.msra.mxu0 0.0
        %638 = vmatprep.subr.mxu0 0.0
        %639 = vmatpush1.msra.mxu0 0.0
        %640 = vmatprep.subr.mxu0 0.0
        %641 = vmatpush1.msra.mxu0 0.0
        %642 = vmatprep.subr.mxu0 0.0
        %643 = vmatpush1.msra.mxu0 0.0
        %644 = vmatprep.mubr.f32.mxu0 0.0
        %645 = vmatmul.mubr.f32.gmra.mrb[0].mxu0 %v569
        %v646 = vpop.f32.mrb[0].mxu0
        %v647 = vadd.f32 0.0, %v646
        %v648 = vpop.f32.mrb[0].mxu0
        %v649 = vadd.f32 0.0, %v648
        %650 = vmatprep.mubr.f32.mxu0 0.0
        %651 = vmatmul.mubr.f32.gmra.mrb[0].mxu0 %v572
        %v652 = vpop.f32.mrb[0].mxu0
        %v653 = vadd.f32 0.0, %v652
        %v654 = vpop.f32.mrb[0].mxu0
        %v655 = vadd.f32 0.0, %v654
        %656 = vmatprep.mubr.f32.mxu0 0.0
        %657 = vmatmul.mubr.f32.gmra.mrb[0].mxu0 %v575
        %v658 = vpop.f32.mrb[0].mxu0
        %v659 = vadd.f32 0.0, %v658
        %v660 = vpop.f32.mrb[0].mxu0
        %v661 = vadd.f32 0.0, %v660
        %662 = vmatprep.mubr.f32.mxu0 0.0
        %663 = vmatmul.mubr.f32.gmra.mrb[0].mxu0 %v578
        %v664 = vpop.f32.mrb[0].mxu0
        %v665 = vadd.f32 0.0, %v664
        %v666 = vpop.f32.mrb[0].mxu0
        %v667 = vadd.f32 0.0, %v666
        %668 = vdwg.mxu0
        %669 = vmatprep.subr.mxu0 %v562
        %670 = vmatpush1.msra.mxu0 %v561
        %671 = vmatprep.subr.mxu0 %v566
        %672 = vmatpush1.msra.mxu0 %v565
        %673 = vmatprep.subr.mxu0 0.0
        %674 = vmatpush1.msra.mxu0 0.0
        %675 = vmatprep.subr.mxu0 0.0
        %676 = vmatpush1.msra.mxu0 0.0
        %677 = vmatprep.subr.mxu0 0.0
        %678 = vmatpush1.msra.mxu0 0.0
        %679 = vmatprep.subr.mxu0 0.0
        %680 = vmatpush1.msra.mxu0 0.0
        %681 = vmatprep.subr.mxu0 0.0
        %682 = vmatpush1.msra.mxu0 0.0
        %683 = vmatprep.subr.mxu0 0.0
        %684 = vmatpush1.msra.mxu0 0.0
        %685 = vmatprep.subr.mxu0 0.0
        %686 = vmatpush1.msra.mxu0 0.0
        %687 = vmatprep.subr.mxu0 0.0
        %688 = vmatpush1.msra.mxu0 0.0
        %689 = vmatprep.subr.mxu0 0.0
        %690 = vmatpush1.msra.mxu0 0.0
        %691 = vmatprep.subr.mxu0 0.0
        %692 = vmatpush1.msra.mxu0 0.0
        %693 = vmatprep.subr.mxu0 0.0
        %694 = vmatpush1.msra.mxu0 0.0
        %695 = vmatprep.subr.mxu0 0.0
        %696 = vmatpush1.msra.mxu0 0.0
        %697 = vmatprep.subr.mxu0 0.0
        %698 = vmatpush1.msra.mxu0 0.0
        %699 = vmatprep.subr.mxu0 0.0
        %700 = vmatpush1.msra.mxu0 0.0
        %701 = vmatprep.subr.mxu0 0.0
        %702 = vmatpush1.msra.mxu0 0.0
        %703 = vmatprep.subr.mxu0 0.0
        %704 = vmatpush1.msra.mxu0 0.0
        %705 = vmatprep.subr.mxu0 0.0
        %706 = vmatpush1.msra.mxu0 0.0
        %707 = vmatprep.subr.mxu0 0.0
        %708 = vmatpush1.msra.mxu0 0.0
        %709 = vmatprep.subr.mxu0 0.0
        %710 = vmatpush1.msra.mxu0 0.0
        %711 = vmatprep.subr.mxu0 0.0
        %712 = vmatpush1.msra.mxu0 0.0
        %713 = vmatprep.subr.mxu0 0.0
        %714 = vmatpush1.msra.mxu0 0.0
        %715 = vmatprep.subr.mxu0 0.0
        %716 = vmatpush1.msra.mxu0 0.0
        %717 = vmatprep.subr.mxu0 0.0
        %718 = vmatpush1.msra.mxu0 0.0
        %719 = vmatprep.subr.mxu0 0.0
        %720 = vmatpush1.msra.mxu0 0.0
        %721 = vmatprep.subr.mxu0 0.0
        %722 = vmatpush1.msra.mxu0 0.0
        %723 = vmatprep.subr.mxu0 0.0
        %724 = vmatpush1.msra.mxu0 0.0
        %725 = vmatprep.subr.mxu0 0.0
        %726 = vmatpush1.msra.mxu0 0.0
        %727 = vmatprep.subr.mxu0 0.0
        %728 = vmatpush1.msra.mxu0 0.0
        %729 = vmatprep.subr.mxu0 0.0
        %730 = vmatpush1.msra.mxu0 0.0
        %731 = vmatprep.subr.mxu0 0.0
        %732 = vmatpush1.msra.mxu0 0.0
        %733 = vmatprep.mubr.f32.mxu0 0.0
        %734 = vmatmul.mubr.f32.gmra.mrb[0].mxu0 %v569
        %v735 = vpop.f32.mrb[0].mxu0
        %v736 = vadd.f32 0.0, %v735
        %v737 = vpop.f32.mrb[0].mxu0
        %v738 = vadd.f32 0.0, %v737
        %739 = vmatprep.mubr.f32.mxu0 0.0
        %740 = vmatmul.mubr.f32.gmra.mrb[0].mxu0 %v572
        %v741 = vpop.f32.mrb[0].mxu0
        %v742 = vadd.f32 0.0, %v741
        %v743 = vpop.f32.mrb[0].mxu0
        %v744 = vadd.f32 0.0, %v743
        %745 = vmatprep.mubr.f32.mxu0 0.0
        %746 = vmatmul.mubr.f32.gmra.mrb[0].mxu0 %v575
        %v747 = vpop.f32.mrb[0].mxu0
        %v748 = vadd.f32 0.0, %v747
        %v749 = vpop.f32.mrb[0].mxu0
        %v750 = vadd.f32 0.0, %v749
        %751 = vmatprep.mubr.f32.mxu0 0.0
        %752 = vmatmul.mubr.f32.gmra.mrb[0].mxu0 %v578
        %v753 = vpop.f32.mrb[0].mxu0
        %v754 = vadd.f32 0.0, %v753
        %v755 = vpop.f32.mrb[0].mxu0
        %v756 = vadd.f32 0.0, %v755
        %757 = vdwg.mxu0
        %v758 = vmul.f32 %v647, %v647
        %v759 = vmul.f32 %v649, %v649
        %v760 = vmul.f32 %v736, %v736
        %v761 = vmul.f32 %v738, %v738
        %v762 = vmul.f32 %v653, %v653
        %v763 = vmul.f32 %v655, %v655
        %v764 = vmul.f32 %v742, %v742
        %v765 = vmul.f32 %v744, %v744
        %v766 = vmul.f32 %v659, %v659
        %v767 = vmul.f32 %v661, %v661
        %v768 = vmul.f32 %v748, %v748
        %v769 = vmul.f32 %v750, %v750
        %v770 = vmul.f32 %v665, %v665
        %v771 = vmul.f32 %v667, %v667
        %v772 = vmul.f32 %v754, %v754
        %v773 = vmul.f32 %v756, %v756
        %v774 = vmax.f32 %v758, 3.5527137e-15
        %v775 = vmax.f32 %v759, 3.5527137e-15
        %v776 = vmax.f32 %v760, 3.5527137e-15
        %v777 = vmax.f32 %v761, 3.5527137e-15
        %v778 = vmax.f32 %v762, 3.5527137e-15
        %v779 = vmax.f32 %v763, 3.5527137e-15
        %v780 = vmax.f32 %v764, 3.5527137e-15
        %v781 = vmax.f32 %v765, 3.5527137e-15
        %v782 = vmax.f32 %v766, 3.5527137e-15
        %v783 = vmax.f32 %v767, 3.5527137e-15
        %v784 = vmax.f32 %v768, 3.5527137e-15
        %v785 = vmax.f32 %v769, 3.5527137e-15
        %v786 = vmax.f32 %v770, 3.5527137e-15
        %v787 = vmax.f32 %v771, 3.5527137e-15
        %v788 = vmax.f32 %v772, 3.5527137e-15
        %v789 = vmax.f32 %v773, 3.5527137e-15
        %v790 = vrsqrt.pop %v774
        %v791 = vrsqrt.pop %v775
        %v792 = vrsqrt.pop %v776
        %v793 = vrsqrt.pop %v777
        %v794 = vrsqrt.pop %v778
        %v795 = vrsqrt.pop %v779
        %v796 = vrsqrt.pop %v780
        %v797 = vrsqrt.pop %v781
        %v798 = vrsqrt.pop %v782
        %v799 = vrsqrt.pop %v783
        %v800 = vrsqrt.pop %v784
        %v801 = vrsqrt.pop %v785
        %v802 = vrsqrt.pop %v786
        %v803 = vrsqrt.pop %v787
        %v804 = vrsqrt.pop %v788
        %v805 = vrsqrt.pop %v789
        %v806 = vmul.f32 %v774, %v790
        %v807 = vmul.f32 %v775, %v791
        %v808 = vmul.f32 %v776, %v792
        %v809 = vmul.f32 %v777, %v793
        %v810 = vmul.f32 %v778, %v794
        %v811 = vmul.f32 %v779, %v795
        %v812 = vmul.f32 %v780, %v796
        %v813 = vmul.f32 %v781, %v797
        %v814 = vmul.f32 %v782, %v798
        %v815 = vmul.f32 %v783, %v799
        %v816 = vmul.f32 %v784, %v800
        %v817 = vmul.f32 %v785, %v801
        %v818 = vmul.f32 %v786, %v802
        %v819 = vmul.f32 %v787, %v803
        %v820 = vmul.f32 %v788, %v804
        %v821 = vmul.f32 %v789, %v805
        %v822 = vadd.f32 %v806, %v810
        %v823 = vadd.f32 %v822, %v814
        %v824 = vadd.f32 %v823, %v818
        %v825 = vrot.slane %v824, 4
        %v826 = vadd.f32 %v824, %v825
        %v827 = vrot.slane %v826, 2
        %v828 = vadd.f32 %v826, %v827
        %v829 = vrot.slane %v828, 1
        %v830 = vadd.f32 %v828, %v829
        %v831 = vadd.f32 %v807, %v811
        %v832 = vadd.f32 %v831, %v815
        %v833 = vadd.f32 %v832, %v819
        %v834 = vrot.slane %v833, 4
        %v835 = vadd.f32 %v833, %v834
        %v836 = vrot.slane %v835, 2
        %v837 = vadd.f32 %v835, %v836
        %v838 = vrot.slane %v837, 1
        %v839 = vadd.f32 %v837, %v838
        %v840 = vadd.f32 %v808, %v812
        %v841 = vadd.f32 %v840, %v816
        %v842 = vadd.f32 %v841, %v820
        %v843 = vrot.slane %v842, 4
        %v844 = vadd.f32 %v842, %v843
        %v845 = vrot.slane %v844, 2
        %v846 = vadd.f32 %v844, %v845
        %v847 = vrot.slane %v846, 1
        %v848 = vadd.f32 %v846, %v847
        %v849 = vadd.f32 %v809, %v813
        %v850 = vadd.f32 %v849, %v817
        %v851 = vadd.f32 %v850, %v821
        %v852 = vrot.slane %v851, 4
        %v853 = vadd.f32 %v851, %v852
        %v854 = vrot.slane %v853, 2
        %v855 = vadd.f32 %v853, %v854
        %v856 = vrot.slane %v855, 1
        %v857 = vadd.f32 %v855, %v856
        %v858 = vrcp.pop 32.0
        %v859 = vmul.f32 %v830, %v858
        %v860 = vmul.f32 %v839, %v858
        %v861 = vmul.f32 %v848, %v858
        %v862 = vmul.f32 %v857, %v858
        %v863 = vsub.f32 %v806, %v859
        %v864 = vsub.f32 %v807, %v860
        %v865 = vsub.f32 %v808, %v861
        %v866 = vsub.f32 %v809, %v862
        %v867 = vsub.f32 %v810, %v859
        %v868 = vsub.f32 %v811, %v860
        %v869 = vsub.f32 %v812, %v861
        %v870 = vsub.f32 %v813, %v862
        %v871 = vsub.f32 %v814, %v859
        %v872 = vsub.f32 %v815, %v860
        %v873 = vsub.f32 %v816, %v861
        %v874 = vsub.f32 %v817, %v862
        %v875 = vsub.f32 %v818, %v859
        %v876 = vsub.f32 %v819, %v860
        %v877 = vsub.f32 %v820, %v861
        %v878 = vsub.f32 %v821, %v862
        %v879 = vmul.f32 %v863, %v863
        %v880 = vmul.f32 %v864, %v864
        %v881 = vmul.f32 %v865, %v865
        %v882 = vmul.f32 %v866, %v866
        %v883 = vmul.f32 %v867, %v867
        %v884 = vmul.f32 %v868, %v868
        %v885 = vmul.f32 %v869, %v869
        %v886 = vmul.f32 %v870, %v870
        %v887 = vmul.f32 %v871, %v871
        %v888 = vmul.f32 %v872, %v872
        %v889 = vmul.f32 %v873, %v873
        %v890 = vmul.f32 %v874, %v874
        %v891 = vmul.f32 %v875, %v875
        %v892 = vmul.f32 %v876, %v876
        %v893 = vmul.f32 %v877, %v877
        %v894 = vmul.f32 %v878, %v878
        %v895 = vadd.f32 %v879, %v883
        %v896 = vadd.f32 %v895, %v887
        %v897 = vadd.f32 %v896, %v891
        %v898 = vrot.slane %v897, 4
        %v899 = vadd.f32 %v897, %v898
        %v900 = vrot.slane %v899, 2
        %v901 = vadd.f32 %v899, %v900
        %v902 = vrot.slane %v901, 1
        %v903 = vadd.f32 %v901, %v902
        %v904 = vadd.f32 %v880, %v884
        %v905 = vadd.f32 %v904, %v888
        %v906 = vadd.f32 %v905, %v892
        %v907 = vrot.slane %v906, 4
        %v908 = vadd.f32 %v906, %v907
        %v909 = vrot.slane %v908, 2
        %v910 = vadd.f32 %v908, %v909
        %v911 = vrot.slane %v910, 1
        %v912 = vadd.f32 %v910, %v911
        %v913 = vadd.f32 %v881, %v885
        %v914 = vadd.f32 %v913, %v889
        %v915 = vadd.f32 %v914, %v893
        %v916 = vrot.slane %v915, 4
        %v917 = vadd.f32 %v915, %v916
        %v918 = vrot.slane %v917, 2
        %v919 = vadd.f32 %v917, %v918
        %v920 = vrot.slane %v919, 1
        %v921 = vadd.f32 %v919, %v920
        %v922 = vadd.f32 %v882, %v886
        %v923 = vadd.f32 %v922, %v890
        %v924 = vadd.f32 %v923, %v894
        %v925 = vrot.slane %v924, 4
        %v926 = vadd.f32 %v924, %v925
        %v927 = vrot.slane %v926, 2
        %v928 = vadd.f32 %v926, %v927
        %v929 = vrot.slane %v928, 1
        %v930 = vadd.f32 %v928, %v929
        %v931 = vmul.f32 %v903, %v858
        %v932 = vmul.f32 %v912, %v858
        %v933 = vmul.f32 %v921, %v858
        %v934 = vmul.f32 %v930, %v858
        %v935 = vadd.f32 %v931, 1e-05
        %v936 = vadd.f32 %v932, 1e-05
        %v937 = vadd.f32 %v933, 1e-05
        %v938 = vadd.f32 %v934, 1e-05
        %v939 = vrsqrt.pop %v935
        %v940 = vrsqrt.pop %v936
        %v941 = vrsqrt.pop %v937
        %v942 = vrsqrt.pop %v938
        %v943 = vmul.f32 %v863, %v939
        %v944 = vmul.f32 %v864, %v940
        %v945 = vmul.f32 %v865, %v941
        %v946 = vmul.f32 %v866, %v942
        %v947 = vmul.f32 %v867, %v939
        %v948 = vmul.f32 %v868, %v940
        %v949 = vmul.f32 %v869, %v941
        %v950 = vmul.f32 %v870, %v942
        %v951 = vmul.f32 %v871, %v939
        %v952 = vmul.f32 %v872, %v940
        %v953 = vmul.f32 %v873, %v941
        %v954 = vmul.f32 %v874, %v942
        %v955 = vmul.f32 %v875, %v939
        %v956 = vmul.f32 %v876, %v940
        %v957 = vmul.f32 %v877, %v941
        %v958 = vmul.f32 %v878, %v942
        %960 = vset.pattern.permute.xlu0 0
        %961 = vperm.xlu0 %960, %v354
        %v962 = vpop.permute.xlu0 %961
        %965 = vset.pattern.permute.xlu0 0
        %966 = vperm.xlu0 %965, %v355
        %v967 = vpop.permute.xlu0 %966
        %970 = vset.pattern.permute.xlu0 0
        %971 = vperm.xlu0 %970, %v356
        %v972 = vpop.permute.xlu0 %971
        %975 = vset.pattern.permute.xlu0 0
        %976 = vperm.xlu0 %975, %v357
        %v977 = vpop.permute.xlu0 %976
        %v979 = vmul.f32 %v943, %v962
        %v980 = vmul.f32 %v944, %v962
        %v981 = vmul.f32 %v945, %v962
        %v982 = vmul.f32 %v946, %v962
        %v983 = vmul.f32 %v947, %v967
        %v984 = vmul.f32 %v948, %v967
        %v985 = vmul.f32 %v949, %v967
        %v986 = vmul.f32 %v950, %v967
        %v987 = vmul.f32 %v951, %v972
        %v988 = vmul.f32 %v952, %v972
        %v989 = vmul.f32 %v953, %v972
        %v990 = vmul.f32 %v954, %v972
        %v991 = vmul.f32 %v955, %v977
        %v992 = vmul.f32 %v956, %v977
        %v993 = vmul.f32 %v957, %v977
        %v994 = vmul.f32 %v958, %v977
        %995 = vset.pattern.permute.xlu0 1
        %996 = vperm.xlu0 %995, %v354
        %v997 = vpop.permute.xlu0 %996
        %999 = vset.pattern.permute.xlu0 1
        %1000 = vperm.xlu0 %999, %v355
        %v1001 = vpop.permute.xlu0 %1000
        %1003 = vset.pattern.permute.xlu0 1
        %1004 = vperm.xlu0 %1003, %v356
        %v1005 = vpop.permute.xlu0 %1004
        %1007 = vset.pattern.permute.xlu0 1
        %1008 = vperm.xlu0 %1007, %v357
        %v1009 = vpop.permute.xlu0 %1008
        %v1011 = vadd.f32 %v979, %v997
        %v1012 = vadd.f32 %v980, %v997
        %v1013 = vadd.f32 %v981, %v997
        %v1014 = vadd.f32 %v982, %v997
        %v1015 = vadd.f32 %v983, %v1001
        %v1016 = vadd.f32 %v984, %v1001
        %v1017 = vadd.f32 %v985, %v1001
        %v1018 = vadd.f32 %v986, %v1001
        %v1019 = vadd.f32 %v987, %v1005
        %v1020 = vadd.f32 %v988, %v1005
        %v1021 = vadd.f32 %v989, %v1005
        %v1022 = vadd.f32 %v990, %v1005
        %v1023 = vadd.f32 %v991, %v1009
        %v1024 = vadd.f32 %v992, %v1009
        %v1025 = vadd.f32 %v993, %v1009
        %v1026 = vadd.f32 %v994, %v1009
        %v1027 = vmax.f32 %v1011, 0.0
        %v1028 = vmax.f32 %v1012, 0.0
        %v1029 = vmax.f32 %v1013, 0.0
        %v1030 = vmax.f32 %v1014, 0.0
        %v1031 = vmax.f32 %v1015, 0.0
        %v1032 = vmax.f32 %v1016, 0.0
        %v1033 = vmax.f32 %v1017, 0.0
        %v1034 = vmax.f32 %v1018, 0.0
        %v1035 = vmax.f32 %v1019, 0.0
        %v1036 = vmax.f32 %v1020, 0.0
        %v1037 = vmax.f32 %v1021, 0.0
        %v1038 = vmax.f32 %v1022, 0.0
        %v1039 = vmax.f32 %v1023, 0.0
        %v1040 = vmax.f32 %v1024, 0.0
        %v1041 = vmax.f32 %v1025, 0.0
        %v1042 = vmax.f32 %v1026, 0.0
        %v1043 = vmul.f32 %v1027, %v790
        %v1044 = vmul.f32 %v1028, %v791
        %v1045 = vmul.f32 %v1029, %v792
        %v1046 = vmul.f32 %v1030, %v793
        %v1047 = vmul.f32 %v1031, %v794
        %v1048 = vmul.f32 %v1032, %v795
        %v1049 = vmul.f32 %v1033, %v796
        %v1050 = vmul.f32 %v1034, %v797
        %v1051 = vmul.f32 %v1035, %v798
        %v1052 = vmul.f32 %v1036, %v799
        %v1053 = vmul.f32 %v1037, %v800
        %v1054 = vmul.f32 %v1038, %v801
        %v1055 = vmul.f32 %v1039, %v802
        %v1056 = vmul.f32 %v1040, %v803
        %v1057 = vmul.f32 %v1041, %v804
        %v1058 = vmul.f32 %v1042, %v805
        %v1059 = vmul.f32 %v647, %v1043
        %v1060 = vmul.f32 %v649, %v1044
        %v1061 = vmul.f32 %v736, %v1045
        %v1062 = vmul.f32 %v738, %v1046
        %v1063 = vmul.f32 %v653, %v1047
        %v1064 = vmul.f32 %v655, %v1048
        %v1065 = vmul.f32 %v742, %v1049
        %v1066 = vmul.f32 %v744, %v1050
        %v1067 = vmul.f32 %v659, %v1051
        %v1068 = vmul.f32 %v661, %v1052
        %v1069 = vmul.f32 %v748, %v1053
        %v1070 = vmul.f32 %v750, %v1054
        %v1071 = vmul.f32 %v665, %v1055
        %v1072 = vmul.f32 %v667, %v1056
        %v1073 = vmul.f32 %v754, %v1057
        %v1074 = vmul.f32 %v756, %v1058
        %vm1075 = vcmask 261120
        %v1077 = vsel %vm1075, %v367, 0
        %v1080 = vsel %vm1075, %v368, 0
        %1082 = vmatprep.subr.mxu0 %v1060
        %1083 = vmatpush1.msra.mxu0 %v1059
        %1084 = vmatprep.subr.mxu0 %v1064
        %1085 = vmatpush1.msra.mxu0 %v1063
        %1086 = vmatprep.subr.mxu0 %v1068
        %1087 = vmatpush1.msra.mxu0 %v1067
        %1088 = vmatprep.subr.mxu0 %v1072
        %1089 = vmatpush1.msra.mxu0 %v1071
        %1090 = vmatprep.subr.mxu0 0.0
        %1091 = vmatpush1.msra.mxu0 0.0
        %1092 = vmatprep.subr.mxu0 0.0
        %1093 = vmatpush1.msra.mxu0 0.0
        %1094 = vmatprep.subr.mxu0 0.0
        %1095 = vmatpush1.msra.mxu0 0.0
        %1096 = vmatprep.subr.mxu0 0.0
        %1097 = vmatpush1.msra.mxu0 0.0
        %1098 = vmatprep.subr.mxu0 0.0
        %1099 = vmatpush1.msra.mxu0 0.0
        %1100 = vmatprep.subr.mxu0 0.0
        %1101 = vmatpush1.msra.mxu0 0.0
        %1102 = vmatprep.subr.mxu0 0.0
        %1103 = vmatpush1.msra.mxu0 0.0
        %1104 = vmatprep.subr.mxu0 0.0
        %1105 = vmatpush1.msra.mxu0 0.0
        %1106 = vmatprep.subr.mxu0 0.0
        %1107 = vmatpush1.msra.mxu0 0.0
        %1108 = vmatprep.subr.mxu0 0.0
        %1109 = vmatpush1.msra.mxu0 0.0
        %1110 = vmatprep.subr.mxu0 0.0
        %1111 = vmatpush1.msra.mxu0 0.0
        %1112 = vmatprep.subr.mxu0 0.0
        %1113 = vmatpush1.msra.mxu0 0.0
        %1114 = vmatprep.subr.mxu0 0.0
        %1115 = vmatpush1.msra.mxu0 0.0
        %1116 = vmatprep.subr.mxu0 0.0
        %1117 = vmatpush1.msra.mxu0 0.0
        %1118 = vmatprep.subr.mxu0 0.0
        %1119 = vmatpush1.msra.mxu0 0.0
        %1120 = vmatprep.subr.mxu0 0.0
        %1121 = vmatpush1.msra.mxu0 0.0
        %1122 = vmatprep.subr.mxu0 0.0
        %1123 = vmatpush1.msra.mxu0 0.0
        %1124 = vmatprep.subr.mxu0 0.0
        %1125 = vmatpush1.msra.mxu0 0.0
        %1126 = vmatprep.subr.mxu0 0.0
        %1127 = vmatpush1.msra.mxu0 0.0
        %1128 = vmatprep.subr.mxu0 0.0
        %1129 = vmatpush1.msra.mxu0 0.0
        %1130 = vmatprep.subr.mxu0 0.0
        %1131 = vmatpush1.msra.mxu0 0.0
        %1132 = vmatprep.subr.mxu0 0.0
        %1133 = vmatpush1.msra.mxu0 0.0
        %1134 = vmatprep.subr.mxu0 0.0
        %1135 = vmatpush1.msra.mxu0 0.0
        %1136 = vmatprep.subr.mxu0 0.0
        %1137 = vmatpush1.msra.mxu0 0.0
        %1138 = vmatprep.subr.mxu0 0.0
        %1139 = vmatpush1.msra.mxu0 0.0
        %1140 = vmatprep.subr.mxu0 0.0
        %1141 = vmatpush1.msra.mxu0 0.0
        %1142 = vmatprep.subr.mxu0 0.0
        %1143 = vmatpush1.msra.mxu0 0.0
        %1144 = vmatprep.subr.mxu0 0.0
        %1145 = vmatpush1.msra.mxu0 0.0
        %1146 = vmatprep.mubr.f32.mxu0 0.0
        %1147 = vmatmul.mubr.f32.gmra.mrb[0].mxu0 %v1077
        %v1148 = vpop.f32.mrb[0].mxu0
        %v1149 = vadd.f32 0.0, %v1148
        %v1150 = vpop.f32.mrb[0].mxu0
        %v1151 = vadd.f32 0.0, %v1150
        %1152 = vmatprep.mubr.f32.mxu0 0.0
        %1153 = vmatmul.mubr.f32.gmra.mrb[0].mxu0 %v1080
        %v1154 = vpop.f32.mrb[0].mxu0
        %v1155 = vadd.f32 0.0, %v1154
        %v1156 = vpop.f32.mrb[0].mxu0
        %v1157 = vadd.f32 0.0, %v1156
        %1158 = vdwg.mxu0
        %1159 = vmatprep.subr.mxu0 %v1062
        %1160 = vmatpush1.msra.mxu0 %v1061
        %1161 = vmatprep.subr.mxu0 %v1066
        %1162 = vmatpush1.msra.mxu0 %v1065
        %1163 = vmatprep.subr.mxu0 %v1070
        %1164 = vmatpush1.msra.mxu0 %v1069
        %1165 = vmatprep.subr.mxu0 %v1074
        %1166 = vmatpush1.msra.mxu0 %v1073
        %1167 = vmatprep.subr.mxu0 0.0
        %1168 = vmatpush1.msra.mxu0 0.0
        %1169 = vmatprep.subr.mxu0 0.0
        %1170 = vmatpush1.msra.mxu0 0.0
        %1171 = vmatprep.subr.mxu0 0.0
        %1172 = vmatpush1.msra.mxu0 0.0
        %1173 = vmatprep.subr.mxu0 0.0
        %1174 = vmatpush1.msra.mxu0 0.0
        %1175 = vmatprep.subr.mxu0 0.0
        %1176 = vmatpush1.msra.mxu0 0.0
        %1177 = vmatprep.subr.mxu0 0.0
        %1178 = vmatpush1.msra.mxu0 0.0
        %1179 = vmatprep.subr.mxu0 0.0
        %1180 = vmatpush1.msra.mxu0 0.0
        %1181 = vmatprep.subr.mxu0 0.0
        %1182 = vmatpush1.msra.mxu0 0.0
        %1183 = vmatprep.subr.mxu0 0.0
        %1184 = vmatpush1.msra.mxu0 0.0
        %1185 = vmatprep.subr.mxu0 0.0
        %1186 = vmatpush1.msra.mxu0 0.0
        %1187 = vmatprep.subr.mxu0 0.0
        %1188 = vmatpush1.msra.mxu0 0.0
        %1189 = vmatprep.subr.mxu0 0.0
        %1190 = vmatpush1.msra.mxu0 0.0
        %1191 = vmatprep.subr.mxu0 0.0
        %1192 = vmatpush1.msra.mxu0 0.0
        %1193 = vmatprep.subr.mxu0 0.0
        %1194 = vmatpush1.msra.mxu0 0.0
        %1195 = vmatprep.subr.mxu0 0.0
        %1196 = vmatpush1.msra.mxu0 0.0
        %1197 = vmatprep.subr.mxu0 0.0
        %1198 = vmatpush1.msra.mxu0 0.0
        %1199 = vmatprep.subr.mxu0 0.0
        %1200 = vmatpush1.msra.mxu0 0.0
        %1201 = vmatprep.subr.mxu0 0.0
        %1202 = vmatpush1.msra.mxu0 0.0
        %1203 = vmatprep.subr.mxu0 0.0
        %1204 = vmatpush1.msra.mxu0 0.0
        %1205 = vmatprep.subr.mxu0 0.0
        %1206 = vmatpush1.msra.mxu0 0.0
        %1207 = vmatprep.subr.mxu0 0.0
        %1208 = vmatpush1.msra.mxu0 0.0
        %1209 = vmatprep.subr.mxu0 0.0
        %1210 = vmatpush1.msra.mxu0 0.0
        %1211 = vmatprep.subr.mxu0 0.0
        %1212 = vmatpush1.msra.mxu0 0.0
        %1213 = vmatprep.subr.mxu0 0.0
        %1214 = vmatpush1.msra.mxu0 0.0
        %1215 = vmatprep.subr.mxu0 0.0
        %1216 = vmatpush1.msra.mxu0 0.0
        %1217 = vmatprep.subr.mxu0 0.0
        %1218 = vmatpush1.msra.mxu0 0.0
        %1219 = vmatprep.subr.mxu0 0.0
        %1220 = vmatpush1.msra.mxu0 0.0
        %1221 = vmatprep.subr.mxu0 0.0
        %1222 = vmatpush1.msra.mxu0 0.0
        %1223 = vmatprep.mubr.f32.mxu0 0.0
        %1224 = vmatmul.mubr.f32.gmra.mrb[0].mxu0 %v1077
        %v1225 = vpop.f32.mrb[0].mxu0
        %v1226 = vadd.f32 0.0, %v1225
        %v1227 = vpop.f32.mrb[0].mxu0
        %v1228 = vadd.f32 0.0, %v1227
        %1229 = vmatprep.mubr.f32.mxu0 0.0
        %1230 = vmatmul.mubr.f32.gmra.mrb[0].mxu0 %v1080
        %v1231 = vpop.f32.mrb[0].mxu0
        %v1232 = vadd.f32 0.0, %v1231
        %v1233 = vpop.f32.mrb[0].mxu0
        %v1234 = vadd.f32 0.0, %v1233
        %1235 = vdwg.mxu0
        %1236 = vst [vmem:[%s340] sm:$0xff] %v1149
        %1237 = vst [vmem:[%s340 + $0x8] sm:$0xff] %v1151
        %1238 = vst [vmem:[%s340 + $0x10] sm:$0xff] %v1226
        %1239 = vst [vmem:[%s340 + $0x18] sm:$0xff] %v1228
        %1240 = vst [vmem:[%s340 + $0x20] sm:$0xff] %v1155
        %1241 = vst [vmem:[%s340 + $0x28] sm:$0xff] %v1157
        %1242 = vst [vmem:[%s340 + $0x30] sm:$0xff] %v1232
        %1243 = vst [vmem:[%s340 + $0x38] sm:$0xff] %v1234
        %v1244 = vld [vmem:[%s307] sm:$0xff]
        %v1245 = vld [vmem:[%s307 + $0x8] sm:$0xff]
        %v1246 = vld [vmem:[%s307 + $0x10] sm:$0xff]
        %v1247 = vld [vmem:[%s307 + $0x18] sm:$0xff]
        %v1248 = vld [vmem:[%s307 + $0x20] sm:$0xff]
        %v1249 = vld [vmem:[%s307 + $0x28] sm:$0xff]
        %v1250 = vld [vmem:[%s307 + $0x30] sm:$0xff]
        %v1251 = vld [vmem:[%s307 + $0x38] sm:$0xff]
        %s1252 = scalar_lea.vmem %s307, 64 [#allocation5]
        %v1253 = vld [vmem:[%s1252] sm:$0xff]
        %v1254 = vld [vmem:[%s1252 + $0x8] sm:$0xff]
        %v1255 = vld [vmem:[%s1252 + $0x10] sm:$0xff]
        %v1256 = vld [vmem:[%s1252 + $0x18] sm:$0xff]
        %v1257 = vld [vmem:[%s1252 + $0x20] sm:$0xff]
        %v1258 = vld [vmem:[%s1252 + $0x28] sm:$0xff]
        %v1259 = vld [vmem:[%s1252 + $0x30] sm:$0xff]
        %v1260 = vld [vmem:[%s1252 + $0x38] sm:$0xff]
        %s1261 = scalar_lea.vmem %s307, 128 [#allocation5]
        %v1262 = vld [vmem:[%s1261] sm:$0xff]
        %v1263 = vld [vmem:[%s1261 + $0x8] sm:$0xff]
        %v1264 = vld [vmem:[%s1261 + $0x10] sm:$0xff]
        %v1265 = vld [vmem:[%s1261 + $0x18] sm:$0xff]
        %v1266 = vld [vmem:[%s1261 + $0x20] sm:$0xff]
        %v1267 = vld [vmem:[%s1261 + $0x28] sm:$0xff]
        %v1268 = vld [vmem:[%s1261 + $0x30] sm:$0xff]
        %v1269 = vld [vmem:[%s1261 + $0x38] sm:$0xff]
        %v1270 = vmul.f32 %v1244, %v1244
        %v1271 = vmul.f32 %v1245, %v1245
        %v1272 = vmul.f32 %v1246, %v1246
        %v1273 = vmul.f32 %v1247, %v1247
        %v1274 = vmul.f32 %v1248, %v1248
        %v1275 = vmul.f32 %v1249, %v1249
        %v1276 = vmul.f32 %v1250, %v1250
        %v1277 = vmul.f32 %v1251, %v1251
        %v1278 = vmul.f32 %v1253, %v1253
        %v1279 = vmul.f32 %v1254, %v1254
        %v1280 = vmul.f32 %v1255, %v1255
        %v1281 = vmul.f32 %v1256, %v1256
        %v1282 = vmul.f32 %v1257, %v1257
        %v1283 = vmul.f32 %v1258, %v1258
        %v1284 = vmul.f32 %v1259, %v1259
        %v1285 = vmul.f32 %v1260, %v1260
        %v1286 = vadd.f32 %v1270, %v1278
        %v1287 = vadd.f32 %v1271, %v1279
        %v1288 = vadd.f32 %v1272, %v1280
        %v1289 = vadd.f32 %v1273, %v1281
        %v1290 = vadd.f32 %v1274, %v1282
        %v1291 = vadd.f32 %v1275, %v1283
        %v1292 = vadd.f32 %v1276, %v1284
        %v1293 = vadd.f32 %v1277, %v1285
        %v1294 = vmul.f32 %v1262, %v1262
        %v1295 = vmul.f32 %v1263, %v1263
        %v1296 = vmul.f32 %v1264, %v1264
        %v1297 = vmul.f32 %v1265, %v1265
        %v1298 = vmul.f32 %v1266, %v1266
        %v1299 = vmul.f32 %v1267, %v1267
        %v1300 = vmul.f32 %v1268, %v1268
        %v1301 = vmul.f32 %v1269, %v1269
        %v1302 = vadd.f32 %v1286, %v1294
        %v1303 = vadd.f32 %v1287, %v1295
        %v1304 = vadd.f32 %v1288, %v1296
        %v1305 = vadd.f32 %v1289, %v1297
        %v1306 = vadd.f32 %v1290, %v1298
        %v1307 = vadd.f32 %v1291, %v1299
        %v1308 = vadd.f32 %v1292, %v1300
        %v1309 = vadd.f32 %v1293, %v1301
        %v1310 = vmax.f32 %v1302, 3.5527137e-15
        %v1311 = vmax.f32 %v1303, 3.5527137e-15
        %v1312 = vmax.f32 %v1304, 3.5527137e-15
        %v1313 = vmax.f32 %v1305, 3.5527137e-15
        %v1314 = vmax.f32 %v1306, 3.5527137e-15
        %v1315 = vmax.f32 %v1307, 3.5527137e-15
        %v1316 = vmax.f32 %v1308, 3.5527137e-15
        %v1317 = vmax.f32 %v1309, 3.5527137e-15
        %v1318 = vrsqrt.pop %v1310
        %v1319 = vrsqrt.pop %v1311
        %v1320 = vrsqrt.pop %v1312
        %v1321 = vrsqrt.pop %v1313
        %v1322 = vrsqrt.pop %v1314
        %v1323 = vrsqrt.pop %v1315
        %v1324 = vrsqrt.pop %v1316
        %v1325 = vrsqrt.pop %v1317
        %v1326 = vmul.f32 %v1310, %v1318
        %v1327 = vmul.f32 %v1311, %v1319
        %v1328 = vmul.f32 %v1312, %v1320
        %v1329 = vmul.f32 %v1313, %v1321
        %v1330 = vmul.f32 %v1314, %v1322
        %v1331 = vmul.f32 %v1315, %v1323
        %v1332 = vmul.f32 %v1316, %v1324
        %v1333 = vmul.f32 %v1317, %v1325
        %v1334 = vadd.f32 %v1326, %v1330
        %v1335 = vrot.slane %v1334, 4
        %v1336 = vadd.f32 %v1334, %v1335
        %v1337 = vrot.slane %v1336, 2
        %v1338 = vadd.f32 %v1336, %v1337
        %v1339 = vrot.slane %v1338, 1
        %v1340 = vadd.f32 %v1338, %v1339
        %v1341 = vadd.f32 %v1327, %v1331
        %v1342 = vrot.slane %v1341, 4
        %v1343 = vadd.f32 %v1341, %v1342
        %v1344 = vrot.slane %v1343, 2
        %v1345 = vadd.f32 %v1343, %v1344
        %v1346 = vrot.slane %v1345, 1
        %v1347 = vadd.f32 %v1345, %v1346
        %v1348 = vadd.f32 %v1328, %v1332
        %v1349 = vrot.slane %v1348, 4
        %v1350 = vadd.f32 %v1348, %v1349
        %v1351 = vrot.slane %v1350, 2
        %v1352 = vadd.f32 %v1350, %v1351
        %v1353 = vrot.slane %v1352, 1
        %v1354 = vadd.f32 %v1352, %v1353
        %v1355 = vadd.f32 %v1329, %v1333
        %v1356 = vrot.slane %v1355, 4
        %v1357 = vadd.f32 %v1355, %v1356
        %v1358 = vrot.slane %v1357, 2
        %v1359 = vadd.f32 %v1357, %v1358
        %v1360 = vrot.slane %v1359, 1
        %v1361 = vadd.f32 %v1359, %v1360
        %v1362 = vmul.f32 %v1340, %v440
        %v1363 = vmul.f32 %v1347, %v440
        %v1364 = vmul.f32 %v1354, %v440
        %v1365 = vmul.f32 %v1361, %v440
        %v1366 = vsub.f32 %v1326, %v1362
        %v1367 = vsub.f32 %v1327, %v1363
        %v1368 = vsub.f32 %v1328, %v1364
        %v1369 = vsub.f32 %v1329, %v1365
        %v1370 = vsub.f32 %v1330, %v1362
        %v1371 = vsub.f32 %v1331, %v1363
        %v1372 = vsub.f32 %v1332, %v1364
        %v1373 = vsub.f32 %v1333, %v1365
        %v1374 = vmul.f32 %v1366, %v1366
        %v1375 = vmul.f32 %v1367, %v1367
        %v1376 = vmul.f32 %v1368, %v1368
        %v1377 = vmul.f32 %v1369, %v1369
        %v1378 = vmul.f32 %v1370, %v1370
        %v1379 = vmul.f32 %v1371, %v1371
        %v1380 = vmul.f32 %v1372, %v1372
        %v1381 = vmul.f32 %v1373, %v1373
        %v1382 = vadd.f32 %v1374, %v1378
        %v1383 = vrot.slane %v1382, 4
        %v1384 = vadd.f32 %v1382, %v1383
        %v1385 = vrot.slane %v1384, 2
        %v1386 = vadd.f32 %v1384, %v1385
        %v1387 = vrot.slane %v1386, 1
        %v1388 = vadd.f32 %v1386, %v1387
        %v1389 = vadd.f32 %v1375, %v1379
        %v1390 = vrot.slane %v1389, 4
        %v1391 = vadd.f32 %v1389, %v1390
        %v1392 = vrot.slane %v1391, 2
        %v1393 = vadd.f32 %v1391, %v1392
        %v1394 = vrot.slane %v1393, 1
        %v1395 = vadd.f32 %v1393, %v1394
        %v1396 = vadd.f32 %v1376, %v1380
        %v1397 = vrot.slane %v1396, 4
        %v1398 = vadd.f32 %v1396, %v1397
        %v1399 = vrot.slane %v1398, 2
        %v1400 = vadd.f32 %v1398, %v1399
        %v1401 = vrot.slane %v1400, 1
        %v1402 = vadd.f32 %v1400, %v1401
        %v1403 = vadd.f32 %v1377, %v1381
        %v1404 = vrot.slane %v1403, 4
        %v1405 = vadd.f32 %v1403, %v1404
        %v1406 = vrot.slane %v1405, 2
        %v1407 = vadd.f32 %v1405, %v1406
        %v1408 = vrot.slane %v1407, 1
        %v1409 = vadd.f32 %v1407, %v1408
        %v1410 = vmul.f32 %v1388, %v440
        %v1411 = vmul.f32 %v1395, %v440
        %v1412 = vmul.f32 %v1402, %v440
        %v1413 = vmul.f32 %v1409, %v440
        %v1414 = vadd.f32 %v1410, 1e-05
        %v1415 = vadd.f32 %v1411, 1e-05
        %v1416 = vadd.f32 %v1412, 1e-05
        %v1417 = vadd.f32 %v1413, 1e-05
        %v1418 = vrsqrt.pop %v1414
        %v1419 = vrsqrt.pop %v1415
        %v1420 = vrsqrt.pop %v1416
        %v1421 = vrsqrt.pop %v1417
        %v1422 = vmul.f32 %v1366, %v1418
        %v1423 = vmul.f32 %v1367, %v1419
        %v1424 = vmul.f32 %v1368, %v1420
        %v1425 = vmul.f32 %v1369, %v1421
        %v1426 = vmul.f32 %v1370, %v1418
        %v1427 = vmul.f32 %v1371, %v1419
        %v1428 = vmul.f32 %v1372, %v1420
        %v1429 = vmul.f32 %v1373, %v1421
        %1430 = vset.pattern.permute.xlu0 2
        %1431 = vperm.xlu0 %1430, %v352
        %v1432 = vpop.permute.xlu0 %1431
        %1434 = vset.pattern.permute.xlu0 2
        %1435 = vperm.xlu0 %1434, %v353
        %v1436 = vpop.permute.xlu0 %1435
        %v1438 = vmul.f32 %v1422, %v1432
        %v1439 = vmul.f32 %v1423, %v1432
        %v1440 = vmul.f32 %v1424, %v1432
        %v1441 = vmul.f32 %v1425, %v1432
        %v1442 = vmul.f32 %v1426, %v1436
        %v1443 = vmul.f32 %v1427, %v1436
        %v1444 = vmul.f32 %v1428, %v1436
        %v1445 = vmul.f32 %v1429, %v1436
        %1446 = vset.pattern.permute.xlu0 3
        %1447 = vperm.xlu0 %1446, %v352
        %v1448 = vpop.permute.xlu0 %1447
        %1450 = vset.pattern.permute.xlu0 3
        %1451 = vperm.xlu0 %1450, %v353
        %v1452 = vpop.permute.xlu0 %1451
        %v1454 = vadd.f32 %v1438, %v1448
        %v1455 = vadd.f32 %v1439, %v1448
        %v1456 = vadd.f32 %v1440, %v1448
        %v1457 = vadd.f32 %v1441, %v1448
        %v1458 = vadd.f32 %v1442, %v1452
        %v1459 = vadd.f32 %v1443, %v1452
        %v1460 = vadd.f32 %v1444, %v1452
        %v1461 = vadd.f32 %v1445, %v1452
        %v1462 = vmax.f32 %v1454, 0.0
        %v1463 = vmax.f32 %v1455, 0.0
        %v1464 = vmax.f32 %v1456, 0.0
        %v1465 = vmax.f32 %v1457, 0.0
        %v1466 = vmax.f32 %v1458, 0.0
        %v1467 = vmax.f32 %v1459, 0.0
        %v1468 = vmax.f32 %v1460, 0.0
        %v1469 = vmax.f32 %v1461, 0.0
        %v1470 = vmul.f32 %v1462, %v1318
        %v1471 = vmul.f32 %v1463, %v1319
        %v1472 = vmul.f32 %v1464, %v1320
        %v1473 = vmul.f32 %v1465, %v1321
        %v1474 = vmul.f32 %v1466, %v1322
        %v1475 = vmul.f32 %v1467, %v1323
        %v1476 = vmul.f32 %v1468, %v1324
        %v1477 = vmul.f32 %v1469, %v1325
        %v1478 = vmul.f32 %v1244, %v1470
        %v1479 = vmul.f32 %v1245, %v1471
        %v1480 = vmul.f32 %v1246, %v1472
        %v1481 = vmul.f32 %v1247, %v1473
        %v1482 = vmul.f32 %v1248, %v1474
        %v1483 = vmul.f32 %v1249, %v1475
        %v1484 = vmul.f32 %v1250, %v1476
        %v1485 = vmul.f32 %v1251, %v1477
        %v1486 = vmul.f32 %v1253, %v1470
        %v1487 = vmul.f32 %v1254, %v1471
        %v1488 = vmul.f32 %v1255, %v1472
        %v1489 = vmul.f32 %v1256, %v1473
        %v1490 = vmul.f32 %v1257, %v1474
        %v1491 = vmul.f32 %v1258, %v1475
        %v1492 = vmul.f32 %v1259, %v1476
        %v1493 = vmul.f32 %v1260, %v1477
        %v1494 = vmul.f32 %v1262, %v1470
        %v1495 = vmul.f32 %v1263, %v1471
        %v1496 = vmul.f32 %v1264, %v1472
        %v1497 = vmul.f32 %v1265, %v1473
        %v1498 = vmul.f32 %v1266, %v1474
        %v1499 = vmul.f32 %v1267, %v1475
        %v1500 = vmul.f32 %v1268, %v1476
        %v1501 = vmul.f32 %v1269, %v1477
        %v1503 = vsel %vm567, %v363, 0
        %v1506 = vsel %vm567, %v364, 0
        %v1509 = vsel %vm567, %v365, 0
        %v1512 = vsel %vm567, %v366, 0
        %1514 = vmatprep.subr.mxu0 %v1479
        %1515 = vmatpush1.msra.mxu0 %v1478
        %1516 = vmatprep.subr.mxu0 %v1483
        %1517 = vmatpush1.msra.mxu0 %v1482
        %1518 = vmatprep.subr.mxu0 0.0
        %1519 = vmatpush1.msra.mxu0 0.0
        %1520 = vmatprep.subr.mxu0 0.0
        %1521 = vmatpush1.msra.mxu0 0.0
        %1522 = vmatprep.subr.mxu0 0.0
        %1523 = vmatpush1.msra.mxu0 0.0
        %1524 = vmatprep.subr.mxu0 0.0
        %1525 = vmatpush1.msra.mxu0 0.0
        %1526 = vmatprep.subr.mxu0 0.0
        %1527 = vmatpush1.msra.mxu0 0.0
        %1528 = vmatprep.subr.mxu0 0.0
        %1529 = vmatpush1.msra.mxu0 0.0
        %1530 = vmatprep.subr.mxu0 0.0
        %1531 = vmatpush1.msra.mxu0 0.0
        %1532 = vmatprep.subr.mxu0 0.0
        %1533 = vmatpush1.msra.mxu0 0.0
        %1534 = vmatprep.subr.mxu0 0.0
        %1535 = vmatpush1.msra.mxu0 0.0
        %1536 = vmatprep.subr.mxu0 0.0
        %1537 = vmatpush1.msra.mxu0 0.0
        %1538 = vmatprep.subr.mxu0 0.0
        %1539 = vmatpush1.msra.mxu0 0.0
        %1540 = vmatprep.subr.mxu0 0.0
        %1541 = vmatpush1.msra.mxu0 0.0
        %1542 = vmatprep.subr.mxu0 0.0
        %1543 = vmatpush1.msra.mxu0 0.0
        %1544 = vmatprep.subr.mxu0 0.0
        %1545 = vmatpush1.msra.mxu0 0.0
        %1546 = vmatprep.subr.mxu0 0.0
        %1547 = vmatpush1.msra.mxu0 0.0
        %1548 = vmatprep.subr.mxu0 0.0
        %1549 = vmatpush1.msra.mxu0 0.0
        %1550 = vmatprep.subr.mxu0 0.0
        %1551 = vmatpush1.msra.mxu0 0.0
        %1552 = vmatprep.subr.mxu0 0.0
        %1553 = vmatpush1.msra.mxu0 0.0
        %1554 = vmatprep.subr.mxu0 0.0
        %1555 = vmatpush1.msra.mxu0 0.0
        %1556 = vmatprep.subr.mxu0 0.0
        %1557 = vmatpush1.msra.mxu0 0.0
        %1558 = vmatprep.subr.mxu0 0.0
        %1559 = vmatpush1.msra.mxu0 0.0
        %1560 = vmatprep.subr.mxu0 0.0
        %1561 = vmatpush1.msra.mxu0 0.0
        %1562 = vmatprep.subr.mxu0 0.0
        %1563 = vmatpush1.msra.mxu0 0.0
        %1564 = vmatprep.subr.mxu0 0.0
        %1565 = vmatpush1.msra.mxu0 0.0
        %1566 = vmatprep.subr.mxu0 0.0
        %1567 = vmatpush1.msra.mxu0 0.0
        %1568 = vmatprep.subr.mxu0 0.0
        %1569 = vmatpush1.msra.mxu0 0.0
        %1570 = vmatprep.subr.mxu0 0.0
        %1571 = vmatpush1.msra.mxu0 0.0
        %1572 = vmatprep.subr.mxu0 0.0
        %1573 = vmatpush1.msra.mxu0 0.0
        %1574 = vmatprep.subr.mxu0 0.0
        %1575 = vmatpush1.msra.mxu0 0.0
        %1576 = vmatprep.subr.mxu0 0.0
        %1577 = vmatpush1.msra.mxu0 0.0
        %1578 = vmatprep.mubr.f32.mxu0 0.0
        %1579 = vmatmul.mubr.f32.gmra.mrb[0].mxu0 %v1503
        %v1580 = vpop.f32.mrb[0].mxu0
        %v1581 = vadd.f32 0.0, %v1580
        %v1582 = vpop.f32.mrb[0].mxu0
        %v1583 = vadd.f32 0.0, %v1582
        %1584 = vmatprep.mubr.f32.mxu0 0.0
        %1585 = vmatmul.mubr.f32.gmra.mrb[0].mxu0 %v1506
        %v1586 = vpop.f32.mrb[0].mxu0
        %v1587 = vadd.f32 0.0, %v1586
        %v1588 = vpop.f32.mrb[0].mxu0
        %v1589 = vadd.f32 0.0, %v1588
        %1590 = vmatprep.mubr.f32.mxu0 0.0
        %1591 = vmatmul.mubr.f32.gmra.mrb[0].mxu0 %v1509
        %v1592 = vpop.f32.mrb[0].mxu0
        %v1593 = vadd.f32 0.0, %v1592
        %v1594 = vpop.f32.mrb[0].mxu0
        %v1595 = vadd.f32 0.0, %v1594
        %1596 = vmatprep.mubr.f32.mxu0 0.0
        %1597 = vmatmul.mubr.f32.gmra.mrb[0].mxu0 %v1512
        %v1598 = vpop.f32.mrb[0].mxu0
        %v1599 = vadd.f32 0.0, %v1598
        %v1600 = vpop.f32.mrb[0].mxu0
        %v1601 = vadd.f32 0.0, %v1600
        %1602 = vdwg.mxu0
        %1603 = vmatprep.subr.mxu0 %v1481
        %1604 = vmatpush1.msra.mxu0 %v1480
        %1605 = vmatprep.subr.mxu0 %v1485
        %1606 = vmatpush1.msra.mxu0 %v1484
        %1607 = vmatprep.subr.mxu0 0.0
        %1608 = vmatpush1.msra.mxu0 0.0
        %1609 = vmatprep.subr.mxu0 0.0
        %1610 = vmatpush1.msra.mxu0 0.0
        %1611 = vmatprep.subr.mxu0 0.0
        %1612 = vmatpush1.msra.mxu0 0.0
        %1613 = vmatprep.subr.mxu0 0.0
        %1614 = vmatpush1.msra.mxu0 0.0
        %1615 = vmatprep.subr.mxu0 0.0
        %1616 = vmatpush1.msra.mxu0 0.0
        %1617 = vmatprep.subr.mxu0 0.0
        %1618 = vmatpush1.msra.mxu0 0.0
        %1619 = vmatprep.subr.mxu0 0.0
        %1620 = vmatpush1.msra.mxu0 0.0
        %1621 = vmatprep.subr.mxu0 0.0
        %1622 = vmatpush1.msra.mxu0 0.0
        %1623 = vmatprep.subr.mxu0 0.0
        %1624 = vmatpush1.msra.mxu0 0.0
        %1625 = vmatprep.subr.mxu0 0.0
        %1626 = vmatpush1.msra.mxu0 0.0
        %1627 = vmatprep.subr.mxu0 0.0
        %1628 = vmatpush1.msra.mxu0 0.0
        %1629 = vmatprep.subr.mxu0 0.0
        %1630 = vmatpush1.msra.mxu0 0.0
        %1631 = vmatprep.subr.mxu0 0.0
        %1632 = vmatpush1.msra.mxu0 0.0
        %1633 = vmatprep.subr.mxu0 0.0
        %1634 = vmatpush1.msra.mxu0 0.0
        %1635 = vmatprep.subr.mxu0 0.0
        %1636 = vmatpush1.msra.mxu0 0.0
        %1637 = vmatprep.subr.mxu0 0.0
        %1638 = vmatpush1.msra.mxu0 0.0
        %1639 = vmatprep.subr.mxu0 0.0
        %1640 = vmatpush1.msra.mxu0 0.0
        %1641 = vmatprep.subr.mxu0 0.0
        %1642 = vmatpush1.msra.mxu0 0.0
        %1643 = vmatprep.subr.mxu0 0.0
        %1644 = vmatpush1.msra.mxu0 0.0
        %1645 = vmatprep.subr.mxu0 0.0
        %1646 = vmatpush1.msra.mxu0 0.0
        %1647 = vmatprep.subr.mxu0 0.0
        %1648 = vmatpush1.msra.mxu0 0.0
        %1649 = vmatprep.subr.mxu0 0.0
        %1650 = vmatpush1.msra.mxu0 0.0
        %1651 = vmatprep.subr.mxu0 0.0
        %1652 = vmatpush1.msra.mxu0 0.0
        %1653 = vmatprep.subr.mxu0 0.0
        %1654 = vmatpush1.msra.mxu0 0.0
        %1655 = vmatprep.subr.mxu0 0.0
        %1656 = vmatpush1.msra.mxu0 0.0
        %1657 = vmatprep.subr.mxu0 0.0
        %1658 = vmatpush1.msra.mxu0 0.0
        %1659 = vmatprep.subr.mxu0 0.0
        %1660 = vmatpush1.msra.mxu0 0.0
        %1661 = vmatprep.subr.mxu0 0.0
        %1662 = vmatpush1.msra.mxu0 0.0
        %1663 = vmatprep.subr.mxu0 0.0
        %1664 = vmatpush1.msra.mxu0 0.0
        %1665 = vmatprep.subr.mxu0 0.0
        %1666 = vmatpush1.msra.mxu0 0.0
        %1667 = vmatprep.mubr.f32.mxu0 0.0
        %1668 = vmatmul.mubr.f32.gmra.mrb[0].mxu0 %v1503
        %v1669 = vpop.f32.mrb[0].mxu0
        %v1670 = vadd.f32 0.0, %v1669
        %v1671 = vpop.f32.mrb[0].mxu0
        %v1672 = vadd.f32 0.0, %v1671
        %1673 = vmatprep.mubr.f32.mxu0 0.0
        %1674 = vmatmul.mubr.f32.gmra.mrb[0].mxu0 %v1506
        %v1675 = vpop.f32.mrb[0].mxu0
        %v1676 = vadd.f32 0.0, %v1675
        %v1677 = vpop.f32.mrb[0].mxu0
        %v1678 = vadd.f32 0.0, %v1677
        %1679 = vmatprep.mubr.f32.mxu0 0.0
        %1680 = vmatmul.mubr.f32.gmra.mrb[0].mxu0 %v1509
        %v1681 = vpop.f32.mrb[0].mxu0
        %v1682 = vadd.f32 0.0, %v1681
        %v1683 = vpop.f32.mrb[0].mxu0
        %v1684 = vadd.f32 0.0, %v1683
        %1685 = vmatprep.mubr.f32.mxu0 0.0
        %1686 = vmatmul.mubr.f32.gmra.mrb[0].mxu0 %v1512
        %v1687 = vpop.f32.mrb[0].mxu0
        %v1688 = vadd.f32 0.0, %v1687
        %v1689 = vpop.f32.mrb[0].mxu0
        %v1690 = vadd.f32 0.0, %v1689
        %1691 = vdwg.mxu0
        %1692 = vmatprep.subr.mxu0 %v1487
        %1693 = vmatpush1.msra.mxu0 %v1486
        %1694 = vmatprep.subr.mxu0 %v1491
        %1695 = vmatpush1.msra.mxu0 %v1490
        %1696 = vmatprep.subr.mxu0 0.0
        %1697 = vmatpush1.msra.mxu0 0.0
        %1698 = vmatprep.subr.mxu0 0.0
        %1699 = vmatpush1.msra.mxu0 0.0
        %1700 = vmatprep.subr.mxu0 0.0
        %1701 = vmatpush1.msra.mxu0 0.0
        %1702 = vmatprep.subr.mxu0 0.0
        %1703 = vmatpush1.msra.mxu0 0.0
        %1704 = vmatprep.subr.mxu0 0.0
        %1705 = vmatpush1.msra.mxu0 0.0
        %1706 = vmatprep.subr.mxu0 0.0
        %1707 = vmatpush1.msra.mxu0 0.0
        %1708 = vmatprep.subr.mxu0 0.0
        %1709 = vmatpush1.msra.mxu0 0.0
        %1710 = vmatprep.subr.mxu0 0.0
        %1711 = vmatpush1.msra.mxu0 0.0
        %1712 = vmatprep.subr.mxu0 0.0
        %1713 = vmatpush1.msra.mxu0 0.0
        %1714 = vmatprep.subr.mxu0 0.0
        %1715 = vmatpush1.msra.mxu0 0.0
        %1716 = vmatprep.subr.mxu0 0.0
        %1717 = vmatpush1.msra.mxu0 0.0
        %1718 = vmatprep.subr.mxu0 0.0
        %1719 = vmatpush1.msra.mxu0 0.0
        %1720 = vmatprep.subr.mxu0 0.0
        %1721 = vmatpush1.msra.mxu0 0.0
        %1722 = vmatprep.subr.mxu0 0.0
        %1723 = vmatpush1.msra.mxu0 0.0
        %1724 = vmatprep.subr.mxu0 0.0
        %1725 = vmatpush1.msra.mxu0 0.0
        %1726 = vmatprep.subr.mxu0 0.0
        %1727 = vmatpush1.msra.mxu0 0.0
        %1728 = vmatprep.subr.mxu0 0.0
        %1729 = vmatpush1.msra.mxu0 0.0
        %1730 = vmatprep.subr.mxu0 0.0
        %1731 = vmatpush1.msra.mxu0 0.0
        %1732 = vmatprep.subr.mxu0 0.0
        %1733 = vmatpush1.msra.mxu0 0.0
        %1734 = vmatprep.subr.mxu0 0.0
        %1735 = vmatpush1.msra.mxu0 0.0
        %1736 = vmatprep.subr.mxu0 0.0
        %1737 = vmatpush1.msra.mxu0 0.0
        %1738 = vmatprep.subr.mxu0 0.0
        %1739 = vmatpush1.msra.mxu0 0.0
        %1740 = vmatprep.subr.mxu0 0.0
        %1741 = vmatpush1.msra.mxu0 0.0
        %1742 = vmatprep.subr.mxu0 0.0
        %1743 = vmatpush1.msra.mxu0 0.0
        %1744 = vmatprep.subr.mxu0 0.0
        %1745 = vmatpush1.msra.mxu0 0.0
        %1746 = vmatprep.subr.mxu0 0.0
        %1747 = vmatpush1.msra.mxu0 0.0
        %1748 = vmatprep.subr.mxu0 0.0
        %1749 = vmatpush1.msra.mxu0 0.0
        %1750 = vmatprep.subr.mxu0 0.0
        %1751 = vmatpush1.msra.mxu0 0.0
        %1752 = vmatprep.subr.mxu0 0.0
        %1753 = vmatpush1.msra.mxu0 0.0
        %1754 = vmatprep.subr.mxu0 0.0
        %1755 = vmatpush1.msra.mxu0 0.0
        %1756 = vmatprep.mubr.f32.mxu0 0.0
        %1757 = vmatmul.mubr.f32.gmra.mrb[0].mxu0 %v1503
        %v1758 = vpop.f32.mrb[0].mxu0
        %v1759 = vadd.f32 0.0, %v1758
        %v1760 = vpop.f32.mrb[0].mxu0
        %v1761 = vadd.f32 0.0, %v1760
        %1762 = vmatprep.mubr.f32.mxu0 0.0
        %1763 = vmatmul.mubr.f32.gmra.mrb[0].mxu0 %v1506
        %v1764 = vpop.f32.mrb[0].mxu0
        %v1765 = vadd.f32 0.0, %v1764
        %v1766 = vpop.f32.mrb[0].mxu0
        %v1767 = vadd.f32 0.0, %v1766
        %1768 = vmatprep.mubr.f32.mxu0 0.0
        %1769 = vmatmul.mubr.f32.gmra.mrb[0].mxu0 %v1509
        %v1770 = vpop.f32.mrb[0].mxu0
        %v1771 = vadd.f32 0.0, %v1770
        %v1772 = vpop.f32.mrb[0].mxu0
        %v1773 = vadd.f32 0.0, %v1772
        %1774 = vmatprep.mubr.f32.mxu0 0.0
        %1775 = vmatmul.mubr.f32.gmra.mrb[0].mxu0 %v1512
        %v1776 = vpop.f32.mrb[0].mxu0
        %v1777 = vadd.f32 0.0, %v1776
        %v1778 = vpop.f32.mrb[0].mxu0
        %v1779 = vadd.f32 0.0, %v1778
        %1780 = vdwg.mxu0
        %1781 = vmatprep.subr.mxu0 %v1489
        %1782 = vmatpush1.msra.mxu0 %v1488
        %1783 = vmatprep.subr.mxu0 %v1493
        %1784 = vmatpush1.msra.mxu0 %v1492
        %1785 = vmatprep.subr.mxu0 0.0
        %1786 = vmatpush1.msra.mxu0 0.0
        %1787 = vmatprep.subr.mxu0 0.0
        %1788 = vmatpush1.msra.mxu0 0.0
        %1789 = vmatprep.subr.mxu0 0.0
        %1790 = vmatpush1.msra.mxu0 0.0
        %1791 = vmatprep.subr.mxu0 0.0
        %1792 = vmatpush1.msra.mxu0 0.0
        %1793 = vmatprep.subr.mxu0 0.0
        %1794 = vmatpush1.msra.mxu0 0.0
        %1795 = vmatprep.subr.mxu0 0.0
        %1796 = vmatpush1.msra.mxu0 0.0
        %1797 = vmatprep.subr.mxu0 0.0
        %1798 = vmatpush1.msra.mxu0 0.0
        %1799 = vmatprep.subr.mxu0 0.0
        %1800 = vmatpush1.msra.mxu0 0.0
        %1801 = vmatprep.subr.mxu0 0.0
        %1802 = vmatpush1.msra.mxu0 0.0
        %1803 = vmatprep.subr.mxu0 0.0
        %1804 = vmatpush1.msra.mxu0 0.0
        %1805 = vmatprep.subr.mxu0 0.0
        %1806 = vmatpush1.msra.mxu0 0.0
        %1807 = vmatprep.subr.mxu0 0.0
        %1808 = vmatpush1.msra.mxu0 0.0
        %1809 = vmatprep.subr.mxu0 0.0
        %1810 = vmatpush1.msra.mxu0 0.0
        %1811 = vmatprep.subr.mxu0 0.0
        %1812 = vmatpush1.msra.mxu0 0.0
        %1813 = vmatprep.subr.mxu0 0.0
        %1814 = vmatpush1.msra.mxu0 0.0
        %1815 = vmatprep.subr.mxu0 0.0
        %1816 = vmatpush1.msra.mxu0 0.0
        %1817 = vmatprep.subr.mxu0 0.0
        %1818 = vmatpush1.msra.mxu0 0.0
        %1819 = vmatprep.subr.mxu0 0.0
        %1820 = vmatpush1.msra.mxu0 0.0
        %1821 = vmatprep.subr.mxu0 0.0
        %1822 = vmatpush1.msra.mxu0 0.0
        %1823 = vmatprep.subr.mxu0 0.0
        %1824 = vmatpush1.msra.mxu0 0.0
        %1825 = vmatprep.subr.mxu0 0.0
        %1826 = vmatpush1.msra.mxu0 0.0
        %1827 = vmatprep.subr.mxu0 0.0
        %1828 = vmatpush1.msra.mxu0 0.0
        %1829 = vmatprep.subr.mxu0 0.0
        %1830 = vmatpush1.msra.mxu0 0.0
        %1831 = vmatprep.subr.mxu0 0.0
        %1832 = vmatpush1.msra.mxu0 0.0
        %1833 = vmatprep.subr.mxu0 0.0
        %1834 = vmatpush1.msra.mxu0 0.0
        %1835 = vmatprep.subr.mxu0 0.0
        %1836 = vmatpush1.msra.mxu0 0.0
        %1837 = vmatprep.subr.mxu0 0.0
        %1838 = vmatpush1.msra.mxu0 0.0
        %1839 = vmatprep.subr.mxu0 0.0
        %1840 = vmatpush1.msra.mxu0 0.0
        %1841 = vmatprep.subr.mxu0 0.0
        %1842 = vmatpush1.msra.mxu0 0.0
        %1843 = vmatprep.subr.mxu0 0.0
        %1844 = vmatpush1.msra.mxu0 0.0
        %1845 = vmatprep.mubr.f32.mxu0 0.0
        %1846 = vmatmul.mubr.f32.gmra.mrb[0].mxu0 %v1503
        %v1847 = vpop.f32.mrb[0].mxu0
        %v1848 = vadd.f32 0.0, %v1847
        %v1849 = vpop.f32.mrb[0].mxu0
        %v1850 = vadd.f32 0.0, %v1849
        %1851 = vmatprep.mubr.f32.mxu0 0.0
        %1852 = vmatmul.mubr.f32.gmra.mrb[0].mxu0 %v1506
        %v1853 = vpop.f32.mrb[0].mxu0
        %v1854 = vadd.f32 0.0, %v1853
        %v1855 = vpop.f32.mrb[0].mxu0
        %v1856 = vadd.f32 0.0, %v1855
        %1857 = vmatprep.mubr.f32.mxu0 0.0
        %1858 = vmatmul.mubr.f32.gmra.mrb[0].mxu0 %v1509
        %v1859 = vpop.f32.mrb[0].mxu0
        %v1860 = vadd.f32 0.0, %v1859
        %v1861 = vpop.f32.mrb[0].mxu0
        %v1862 = vadd.f32 0.0, %v1861
        %1863 = vmatprep.mubr.f32.mxu0 0.0
        %1864 = vmatmul.mubr.f32.gmra.mrb[0].mxu0 %v1512
        %v1865 = vpop.f32.mrb[0].mxu0
        %v1866 = vadd.f32 0.0, %v1865
        %v1867 = vpop.f32.mrb[0].mxu0
        %v1868 = vadd.f32 0.0, %v1867
        %1869 = vdwg.mxu0
        %1870 = vmatprep.subr.mxu0 %v1495
        %1871 = vmatpush1.msra.mxu0 %v1494
        %1872 = vmatprep.subr.mxu0 %v1499
        %1873 = vmatpush1.msra.mxu0 %v1498
        %1874 = vmatprep.subr.mxu0 0.0
        %1875 = vmatpush1.msra.mxu0 0.0
        %1876 = vmatprep.subr.mxu0 0.0
        %1877 = vmatpush1.msra.mxu0 0.0
        %1878 = vmatprep.subr.mxu0 0.0
        %1879 = vmatpush1.msra.mxu0 0.0
        %1880 = vmatprep.subr.mxu0 0.0
        %1881 = vmatpush1.msra.mxu0 0.0
        %1882 = vmatprep.subr.mxu0 0.0
        %1883 = vmatpush1.msra.mxu0 0.0
        %1884 = vmatprep.subr.mxu0 0.0
        %1885 = vmatpush1.msra.mxu0 0.0
        %1886 = vmatprep.subr.mxu0 0.0
        %1887 = vmatpush1.msra.mxu0 0.0
        %1888 = vmatprep.subr.mxu0 0.0
        %1889 = vmatpush1.msra.mxu0 0.0
        %1890 = vmatprep.subr.mxu0 0.0
        %1891 = vmatpush1.msra.mxu0 0.0
        %1892 = vmatprep.subr.mxu0 0.0
        %1893 = vmatpush1.msra.mxu0 0.0
        %1894 = vmatprep.subr.mxu0 0.0
        %1895 = vmatpush1.msra.mxu0 0.0
        %1896 = vmatprep.subr.mxu0 0.0
        %1897 = vmatpush1.msra.mxu0 0.0
        %1898 = vmatprep.subr.mxu0 0.0
        %1899 = vmatpush1.msra.mxu0 0.0
        %1900 = vmatprep.subr.mxu0 0.0
        %1901 = vmatpush1.msra.mxu0 0.0
        %1902 = vmatprep.subr.mxu0 0.0
        %1903 = vmatpush1.msra.mxu0 0.0
        %1904 = vmatprep.subr.mxu0 0.0
        %1905 = vmatpush1.msra.mxu0 0.0
        %1906 = vmatprep.subr.mxu0 0.0
        %1907 = vmatpush1.msra.mxu0 0.0
        %1908 = vmatprep.subr.mxu0 0.0
        %1909 = vmatpush1.msra.mxu0 0.0
        %1910 = vmatprep.subr.mxu0 0.0
        %1911 = vmatpush1.msra.mxu0 0.0
        %1912 = vmatprep.subr.mxu0 0.0
        %1913 = vmatpush1.msra.mxu0 0.0
        %1914 = vmatprep.subr.mxu0 0.0
        %1915 = vmatpush1.msra.mxu0 0.0
        %1916 = vmatprep.subr.mxu0 0.0
        %1917 = vmatpush1.msra.mxu0 0.0
        %1918 = vmatprep.subr.mxu0 0.0
        %1919 = vmatpush1.msra.mxu0 0.0
        %1920 = vmatprep.subr.mxu0 0.0
        %1921 = vmatpush1.msra.mxu0 0.0
        %1922 = vmatprep.subr.mxu0 0.0
        %1923 = vmatpush1.msra.mxu0 0.0
        %1924 = vmatprep.subr.mxu0 0.0
        %1925 = vmatpush1.msra.mxu0 0.0
        %1926 = vmatprep.subr.mxu0 0.0
        %1927 = vmatpush1.msra.mxu0 0.0
        %1928 = vmatprep.subr.mxu0 0.0
        %1929 = vmatpush1.msra.mxu0 0.0
        %1930 = vmatprep.subr.mxu0 0.0
        %1931 = vmatpush1.msra.mxu0 0.0
        %1932 = vmatprep.subr.mxu0 0.0
        %1933 = vmatpush1.msra.mxu0 0.0
        %1934 = vmatprep.mubr.f32.mxu0 0.0
        %1935 = vmatmul.mubr.f32.gmra.mrb[0].mxu0 %v1503
        %v1936 = vpop.f32.mrb[0].mxu0
        %v1937 = vadd.f32 0.0, %v1936
        %v1938 = vpop.f32.mrb[0].mxu0
        %v1939 = vadd.f32 0.0, %v1938
        %1940 = vmatprep.mubr.f32.mxu0 0.0
        %1941 = vmatmul.mubr.f32.gmra.mrb[0].mxu0 %v1506
        %v1942 = vpop.f32.mrb[0].mxu0
        %v1943 = vadd.f32 0.0, %v1942
        %v1944 = vpop.f32.mrb[0].mxu0
        %v1945 = vadd.f32 0.0, %v1944
        %1946 = vmatprep.mubr.f32.mxu0 0.0
        %1947 = vmatmul.mubr.f32.gmra.mrb[0].mxu0 %v1509
        %v1948 = vpop.f32.mrb[0].mxu0
        %v1949 = vadd.f32 0.0, %v1948
        %v1950 = vpop.f32.mrb[0].mxu0
        %v1951 = vadd.f32 0.0, %v1950
        %1952 = vmatprep.mubr.f32.mxu0 0.0
        %1953 = vmatmul.mubr.f32.gmra.mrb[0].mxu0 %v1512
        %v1954 = vpop.f32.mrb[0].mxu0
        %v1955 = vadd.f32 0.0, %v1954
        %v1956 = vpop.f32.mrb[0].mxu0
        %v1957 = vadd.f32 0.0, %v1956
        %1958 = vdwg.mxu0
        %1959 = vmatprep.subr.mxu0 %v1497
        %1960 = vmatpush1.msra.mxu0 %v1496
        %1961 = vmatprep.subr.mxu0 %v1501
        %1962 = vmatpush1.msra.mxu0 %v1500
        %1963 = vmatprep.subr.mxu0 0.0
        %1964 = vmatpush1.msra.mxu0 0.0
        %1965 = vmatprep.subr.mxu0 0.0
        %1966 = vmatpush1.msra.mxu0 0.0
        %1967 = vmatprep.subr.mxu0 0.0
        %1968 = vmatpush1.msra.mxu0 0.0
        %1969 = vmatprep.subr.mxu0 0.0
        %1970 = vmatpush1.msra.mxu0 0.0
        %1971 = vmatprep.subr.mxu0 0.0
        %1972 = vmatpush1.msra.mxu0 0.0
        %1973 = vmatprep.subr.mxu0 0.0
        %1974 = vmatpush1.msra.mxu0 0.0
        %1975 = vmatprep.subr.mxu0 0.0
        %1976 = vmatpush1.msra.mxu0 0.0
        %1977 = vmatprep.subr.mxu0 0.0
        %1978 = vmatpush1.msra.mxu0 0.0
        %1979 = vmatprep.subr.mxu0 0.0
        %1980 = vmatpush1.msra.mxu0 0.0
        %1981 = vmatprep.subr.mxu0 0.0
        %1982 = vmatpush1.msra.mxu0 0.0
        %1983 = vmatprep.subr.mxu0 0.0
        %1984 = vmatpush1.msra.mxu0 0.0
        %1985 = vmatprep.subr.mxu0 0.0
        %1986 = vmatpush1.msra.mxu0 0.0
        %1987 = vmatprep.subr.mxu0 0.0
        %1988 = vmatpush1.msra.mxu0 0.0
        %1989 = vmatprep.subr.mxu0 0.0
        %1990 = vmatpush1.msra.mxu0 0.0
        %1991 = vmatprep.subr.mxu0 0.0
        %1992 = vmatpush1.msra.mxu0 0.0
        %1993 = vmatprep.subr.mxu0 0.0
        %1994 = vmatpush1.msra.mxu0 0.0
        %1995 = vmatprep.subr.mxu0 0.0
        %1996 = vmatpush1.msra.mxu0 0.0
        %1997 = vmatprep.subr.mxu0 0.0
        %1998 = vmatpush1.msra.mxu0 0.0
        %1999 = vmatprep.subr.mxu0 0.0
        %2000 = vmatpush1.msra.mxu0 0.0
        %2001 = vmatprep.subr.mxu0 0.0
        %2002 = vmatpush1.msra.mxu0 0.0
        %2003 = vmatprep.subr.mxu0 0.0
        %2004 = vmatpush1.msra.mxu0 0.0
        %2005 = vmatprep.subr.mxu0 0.0
        %2006 = vmatpush1.msra.mxu0 0.0
        %2007 = vmatprep.subr.mxu0 0.0
        %2008 = vmatpush1.msra.mxu0 0.0
        %2009 = vmatprep.subr.mxu0 0.0
        %2010 = vmatpush1.msra.mxu0 0.0
        %2011 = vmatprep.subr.mxu0 0.0
        %2012 = vmatpush1.msra.mxu0 0.0
        %2013 = vmatprep.subr.mxu0 0.0
        %2014 = vmatpush1.msra.mxu0 0.0
        %2015 = vmatprep.subr.mxu0 0.0
        %2016 = vmatpush1.msra.mxu0 0.0
        %2017 = vmatprep.subr.mxu0 0.0
        %2018 = vmatpush1.msra.mxu0 0.0
        %2019 = vmatprep.subr.mxu0 0.0
        %2020 = vmatpush1.msra.mxu0 0.0
        %2021 = vmatprep.subr.mxu0 0.0
        %2022 = vmatpush1.msra.mxu0 0.0
        %2023 = vmatprep.mubr.f32.mxu0 0.0
        %2024 = vmatmul.mubr.f32.gmra.mrb[0].mxu0 %v1503
        %v2025 = vpop.f32.mrb[0].mxu0
        %v2026 = vadd.f32 0.0, %v2025
        %v2027 = vpop.f32.mrb[0].mxu0
        %v2028 = vadd.f32 0.0, %v2027
        %2029 = vmatprep.mubr.f32.mxu0 0.0
        %2030 = vmatmul.mubr.f32.gmra.mrb[0].mxu0 %v1506
        %v2031 = vpop.f32.mrb[0].mxu0
        %v2032 = vadd.f32 0.0, %v2031
        %v2033 = vpop.f32.mrb[0].mxu0
        %v2034 = vadd.f32 0.0, %v2033
        %2035 = vmatprep.mubr.f32.mxu0 0.0
        %2036 = vmatmul.mubr.f32.gmra.mrb[0].mxu0 %v1509
        %v2037 = vpop.f32.mrb[0].mxu0
        %v2038 = vadd.f32 0.0, %v2037
        %v2039 = vpop.f32.mrb[0].mxu0
        %v2040 = vadd.f32 0.0, %v2039
        %2041 = vmatprep.mubr.f32.mxu0 0.0
        %2042 = vmatmul.mubr.f32.gmra.mrb[0].mxu0 %v1512
        %v2043 = vpop.f32.mrb[0].mxu0
        %v2044 = vadd.f32 0.0, %v2043
        %v2045 = vpop.f32.mrb[0].mxu0
        %v2046 = vadd.f32 0.0, %v2045
        %2047 = vdwg.mxu0
        %v2048 = vmul.f32 %v1581, %v1581
        %v2049 = vmul.f32 %v1583, %v1583
        %v2050 = vmul.f32 %v1670, %v1670
        %v2051 = vmul.f32 %v1672, %v1672
        %v2052 = vmul.f32 %v1587, %v1587
        %v2053 = vmul.f32 %v1589, %v1589
        %v2054 = vmul.f32 %v1676, %v1676
        %v2055 = vmul.f32 %v1678, %v1678
        %v2056 = vmul.f32 %v1593, %v1593
        %v2057 = vmul.f32 %v1595, %v1595
        %v2058 = vmul.f32 %v1682, %v1682
        %v2059 = vmul.f32 %v1684, %v1684
        %v2060 = vmul.f32 %v1599, %v1599
        %v2061 = vmul.f32 %v1601, %v1601
        %v2062 = vmul.f32 %v1688, %v1688
        %v2063 = vmul.f32 %v1690, %v1690
        %v2064 = vmul.f32 %v1759, %v1759
        %v2065 = vmul.f32 %v1761, %v1761
        %v2066 = vmul.f32 %v1848, %v1848
        %v2067 = vmul.f32 %v1850, %v1850
        %v2068 = vmul.f32 %v1765, %v1765
        %v2069 = vmul.f32 %v1767, %v1767
        %v2070 = vmul.f32 %v1854, %v1854
        %v2071 = vmul.f32 %v1856, %v1856
        %v2072 = vmul.f32 %v1771, %v1771
        %v2073 = vmul.f32 %v1773, %v1773
        %v2074 = vmul.f32 %v1860, %v1860
        %v2075 = vmul.f32 %v1862, %v1862
        %v2076 = vmul.f32 %v1777, %v1777
        %v2077 = vmul.f32 %v1779, %v1779
        %v2078 = vmul.f32 %v1866, %v1866
        %v2079 = vmul.f32 %v1868, %v1868
        %v2080 = vadd.f32 %v2048, %v2064
        %v2081 = vadd.f32 %v2049, %v2065
        %v2082 = vadd.f32 %v2050, %v2066
        %v2083 = vadd.f32 %v2051, %v2067
        %v2084 = vadd.f32 %v2052, %v2068
        %v2085 = vadd.f32 %v2053, %v2069
        %v2086 = vadd.f32 %v2054, %v2070
        %v2087 = vadd.f32 %v2055, %v2071
        %v2088 = vadd.f32 %v2056, %v2072
        %v2089 = vadd.f32 %v2057, %v2073
        %v2090 = vadd.f32 %v2058, %v2074
        %v2091 = vadd.f32 %v2059, %v2075
        %v2092 = vadd.f32 %v2060, %v2076
        %v2093 = vadd.f32 %v2061, %v2077
        %v2094 = vadd.f32 %v2062, %v2078
        %v2095 = vadd.f32 %v2063, %v2079
        %v2096 = vmul.f32 %v1937, %v1937
        %v2097 = vmul.f32 %v1939, %v1939
        %v2098 = vmul.f32 %v2026, %v2026
        %v2099 = vmul.f32 %v2028, %v2028
        %v2100 = vmul.f32 %v1943, %v1943
        %v2101 = vmul.f32 %v1945, %v1945
        %v2102 = vmul.f32 %v2032, %v2032
        %v2103 = vmul.f32 %v2034, %v2034
        %v2104 = vmul.f32 %v1949, %v1949
        %v2105 = vmul.f32 %v1951, %v1951
        %v2106 = vmul.f32 %v2038, %v2038
        %v2107 = vmul.f32 %v2040, %v2040
        %v2108 = vmul.f32 %v1955, %v1955
        %v2109 = vmul.f32 %v1957, %v1957
        %v2110 = vmul.f32 %v2044, %v2044
        %v2111 = vmul.f32 %v2046, %v2046
        %v2112 = vadd.f32 %v2080, %v2096
        %v2113 = vadd.f32 %v2081, %v2097
        %v2114 = vadd.f32 %v2082, %v2098
        %v2115 = vadd.f32 %v2083, %v2099
        %v2116 = vadd.f32 %v2084, %v2100
        %v2117 = vadd.f32 %v2085, %v2101
        %v2118 = vadd.f32 %v2086, %v2102
        %v2119 = vadd.f32 %v2087, %v2103
        %v2120 = vadd.f32 %v2088, %v2104
        %v2121 = vadd.f32 %v2089, %v2105
        %v2122 = vadd.f32 %v2090, %v2106
        %v2123 = vadd.f32 %v2091, %v2107
        %v2124 = vadd.f32 %v2092, %v2108
        %v2125 = vadd.f32 %v2093, %v2109
        %v2126 = vadd.f32 %v2094, %v2110
        %v2127 = vadd.f32 %v2095, %v2111
        %v2128 = vmax.f32 %v2112, 3.5527137e-15
        %v2129 = vmax.f32 %v2113, 3.5527137e-15
        %v2130 = vmax.f32 %v2114, 3.5527137e-15
        %v2131 = vmax.f32 %v2115, 3.5527137e-15
        %v2132 = vmax.f32 %v2116, 3.5527137e-15
        %v2133 = vmax.f32 %v2117, 3.5527137e-15
        %v2134 = vmax.f32 %v2118, 3.5527137e-15
        %v2135 = vmax.f32 %v2119, 3.5527137e-15
        %v2136 = vmax.f32 %v2120, 3.5527137e-15
        %v2137 = vmax.f32 %v2121, 3.5527137e-15
        %v2138 = vmax.f32 %v2122, 3.5527137e-15
        %v2139 = vmax.f32 %v2123, 3.5527137e-15
        %v2140 = vmax.f32 %v2124, 3.5527137e-15
        %v2141 = vmax.f32 %v2125, 3.5527137e-15
        %v2142 = vmax.f32 %v2126, 3.5527137e-15
        %v2143 = vmax.f32 %v2127, 3.5527137e-15
        %v2144 = vrsqrt.pop %v2128
        %v2145 = vrsqrt.pop %v2129
        %v2146 = vrsqrt.pop %v2130
        %v2147 = vrsqrt.pop %v2131
        %v2148 = vrsqrt.pop %v2132
        %v2149 = vrsqrt.pop %v2133
        %v2150 = vrsqrt.pop %v2134
        %v2151 = vrsqrt.pop %v2135
        %v2152 = vrsqrt.pop %v2136
        %v2153 = vrsqrt.pop %v2137
        %v2154 = vrsqrt.pop %v2138
        %v2155 = vrsqrt.pop %v2139
        %v2156 = vrsqrt.pop %v2140
        %v2157 = vrsqrt.pop %v2141
        %v2158 = vrsqrt.pop %v2142
        %v2159 = vrsqrt.pop %v2143
        %v2160 = vmul.f32 %v2128, %v2144
        %v2161 = vmul.f32 %v2129, %v2145
        %v2162 = vmul.f32 %v2130, %v2146
        %v2163 = vmul.f32 %v2131, %v2147
        %v2164 = vmul.f32 %v2132, %v2148
        %v2165 = vmul.f32 %v2133, %v2149
        %v2166 = vmul.f32 %v2134, %v2150
        %v2167 = vmul.f32 %v2135, %v2151
        %v2168 = vmul.f32 %v2136, %v2152
        %v2169 = vmul.f32 %v2137, %v2153
        %v2170 = vmul.f32 %v2138, %v2154
        %v2171 = vmul.f32 %v2139, %v2155
        %v2172 = vmul.f32 %v2140, %v2156
        %v2173 = vmul.f32 %v2141, %v2157
        %v2174 = vmul.f32 %v2142, %v2158
        %v2175 = vmul.f32 %v2143, %v2159
        %v2176 = vadd.f32 %v2160, %v2164
        %v2177 = vadd.f32 %v2176, %v2168
        %v2178 = vadd.f32 %v2177, %v2172
        %v2179 = vrot.slane %v2178, 4
        %v2180 = vadd.f32 %v2178, %v2179
        %v2181 = vrot.slane %v2180, 2
        %v2182 = vadd.f32 %v2180, %v2181
        %v2183 = vrot.slane %v2182, 1
        %v2184 = vadd.f32 %v2182, %v2183
        %v2185 = vadd.f32 %v2161, %v2165
        %v2186 = vadd.f32 %v2185, %v2169
        %v2187 = vadd.f32 %v2186, %v2173
        %v2188 = vrot.slane %v2187, 4
        %v2189 = vadd.f32 %v2187, %v2188
        %v2190 = vrot.slane %v2189, 2
        %v2191 = vadd.f32 %v2189, %v2190
        %v2192 = vrot.slane %v2191, 1
        %v2193 = vadd.f32 %v2191, %v2192
        %v2194 = vadd.f32 %v2162, %v2166
        %v2195 = vadd.f32 %v2194, %v2170
        %v2196 = vadd.f32 %v2195, %v2174
        %v2197 = vrot.slane %v2196, 4
        %v2198 = vadd.f32 %v2196, %v2197
        %v2199 = vrot.slane %v2198, 2
        %v2200 = vadd.f32 %v2198, %v2199
        %v2201 = vrot.slane %v2200, 1
        %v2202 = vadd.f32 %v2200, %v2201
        %v2203 = vadd.f32 %v2163, %v2167
        %v2204 = vadd.f32 %v2203, %v2171
        %v2205 = vadd.f32 %v2204, %v2175
        %v2206 = vrot.slane %v2205, 4
        %v2207 = vadd.f32 %v2205, %v2206
        %v2208 = vrot.slane %v2207, 2
        %v2209 = vadd.f32 %v2207, %v2208
        %v2210 = vrot.slane %v2209, 1
        %v2211 = vadd.f32 %v2209, %v2210
        %v2212 = vmul.f32 %v2184, %v858
        %v2213 = vmul.f32 %v2193, %v858
        %v2214 = vmul.f32 %v2202, %v858
        %v2215 = vmul.f32 %v2211, %v858
        %v2216 = vsub.f32 %v2160, %v2212
        %v2217 = vsub.f32 %v2161, %v2213
        %v2218 = vsub.f32 %v2162, %v2214
        %v2219 = vsub.f32 %v2163, %v2215
        %v2220 = vsub.f32 %v2164, %v2212
        %v2221 = vsub.f32 %v2165, %v2213
        %v2222 = vsub.f32 %v2166, %v2214
        %v2223 = vsub.f32 %v2167, %v2215
        %v2224 = vsub.f32 %v2168, %v2212
        %v2225 = vsub.f32 %v2169, %v2213
        %v2226 = vsub.f32 %v2170, %v2214
        %v2227 = vsub.f32 %v2171, %v2215
        %v2228 = vsub.f32 %v2172, %v2212
        %v2229 = vsub.f32 %v2173, %v2213
        %v2230 = vsub.f32 %v2174, %v2214
        %v2231 = vsub.f32 %v2175, %v2215
        %v2232 = vmul.f32 %v2216, %v2216
        %v2233 = vmul.f32 %v2217, %v2217
        %v2234 = vmul.f32 %v2218, %v2218
        %v2235 = vmul.f32 %v2219, %v2219
        %v2236 = vmul.f32 %v2220, %v2220
        %v2237 = vmul.f32 %v2221, %v2221
        %v2238 = vmul.f32 %v2222, %v2222
        %v2239 = vmul.f32 %v2223, %v2223
        %v2240 = vmul.f32 %v2224, %v2224
        %v2241 = vmul.f32 %v2225, %v2225
        %v2242 = vmul.f32 %v2226, %v2226
        %v2243 = vmul.f32 %v2227, %v2227
        %v2244 = vmul.f32 %v2228, %v2228
        %v2245 = vmul.f32 %v2229, %v2229
        %v2246 = vmul.f32 %v2230, %v2230
        %v2247 = vmul.f32 %v2231, %v2231
        %v2248 = vadd.f32 %v2232, %v2236
        %v2249 = vadd.f32 %v2248, %v2240
        %v2250 = vadd.f32 %v2249, %v2244
        %v2251 = vrot.slane %v2250, 4
        %v2252 = vadd.f32 %v2250, %v2251
        %v2253 = vrot.slane %v2252, 2
        %v2254 = vadd.f32 %v2252, %v2253
        %v2255 = vrot.slane %v2254, 1
        %v2256 = vadd.f32 %v2254, %v2255
        %v2257 = vadd.f32 %v2233, %v2237
        %v2258 = vadd.f32 %v2257, %v2241
        %v2259 = vadd.f32 %v2258, %v2245
        %v2260 = vrot.slane %v2259, 4
        %v2261 = vadd.f32 %v2259, %v2260
        %v2262 = vrot.slane %v2261, 2
        %v2263 = vadd.f32 %v2261, %v2262
        %v2264 = vrot.slane %v2263, 1
        %v2265 = vadd.f32 %v2263, %v2264
        %v2266 = vadd.f32 %v2234, %v2238
        %v2267 = vadd.f32 %v2266, %v2242
        %v2268 = vadd.f32 %v2267, %v2246
        %v2269 = vrot.slane %v2268, 4
        %v2270 = vadd.f32 %v2268, %v2269
        %v2271 = vrot.slane %v2270, 2
        %v2272 = vadd.f32 %v2270, %v2271
        %v2273 = vrot.slane %v2272, 1
        %v2274 = vadd.f32 %v2272, %v2273
        %v2275 = vadd.f32 %v2235, %v2239
        %v2276 = vadd.f32 %v2275, %v2243
        %v2277 = vadd.f32 %v2276, %v2247
        %v2278 = vrot.slane %v2277, 4
        %v2279 = vadd.f32 %v2277, %v2278
        %v2280 = vrot.slane %v2279, 2
        %v2281 = vadd.f32 %v2279, %v2280
        %v2282 = vrot.slane %v2281, 1
        %v2283 = vadd.f32 %v2281, %v2282
        %v2284 = vmul.f32 %v2256, %v858
        %v2285 = vmul.f32 %v2265, %v858
        %v2286 = vmul.f32 %v2274, %v858
        %v2287 = vmul.f32 %v2283, %v858
        %v2288 = vadd.f32 %v2284, 1e-05
        %v2289 = vadd.f32 %v2285, 1e-05
        %v2290 = vadd.f32 %v2286, 1e-05
        %v2291 = vadd.f32 %v2287, 1e-05
        %v2292 = vrsqrt.pop %v2288
        %v2293 = vrsqrt.pop %v2289
        %v2294 = vrsqrt.pop %v2290
        %v2295 = vrsqrt.pop %v2291
        %v2296 = vmul.f32 %v2216, %v2292
        %v2297 = vmul.f32 %v2217, %v2293
        %v2298 = vmul.f32 %v2218, %v2294
        %v2299 = vmul.f32 %v2219, %v2295
        %v2300 = vmul.f32 %v2220, %v2292
        %v2301 = vmul.f32 %v2221, %v2293
        %v2302 = vmul.f32 %v2222, %v2294
        %v2303 = vmul.f32 %v2223, %v2295
        %v2304 = vmul.f32 %v2224, %v2292
        %v2305 = vmul.f32 %v2225, %v2293
        %v2306 = vmul.f32 %v2226, %v2294
        %v2307 = vmul.f32 %v2227, %v2295
        %v2308 = vmul.f32 %v2228, %v2292
        %v2309 = vmul.f32 %v2229, %v2293
        %v2310 = vmul.f32 %v2230, %v2294
        %v2311 = vmul.f32 %v2231, %v2295
        %2312 = vset.pattern.permute.xlu0 2
        %2313 = vperm.xlu0 %2312, %v354
        %v2314 = vpop.permute.xlu0 %2313
        %2316 = vset.pattern.permute.xlu0 2
        %2317 = vperm.xlu0 %2316, %v355
        %v2318 = vpop.permute.xlu0 %2317
        %2320 = vset.pattern.permute.xlu0 2
        %2321 = vperm.xlu0 %2320, %v356
        %v2322 = vpop.permute.xlu0 %2321
        %2324 = vset.pattern.permute.xlu0 2
        %2325 = vperm.xlu0 %2324, %v357
        %v2326 = vpop.permute.xlu0 %2325
        %v2328 = vmul.f32 %v2296, %v2314
        %v2329 = vmul.f32 %v2297, %v2314
        %v2330 = vmul.f32 %v2298, %v2314
        %v2331 = vmul.f32 %v2299, %v2314
        %v2332 = vmul.f32 %v2300, %v2318
        %v2333 = vmul.f32 %v2301, %v2318
        %v2334 = vmul.f32 %v2302, %v2318
        %v2335 = vmul.f32 %v2303, %v2318
        %v2336 = vmul.f32 %v2304, %v2322
        %v2337 = vmul.f32 %v2305, %v2322
        %v2338 = vmul.f32 %v2306, %v2322
        %v2339 = vmul.f32 %v2307, %v2322
        %v2340 = vmul.f32 %v2308, %v2326
        %v2341 = vmul.f32 %v2309, %v2326
        %v2342 = vmul.f32 %v2310, %v2326
        %v2343 = vmul.f32 %v2311, %v2326
        %2344 = vset.pattern.permute.xlu0 3
        %2345 = vperm.xlu0 %2344, %v354
        %v2346 = vpop.permute.xlu0 %2345
        %2348 = vset.pattern.permute.xlu0 3
        %2349 = vperm.xlu0 %2348, %v355
        %v2350 = vpop.permute.xlu0 %2349
        %2352 = vset.pattern.permute.xlu0 3
        %2353 = vperm.xlu0 %2352, %v356
        %v2354 = vpop.permute.xlu0 %2353
        %2356 = vset.pattern.permute.xlu0 3
        %2357 = vperm.xlu0 %2356, %v357
        %v2358 = vpop.permute.xlu0 %2357
        %v2360 = vadd.f32 %v2328, %v2346
        %v2361 = vadd.f32 %v2329, %v2346
        %v2362 = vadd.f32 %v2330, %v2346
        %v2363 = vadd.f32 %v2331, %v2346
        %v2364 = vadd.f32 %v2332, %v2350
        %v2365 = vadd.f32 %v2333, %v2350
        %v2366 = vadd.f32 %v2334, %v2350
        %v2367 = vadd.f32 %v2335, %v2350
        %v2368 = vadd.f32 %v2336, %v2354
        %v2369 = vadd.f32 %v2337, %v2354
        %v2370 = vadd.f32 %v2338, %v2354
        %v2371 = vadd.f32 %v2339, %v2354
        %v2372 = vadd.f32 %v2340, %v2358
        %v2373 = vadd.f32 %v2341, %v2358
        %v2374 = vadd.f32 %v2342, %v2358
        %v2375 = vadd.f32 %v2343, %v2358
        %v2376 = vmax.f32 %v2360, 0.0
        %v2377 = vmax.f32 %v2361, 0.0
        %v2378 = vmax.f32 %v2362, 0.0
        %v2379 = vmax.f32 %v2363, 0.0
        %v2380 = vmax.f32 %v2364, 0.0
        %v2381 = vmax.f32 %v2365, 0.0
        %v2382 = vmax.f32 %v2366, 0.0
        %v2383 = vmax.f32 %v2367, 0.0
        %v2384 = vmax.f32 %v2368, 0.0
        %v2385 = vmax.f32 %v2369, 0.0
        %v2386 = vmax.f32 %v2370, 0.0
        %v2387 = vmax.f32 %v2371, 0.0
        %v2388 = vmax.f32 %v2372, 0.0
        %v2389 = vmax.f32 %v2373, 0.0
        %v2390 = vmax.f32 %v2374, 0.0
        %v2391 = vmax.f32 %v2375, 0.0
        %v2392 = vmul.f32 %v2376, %v2144
        %v2393 = vmul.f32 %v2377, %v2145
        %v2394 = vmul.f32 %v2378, %v2146
        %v2395 = vmul.f32 %v2379, %v2147
        %v2396 = vmul.f32 %v2380, %v2148
        %v2397 = vmul.f32 %v2381, %v2149
        %v2398 = vmul.f32 %v2382, %v2150
        %v2399 = vmul.f32 %v2383, %v2151
        %v2400 = vmul.f32 %v2384, %v2152
        %v2401 = vmul.f32 %v2385, %v2153
        %v2402 = vmul.f32 %v2386, %v2154
        %v2403 = vmul.f32 %v2387, %v2155
        %v2404 = vmul.f32 %v2388, %v2156
        %v2405 = vmul.f32 %v2389, %v2157
        %v2406 = vmul.f32 %v2390, %v2158
        %v2407 = vmul.f32 %v2391, %v2159
        %v2408 = vmul.f32 %v1581, %v2392
        %v2409 = vmul.f32 %v1583, %v2393
        %v2410 = vmul.f32 %v1670, %v2394
        %v2411 = vmul.f32 %v1672, %v2395
        %v2412 = vmul.f32 %v1587, %v2396
        %v2413 = vmul.f32 %v1589, %v2397
        %v2414 = vmul.f32 %v1676, %v2398
        %v2415 = vmul.f32 %v1678, %v2399
        %v2416 = vmul.f32 %v1593, %v2400
        %v2417 = vmul.f32 %v1595, %v2401
        %v2418 = vmul.f32 %v1682, %v2402
        %v2419 = vmul.f32 %v1684, %v2403
        %v2420 = vmul.f32 %v1599, %v2404
        %v2421 = vmul.f32 %v1601, %v2405
        %v2422 = vmul.f32 %v1688, %v2406
        %v2423 = vmul.f32 %v1690, %v2407
        %v2424 = vmul.f32 %v1759, %v2392
        %v2425 = vmul.f32 %v1761, %v2393
        %v2426 = vmul.f32 %v1848, %v2394
        %v2427 = vmul.f32 %v1850, %v2395
        %v2428 = vmul.f32 %v1765, %v2396
        %v2429 = vmul.f32 %v1767, %v2397
        %v2430 = vmul.f32 %v1854, %v2398
        %v2431 = vmul.f32 %v1856, %v2399
        %v2432 = vmul.f32 %v1771, %v2400
        %v2433 = vmul.f32 %v1773, %v2401
        %v2434 = vmul.f32 %v1860, %v2402
        %v2435 = vmul.f32 %v1862, %v2403
        %v2436 = vmul.f32 %v1777, %v2404
        %v2437 = vmul.f32 %v1779, %v2405
        %v2438 = vmul.f32 %v1866, %v2406
        %v2439 = vmul.f32 %v1868, %v2407
        %v2440 = vmul.f32 %v1937, %v2392
        %v2441 = vmul.f32 %v1939, %v2393
        %v2442 = vmul.f32 %v2026, %v2394
        %v2443 = vmul.f32 %v2028, %v2395
        %v2444 = vmul.f32 %v1943, %v2396
        %v2445 = vmul.f32 %v1945, %v2397
        %v2446 = vmul.f32 %v2032, %v2398
        %v2447 = vmul.f32 %v2034, %v2399
        %v2448 = vmul.f32 %v1949, %v2400
        %v2449 = vmul.f32 %v1951, %v2401
        %v2450 = vmul.f32 %v2038, %v2402
        %v2451 = vmul.f32 %v2040, %v2403
        %v2452 = vmul.f32 %v1955, %v2404
        %v2453 = vmul.f32 %v1957, %v2405
        %v2454 = vmul.f32 %v2044, %v2406
        %v2455 = vmul.f32 %v2046, %v2407
        %v2457 = vsel %vm1075, %v370, 0
        %v2460 = vsel %vm1075, %v371, 0
        %2462 = vmatprep.subr.mxu0 %v2409
        %2463 = vmatpush1.msra.mxu0 %v2408
        %2464 = vmatprep.subr.mxu0 %v2413
        %2465 = vmatpush1.msra.mxu0 %v2412
        %2466 = vmatprep.subr.mxu0 %v2417
        %2467 = vmatpush1.msra.mxu0 %v2416
        %2468 = vmatprep.subr.mxu0 %v2421
        %2469 = vmatpush1.msra.mxu0 %v2420
        %2470 = vmatprep.subr.mxu0 0.0
        %2471 = vmatpush1.msra.mxu0 0.0
        %2472 = vmatprep.subr.mxu0 0.0
        %2473 = vmatpush1.msra.mxu0 0.0
        %2474 = vmatprep.subr.mxu0 0.0
        %2475 = vmatpush1.msra.mxu0 0.0
        %2476 = vmatprep.subr.mxu0 0.0
        %2477 = vmatpush1.msra.mxu0 0.0
        %2478 = vmatprep.subr.mxu0 0.0
        %2479 = vmatpush1.msra.mxu0 0.0
        %2480 = vmatprep.subr.mxu0 0.0
        %2481 = vmatpush1.msra.mxu0 0.0
        %2482 = vmatprep.subr.mxu0 0.0
        %2483 = vmatpush1.msra.mxu0 0.0
        %2484 = vmatprep.subr.mxu0 0.0
        %2485 = vmatpush1.msra.mxu0 0.0
        %2486 = vmatprep.subr.mxu0 0.0
        %2487 = vmatpush1.msra.mxu0 0.0
        %2488 = vmatprep.subr.mxu0 0.0
        %2489 = vmatpush1.msra.mxu0 0.0
        %2490 = vmatprep.subr.mxu0 0.0
        %2491 = vmatpush1.msra.mxu0 0.0
        %2492 = vmatprep.subr.mxu0 0.0
        %2493 = vmatpush1.msra.mxu0 0.0
        %2494 = vmatprep.subr.mxu0 0.0
        %2495 = vmatpush1.msra.mxu0 0.0
        %2496 = vmatprep.subr.mxu0 0.0
        %2497 = vmatpush1.msra.mxu0 0.0
        %2498 = vmatprep.subr.mxu0 0.0
        %2499 = vmatpush1.msra.mxu0 0.0
        %2500 = vmatprep.subr.mxu0 0.0
        %2501 = vmatpush1.msra.mxu0 0.0
        %2502 = vmatprep.subr.mxu0 0.0
        %2503 = vmatpush1.msra.mxu0 0.0
        %2504 = vmatprep.subr.mxu0 0.0
        %2505 = vmatpush1.msra.mxu0 0.0
        %2506 = vmatprep.subr.mxu0 0.0
        %2507 = vmatpush1.msra.mxu0 0.0
        %2508 = vmatprep.subr.mxu0 0.0
        %2509 = vmatpush1.msra.mxu0 0.0
        %2510 = vmatprep.subr.mxu0 0.0
        %2511 = vmatpush1.msra.mxu0 0.0
        %2512 = vmatprep.subr.mxu0 0.0
        %2513 = vmatpush1.msra.mxu0 0.0
        %2514 = vmatprep.subr.mxu0 0.0
        %2515 = vmatpush1.msra.mxu0 0.0
        %2516 = vmatprep.subr.mxu0 0.0
        %2517 = vmatpush1.msra.mxu0 0.0
        %2518 = vmatprep.subr.mxu0 0.0
        %2519 = vmatpush1.msra.mxu0 0.0
        %2520 = vmatprep.subr.mxu0 0.0
        %2521 = vmatpush1.msra.mxu0 0.0
        %2522 = vmatprep.subr.mxu0 0.0
        %2523 = vmatpush1.msra.mxu0 0.0
        %2524 = vmatprep.subr.mxu0 0.0
        %2525 = vmatpush1.msra.mxu0 0.0
        %2526 = vmatprep.mubr.f32.mxu0 0.0
        %2527 = vmatmul.mubr.f32.gmra.mrb[0].mxu0 %v2457
        %v2528 = vpop.f32.mrb[0].mxu0
        %v2529 = vadd.f32 0.0, %v2528
        %v2530 = vpop.f32.mrb[0].mxu0
        %v2531 = vadd.f32 0.0, %v2530
        %2532 = vmatprep.mubr.f32.mxu0 0.0
        %2533 = vmatmul.mubr.f32.gmra.mrb[0].mxu0 %v2460
        %v2534 = vpop.f32.mrb[0].mxu0
        %v2535 = vadd.f32 0.0, %v2534
        %v2536 = vpop.f32.mrb[0].mxu0
        %v2537 = vadd.f32 0.0, %v2536
        %2538 = vdwg.mxu0
        %2539 = vmatprep.subr.mxu0 %v2411
        %2540 = vmatpush1.msra.mxu0 %v2410
        %2541 = vmatprep.subr.mxu0 %v2415
        %2542 = vmatpush1.msra.mxu0 %v2414
        %2543 = vmatprep.subr.mxu0 %v2419
        %2544 = vmatpush1.msra.mxu0 %v2418
        %2545 = vmatprep.subr.mxu0 %v2423
        %2546 = vmatpush1.msra.mxu0 %v2422
        %2547 = vmatprep.subr.mxu0 0.0
        %2548 = vmatpush1.msra.mxu0 0.0
        %2549 = vmatprep.subr.mxu0 0.0
        %2550 = vmatpush1.msra.mxu0 0.0
        %2551 = vmatprep.subr.mxu0 0.0
        %2552 = vmatpush1.msra.mxu0 0.0
        %2553 = vmatprep.subr.mxu0 0.0
        %2554 = vmatpush1.msra.mxu0 0.0
        %2555 = vmatprep.subr.mxu0 0.0
        %2556 = vmatpush1.msra.mxu0 0.0
        %2557 = vmatprep.subr.mxu0 0.0
        %2558 = vmatpush1.msra.mxu0 0.0
        %2559 = vmatprep.subr.mxu0 0.0
        %2560 = vmatpush1.msra.mxu0 0.0
        %2561 = vmatprep.subr.mxu0 0.0
        %2562 = vmatpush1.msra.mxu0 0.0
        %2563 = vmatprep.subr.mxu0 0.0
        %2564 = vmatpush1.msra.mxu0 0.0
        %2565 = vmatprep.subr.mxu0 0.0
        %2566 = vmatpush1.msra.mxu0 0.0
        %2567 = vmatprep.subr.mxu0 0.0
        %2568 = vmatpush1.msra.mxu0 0.0
        %2569 = vmatprep.subr.mxu0 0.0
        %2570 = vmatpush1.msra.mxu0 0.0
        %2571 = vmatprep.subr.mxu0 0.0
        %2572 = vmatpush1.msra.mxu0 0.0
        %2573 = vmatprep.subr.mxu0 0.0
        %2574 = vmatpush1.msra.mxu0 0.0
        %2575 = vmatprep.subr.mxu0 0.0
        %2576 = vmatpush1.msra.mxu0 0.0
        %2577 = vmatprep.subr.mxu0 0.0
        %2578 = vmatpush1.msra.mxu0 0.0
        %2579 = vmatprep.subr.mxu0 0.0
        %2580 = vmatpush1.msra.mxu0 0.0
        %2581 = vmatprep.subr.mxu0 0.0
        %2582 = vmatpush1.msra.mxu0 0.0
        %2583 = vmatprep.subr.mxu0 0.0
        %2584 = vmatpush1.msra.mxu0 0.0
        %2585 = vmatprep.subr.mxu0 0.0
        %2586 = vmatpush1.msra.mxu0 0.0
        %2587 = vmatprep.subr.mxu0 0.0
        %2588 = vmatpush1.msra.mxu0 0.0
        %2589 = vmatprep.subr.mxu0 0.0
        %2590 = vmatpush1.msra.mxu0 0.0
        %2591 = vmatprep.subr.mxu0 0.0
        %2592 = vmatpush1.msra.mxu0 0.0
        %2593 = vmatprep.subr.mxu0 0.0
        %2594 = vmatpush1.msra.mxu0 0.0
        %2595 = vmatprep.subr.mxu0 0.0
        %2596 = vmatpush1.msra.mxu0 0.0
        %2597 = vmatprep.subr.mxu0 0.0
        %2598 = vmatpush1.msra.mxu0 0.0
        %2599 = vmatprep.subr.mxu0 0.0
        %2600 = vmatpush1.msra.mxu0 0.0
        %2601 = vmatprep.subr.mxu0 0.0
        %2602 = vmatpush1.msra.mxu0 0.0
        %2603 = vmatprep.mubr.f32.mxu0 0.0
        %2604 = vmatmul.mubr.f32.gmra.mrb[0].mxu0 %v2457
        %v2605 = vpop.f32.mrb[0].mxu0
        %v2606 = vadd.f32 0.0, %v2605
        %v2607 = vpop.f32.mrb[0].mxu0
        %v2608 = vadd.f32 0.0, %v2607
        %2609 = vmatprep.mubr.f32.mxu0 0.0
        %2610 = vmatmul.mubr.f32.gmra.mrb[0].mxu0 %v2460
        %v2611 = vpop.f32.mrb[0].mxu0
        %v2612 = vadd.f32 0.0, %v2611
        %v2613 = vpop.f32.mrb[0].mxu0
        %v2614 = vadd.f32 0.0, %v2613
        %2615 = vdwg.mxu0
        %2616 = vmatprep.subr.mxu0 %v2425
        %2617 = vmatpush1.msra.mxu0 %v2424
        %2618 = vmatprep.subr.mxu0 %v2429
        %2619 = vmatpush1.msra.mxu0 %v2428
        %2620 = vmatprep.subr.mxu0 %v2433
        %2621 = vmatpush1.msra.mxu0 %v2432
        %2622 = vmatprep.subr.mxu0 %v2437
        %2623 = vmatpush1.msra.mxu0 %v2436
        %2624 = vmatprep.subr.mxu0 0.0
        %2625 = vmatpush1.msra.mxu0 0.0
        %2626 = vmatprep.subr.mxu0 0.0
        %2627 = vmatpush1.msra.mxu0 0.0
        %2628 = vmatprep.subr.mxu0 0.0
        %2629 = vmatpush1.msra.mxu0 0.0
        %2630 = vmatprep.subr.mxu0 0.0
        %2631 = vmatpush1.msra.mxu0 0.0
        %2632 = vmatprep.subr.mxu0 0.0
        %2633 = vmatpush1.msra.mxu0 0.0
        %2634 = vmatprep.subr.mxu0 0.0
        %2635 = vmatpush1.msra.mxu0 0.0
        %2636 = vmatprep.subr.mxu0 0.0
        %2637 = vmatpush1.msra.mxu0 0.0
        %2638 = vmatprep.subr.mxu0 0.0
        %2639 = vmatpush1.msra.mxu0 0.0
        %2640 = vmatprep.subr.mxu0 0.0
        %2641 = vmatpush1.msra.mxu0 0.0
        %2642 = vmatprep.subr.mxu0 0.0
        %2643 = vmatpush1.msra.mxu0 0.0
        %2644 = vmatprep.subr.mxu0 0.0
        %2645 = vmatpush1.msra.mxu0 0.0
        %2646 = vmatprep.subr.mxu0 0.0
        %2647 = vmatpush1.msra.mxu0 0.0
        %2648 = vmatprep.subr.mxu0 0.0
        %2649 = vmatpush1.msra.mxu0 0.0
        %2650 = vmatprep.subr.mxu0 0.0
        %2651 = vmatpush1.msra.mxu0 0.0
        %2652 = vmatprep.subr.mxu0 0.0
        %2653 = vmatpush1.msra.mxu0 0.0
        %2654 = vmatprep.subr.mxu0 0.0
        %2655 = vmatpush1.msra.mxu0 0.0
        %2656 = vmatprep.subr.mxu0 0.0
        %2657 = vmatpush1.msra.mxu0 0.0
        %2658 = vmatprep.subr.mxu0 0.0
        %2659 = vmatpush1.msra.mxu0 0.0
        %2660 = vmatprep.subr.mxu0 0.0
        %2661 = vmatpush1.msra.mxu0 0.0
        %2662 = vmatprep.subr.mxu0 0.0
        %2663 = vmatpush1.msra.mxu0 0.0
        %2664 = vmatprep.subr.mxu0 0.0
        %2665 = vmatpush1.msra.mxu0 0.0
        %2666 = vmatprep.subr.mxu0 0.0
        %2667 = vmatpush1.msra.mxu0 0.0
        %2668 = vmatprep.subr.mxu0 0.0
        %2669 = vmatpush1.msra.mxu0 0.0
        %2670 = vmatprep.subr.mxu0 0.0
        %2671 = vmatpush1.msra.mxu0 0.0
        %2672 = vmatprep.subr.mxu0 0.0
        %2673 = vmatpush1.msra.mxu0 0.0
        %2674 = vmatprep.subr.mxu0 0.0
        %2675 = vmatpush1.msra.mxu0 0.0
        %2676 = vmatprep.subr.mxu0 0.0
        %2677 = vmatpush1.msra.mxu0 0.0
        %2678 = vmatprep.subr.mxu0 0.0
        %2679 = vmatpush1.msra.mxu0 0.0
        %2680 = vmatprep.mubr.f32.mxu0 0.0
        %2681 = vmatmul.mubr.f32.gmra.mrb[0].mxu0 %v2457
        %v2682 = vpop.f32.mrb[0].mxu0
        %v2683 = vadd.f32 0.0, %v2682
        %v2684 = vpop.f32.mrb[0].mxu0
        %v2685 = vadd.f32 0.0, %v2684
        %2686 = vmatprep.mubr.f32.mxu0 0.0
        %2687 = vmatmul.mubr.f32.gmra.mrb[0].mxu0 %v2460
        %v2688 = vpop.f32.mrb[0].mxu0
        %v2689 = vadd.f32 0.0, %v2688
        %v2690 = vpop.f32.mrb[0].mxu0
        %v2691 = vadd.f32 0.0, %v2690
        %2692 = vdwg.mxu0
        %2693 = vmatprep.subr.mxu0 %v2427
        %2694 = vmatpush1.msra.mxu0 %v2426
        %2695 = vmatprep.subr.mxu0 %v2431
        %2696 = vmatpush1.msra.mxu0 %v2430
        %2697 = vmatprep.subr.mxu0 %v2435
        %2698 = vmatpush1.msra.mxu0 %v2434
        %2699 = vmatprep.subr.mxu0 %v2439
        %2700 = vmatpush1.msra.mxu0 %v2438
        %2701 = vmatprep.subr.mxu0 0.0
        %2702 = vmatpush1.msra.mxu0 0.0
        %2703 = vmatprep.subr.mxu0 0.0
        %2704 = vmatpush1.msra.mxu0 0.0
        %2705 = vmatprep.subr.mxu0 0.0
        %2706 = vmatpush1.msra.mxu0 0.0
        %2707 = vmatprep.subr.mxu0 0.0
        %2708 = vmatpush1.msra.mxu0 0.0
        %2709 = vmatprep.subr.mxu0 0.0
        %2710 = vmatpush1.msra.mxu0 0.0
        %2711 = vmatprep.subr.mxu0 0.0
        %2712 = vmatpush1.msra.mxu0 0.0
        %2713 = vmatprep.subr.mxu0 0.0
        %2714 = vmatpush1.msra.mxu0 0.0
        %2715 = vmatprep.subr.mxu0 0.0
        %2716 = vmatpush1.msra.mxu0 0.0
        %2717 = vmatprep.subr.mxu0 0.0
        %2718 = vmatpush1.msra.mxu0 0.0
        %2719 = vmatprep.subr.mxu0 0.0
        %2720 = vmatpush1.msra.mxu0 0.0
        %2721 = vmatprep.subr.mxu0 0.0
        %2722 = vmatpush1.msra.mxu0 0.0
        %2723 = vmatprep.subr.mxu0 0.0
        %2724 = vmatpush1.msra.mxu0 0.0
        %2725 = vmatprep.subr.mxu0 0.0
        %2726 = vmatpush1.msra.mxu0 0.0
        %2727 = vmatprep.subr.mxu0 0.0
        %2728 = vmatpush1.msra.mxu0 0.0
        %2729 = vmatprep.subr.mxu0 0.0
        %2730 = vmatpush1.msra.mxu0 0.0
        %2731 = vmatprep.subr.mxu0 0.0
        %2732 = vmatpush1.msra.mxu0 0.0
        %2733 = vmatprep.subr.mxu0 0.0
        %2734 = vmatpush1.msra.mxu0 0.0
        %2735 = vmatprep.subr.mxu0 0.0
        %2736 = vmatpush1.msra.mxu0 0.0
        %2737 = vmatprep.subr.mxu0 0.0
        %2738 = vmatpush1.msra.mxu0 0.0
        %2739 = vmatprep.subr.mxu0 0.0
        %2740 = vmatpush1.msra.mxu0 0.0
        %2741 = vmatprep.subr.mxu0 0.0
        %2742 = vmatpush1.msra.mxu0 0.0
        %2743 = vmatprep.subr.mxu0 0.0
        %2744 = vmatpush1.msra.mxu0 0.0
        %2745 = vmatprep.subr.mxu0 0.0
        %2746 = vmatpush1.msra.mxu0 0.0
        %2747 = vmatprep.subr.mxu0 0.0
        %2748 = vmatpush1.msra.mxu0 0.0
        %2749 = vmatprep.subr.mxu0 0.0
        %2750 = vmatpush1.msra.mxu0 0.0
        %2751 = vmatprep.subr.mxu0 0.0
        %2752 = vmatpush1.msra.mxu0 0.0
        %2753 = vmatprep.subr.mxu0 0.0
        %2754 = vmatpush1.msra.mxu0 0.0
        %2755 = vmatprep.subr.mxu0 0.0
        %2756 = vmatpush1.msra.mxu0 0.0
        %2757 = vmatprep.mubr.f32.mxu0 0.0
        %2758 = vmatmul.mubr.f32.gmra.mrb[0].mxu0 %v2457
        %v2759 = vpop.f32.mrb[0].mxu0
        %v2760 = vadd.f32 0.0, %v2759
        %v2761 = vpop.f32.mrb[0].mxu0
        %v2762 = vadd.f32 0.0, %v2761
        %2763 = vmatprep.mubr.f32.mxu0 0.0
        %2764 = vmatmul.mubr.f32.gmra.mrb[0].mxu0 %v2460
        %v2765 = vpop.f32.mrb[0].mxu0
        %v2766 = vadd.f32 0.0, %v2765
        %v2767 = vpop.f32.mrb[0].mxu0
        %v2768 = vadd.f32 0.0, %v2767
        %2769 = vdwg.mxu0
        %2770 = vmatprep.subr.mxu0 %v2441
        %2771 = vmatpush1.msra.mxu0 %v2440
        %2772 = vmatprep.subr.mxu0 %v2445
        %2773 = vmatpush1.msra.mxu0 %v2444
        %2774 = vmatprep.subr.mxu0 %v2449
        %2775 = vmatpush1.msra.mxu0 %v2448
        %2776 = vmatprep.subr.mxu0 %v2453
        %2777 = vmatpush1.msra.mxu0 %v2452
        %2778 = vmatprep.subr.mxu0 0.0
        %2779 = vmatpush1.msra.mxu0 0.0
        %2780 = vmatprep.subr.mxu0 0.0
        %2781 = vmatpush1.msra.mxu0 0.0
        %2782 = vmatprep.subr.mxu0 0.0
        %2783 = vmatpush1.msra.mxu0 0.0
        %2784 = vmatprep.subr.mxu0 0.0
        %2785 = vmatpush1.msra.mxu0 0.0
        %2786 = vmatprep.subr.mxu0 0.0
        %2787 = vmatpush1.msra.mxu0 0.0
        %2788 = vmatprep.subr.mxu0 0.0
        %2789 = vmatpush1.msra.mxu0 0.0
        %2790 = vmatprep.subr.mxu0 0.0
        %2791 = vmatpush1.msra.mxu0 0.0
        %2792 = vmatprep.subr.mxu0 0.0
        %2793 = vmatpush1.msra.mxu0 0.0
        %2794 = vmatprep.subr.mxu0 0.0
        %2795 = vmatpush1.msra.mxu0 0.0
        %2796 = vmatprep.subr.mxu0 0.0
        %2797 = vmatpush1.msra.mxu0 0.0
        %2798 = vmatprep.subr.mxu0 0.0
        %2799 = vmatpush1.msra.mxu0 0.0
        %2800 = vmatprep.subr.mxu0 0.0
        %2801 = vmatpush1.msra.mxu0 0.0
        %2802 = vmatprep.subr.mxu0 0.0
        %2803 = vmatpush1.msra.mxu0 0.0
        %2804 = vmatprep.subr.mxu0 0.0
        %2805 = vmatpush1.msra.mxu0 0.0
        %2806 = vmatprep.subr.mxu0 0.0
        %2807 = vmatpush1.msra.mxu0 0.0
        %2808 = vmatprep.subr.mxu0 0.0
        %2809 = vmatpush1.msra.mxu0 0.0
        %2810 = vmatprep.subr.mxu0 0.0
        %2811 = vmatpush1.msra.mxu0 0.0
        %2812 = vmatprep.subr.mxu0 0.0
        %2813 = vmatpush1.msra.mxu0 0.0
        %2814 = vmatprep.subr.mxu0 0.0
        %2815 = vmatpush1.msra.mxu0 0.0
        %2816 = vmatprep.subr.mxu0 0.0
        %2817 = vmatpush1.msra.mxu0 0.0
        %2818 = vmatprep.subr.mxu0 0.0
        %2819 = vmatpush1.msra.mxu0 0.0
        %2820 = vmatprep.subr.mxu0 0.0
        %2821 = vmatpush1.msra.mxu0 0.0
        %2822 = vmatprep.subr.mxu0 0.0
        %2823 = vmatpush1.msra.mxu0 0.0
        %2824 = vmatprep.subr.mxu0 0.0
        %2825 = vmatpush1.msra.mxu0 0.0
        %2826 = vmatprep.subr.mxu0 0.0
        %2827 = vmatpush1.msra.mxu0 0.0
        %2828 = vmatprep.subr.mxu0 0.0
        %2829 = vmatpush1.msra.mxu0 0.0
        %2830 = vmatprep.subr.mxu0 0.0
        %2831 = vmatpush1.msra.mxu0 0.0
        %2832 = vmatprep.subr.mxu0 0.0
        %2833 = vmatpush1.msra.mxu0 0.0
        %2834 = vmatprep.mubr.f32.mxu0 0.0
        %2835 = vmatmul.mubr.f32.gmra.mrb[0].mxu0 %v2457
        %v2836 = vpop.f32.mrb[0].mxu0
        %v2837 = vadd.f32 0.0, %v2836
        %v2838 = vpop.f32.mrb[0].mxu0
        %v2839 = vadd.f32 0.0, %v2838
        %2840 = vmatprep.mubr.f32.mxu0 0.0
        %2841 = vmatmul.mubr.f32.gmra.mrb[0].mxu0 %v2460
        %v2842 = vpop.f32.mrb[0].mxu0
        %v2843 = vadd.f32 0.0, %v2842
        %v2844 = vpop.f32.mrb[0].mxu0
        %v2845 = vadd.f32 0.0, %v2844
        %2846 = vdwg.mxu0
        %2847 = vmatprep.subr.mxu0 %v2443
        %2848 = vmatpush1.msra.mxu0 %v2442
        %2849 = vmatprep.subr.mxu0 %v2447
        %2850 = vmatpush1.msra.mxu0 %v2446
        %2851 = vmatprep.subr.mxu0 %v2451
        %2852 = vmatpush1.msra.mxu0 %v2450
        %2853 = vmatprep.subr.mxu0 %v2455
        %2854 = vmatpush1.msra.mxu0 %v2454
        %2855 = vmatprep.subr.mxu0 0.0
        %2856 = vmatpush1.msra.mxu0 0.0
        %2857 = vmatprep.subr.mxu0 0.0
        %2858 = vmatpush1.msra.mxu0 0.0
        %2859 = vmatprep.subr.mxu0 0.0
        %2860 = vmatpush1.msra.mxu0 0.0
        %2861 = vmatprep.subr.mxu0 0.0
        %2862 = vmatpush1.msra.mxu0 0.0
        %2863 = vmatprep.subr.mxu0 0.0
        %2864 = vmatpush1.msra.mxu0 0.0
        %2865 = vmatprep.subr.mxu0 0.0
        %2866 = vmatpush1.msra.mxu0 0.0
        %2867 = vmatprep.subr.mxu0 0.0
        %2868 = vmatpush1.msra.mxu0 0.0
        %2869 = vmatprep.subr.mxu0 0.0
        %2870 = vmatpush1.msra.mxu0 0.0
        %2871 = vmatprep.subr.mxu0 0.0
        %2872 = vmatpush1.msra.mxu0 0.0
        %2873 = vmatprep.subr.mxu0 0.0
        %2874 = vmatpush1.msra.mxu0 0.0
        %2875 = vmatprep.subr.mxu0 0.0
        %2876 = vmatpush1.msra.mxu0 0.0
        %2877 = vmatprep.subr.mxu0 0.0
        %2878 = vmatpush1.msra.mxu0 0.0
        %2879 = vmatprep.subr.mxu0 0.0
        %2880 = vmatpush1.msra.mxu0 0.0
        %2881 = vmatprep.subr.mxu0 0.0
        %2882 = vmatpush1.msra.mxu0 0.0
        %2883 = vmatprep.subr.mxu0 0.0
        %2884 = vmatpush1.msra.mxu0 0.0
        %2885 = vmatprep.subr.mxu0 0.0
        %2886 = vmatpush1.msra.mxu0 0.0
        %2887 = vmatprep.subr.mxu0 0.0
        %2888 = vmatpush1.msra.mxu0 0.0
        %2889 = vmatprep.subr.mxu0 0.0
        %2890 = vmatpush1.msra.mxu0 0.0
        %2891 = vmatprep.subr.mxu0 0.0
        %2892 = vmatpush1.msra.mxu0 0.0
        %2893 = vmatprep.subr.mxu0 0.0
        %2894 = vmatpush1.msra.mxu0 0.0
        %2895 = vmatprep.subr.mxu0 0.0
        %2896 = vmatpush1.msra.mxu0 0.0
        %2897 = vmatprep.subr.mxu0 0.0
        %2898 = vmatpush1.msra.mxu0 0.0
        %2899 = vmatprep.subr.mxu0 0.0
        %2900 = vmatpush1.msra.mxu0 0.0
        %2901 = vmatprep.subr.mxu0 0.0
        %2902 = vmatpush1.msra.mxu0 0.0
        %2903 = vmatprep.subr.mxu0 0.0
        %2904 = vmatpush1.msra.mxu0 0.0
        %2905 = vmatprep.subr.mxu0 0.0
        %2906 = vmatpush1.msra.mxu0 0.0
        %2907 = vmatprep.subr.mxu0 0.0
        %2908 = vmatpush1.msra.mxu0 0.0
        %2909 = vmatprep.subr.mxu0 0.0
        %2910 = vmatpush1.msra.mxu0 0.0
        %2911 = vmatprep.mubr.f32.mxu0 0.0
        %2912 = vmatmul.mubr.f32.gmra.mrb[0].mxu0 %v2457
        %v2913 = vpop.f32.mrb[0].mxu0
        %v2914 = vadd.f32 0.0, %v2913
        %v2915 = vpop.f32.mrb[0].mxu0
        %v2916 = vadd.f32 0.0, %v2915
        %2917 = vmatprep.mubr.f32.mxu0 0.0
        %2918 = vmatmul.mubr.f32.gmra.mrb[0].mxu0 %v2460
        %v2919 = vpop.f32.mrb[0].mxu0
        %v2920 = vadd.f32 0.0, %v2919
        %v2921 = vpop.f32.mrb[0].mxu0
        %v2922 = vadd.f32 0.0, %v2921
        %2923 = vdwg.mxu0
        %2924 = vst [vmem:[%s347] sm:$0xff] %v2529
        %2925 = vst [vmem:[%s347 + $0x8] sm:$0xff] %v2531
        %2926 = vst [vmem:[%s347 + $0x10] sm:$0xff] %v2606
        %2927 = vst [vmem:[%s347 + $0x18] sm:$0xff] %v2608
        %2928 = vst [vmem:[%s347 + $0x20] sm:$0xff] %v2535
        %2929 = vst [vmem:[%s347 + $0x28] sm:$0xff] %v2537
        %2930 = vst [vmem:[%s347 + $0x30] sm:$0xff] %v2612
        %2931 = vst [vmem:[%s347 + $0x38] sm:$0xff] %v2614
        %s2932 = scalar_lea.vmem %s347, 64 [#allocation8]
        %2933 = vst [vmem:[%s2932] sm:$0xff] %v2683
        %2934 = vst [vmem:[%s2932 + $0x8] sm:$0xff] %v2685
        %2935 = vst [vmem:[%s2932 + $0x10] sm:$0xff] %v2760
        %2936 = vst [vmem:[%s2932 + $0x18] sm:$0xff] %v2762
        %2937 = vst [vmem:[%s2932 + $0x20] sm:$0xff] %v2689
        %2938 = vst [vmem:[%s2932 + $0x28] sm:$0xff] %v2691
        %2939 = vst [vmem:[%s2932 + $0x30] sm:$0xff] %v2766
        %2940 = vst [vmem:[%s2932 + $0x38] sm:$0xff] %v2768
        %s2941 = scalar_lea.vmem %s347, 128 [#allocation8]
        %2942 = vst [vmem:[%s2941] sm:$0xff] %v2837
        %2943 = vst [vmem:[%s2941 + $0x8] sm:$0xff] %v2839
        %2944 = vst [vmem:[%s2941 + $0x10] sm:$0xff] %v2914
        %2945 = vst [vmem:[%s2941 + $0x18] sm:$0xff] %v2916
        %2946 = vst [vmem:[%s2941 + $0x20] sm:$0xff] %v2843
        %2947 = vst [vmem:[%s2941 + $0x28] sm:$0xff] %v2845
        %2948 = vst [vmem:[%s2941 + $0x30] sm:$0xff] %v2920
        %2949 = vst [vmem:[%s2941 + $0x38] sm:$0xff] %v2922
        %s2950 = sand.u32 %s175, 1
        %s2951 = scalar_lea.sflag [#allocation4], %s2950
        %s2952 = sand.u32 %s175, 1
        %s2953 = smul.addr %s2952, 64
        %s2954 = scalar_lea.vmem [#allocation7], %s2953
        %s2955 = sand.u32 %s201, 1
        %s2956 = scalar_lea.sflag [#allocation9], %s2955
        %s2957 = sand.u32 %s201, 1
        %s2958 = smul.addr %s2957, 192
        %s2959 = scalar_lea.vmem [#allocation8], %s2958
        // Predicated region
        $region53: #{tpu_custom_call.1} parent=43 // pred_check
          %p2960 = pneg %p185
        $region54: #{tpu_custom_call.1} parent=43 // pred_check_branch
          %2962 = sbr.rel (%p2960) target = $region56
        $region55: #{tpu_custom_call.1} parent=43 // pred_region
          %s2963 = smul.u32 4, %s31
          %s2965 = ssub.s32 1024, 1024
          %2966 = vsyncadd %s2951, %s2965
          %s2967 = smul.addr %s2963, 128
          %s2968 = scalar_lea.hbm %s6, %s2967
          %s2969 = sshll.u32 %s2954, 4
          %s2970 = int_to_ptr.vmem [resolvable:$true] %s2969
          %2975 = dma.vmem_to_hbm [thread:$0]  %s2970, 1024, %s2968, %s2951, 512, 2048, 32
        $region56: #{tpu_custom_call.1} parent=43 // pred_fallthru
          _
        // Predicated region
        $region57: #{tpu_custom_call.1} parent=43 // pred_check
          %p2976 = pneg %p211
        $region58: #{tpu_custom_call.1} parent=43 // pred_check_branch
          %2978 = sbr.rel (%p2976) target = $region60
        $region59: #{tpu_custom_call.1} parent=43 // pred_region
          %s2979 = smul.u32 4, %s31
          %s2981 = ssub.s32 3072, 3072
          %2982 = vsyncadd %s2956, %s2981
          %s2983 = smul.addr %s2979, 128
          %s2984 = scalar_lea.hbm %s7, %s2983
          %s2985 = sshll.u32 %s2959, 4
          %s2986 = int_to_ptr.vmem [resolvable:$true] %s2985
          %2991 = dma.vmem_to_hbm [thread:$0]  %s2986, 3072, %s2984, %s2956, 512, 2048, 32
        $region60: #{tpu_custom_call.1} parent=43 // pred_fallthru
          _
      $region44: #{tpu_custom_call.1} parent=5 // pred_fallthru
        _
      %p2992 = scmp.le.s32.totalorder 2, %s26
      // Predicated region
      $region61: #{tpu_custom_call.1} parent=5 // pred_check
        %p2993 = pneg %p2992
      $region62: #{tpu_custom_call.1} parent=5 // pred_check_branch
        %2995 = sbr.rel (%p2993) target = $region64
      $region63: #{tpu_custom_call.1} parent=5 // pred_region
        %s2996 = ssub.s32 %s26, 2
        // Predicated region
        $region65: #{tpu_custom_call.1} parent=63 // pred_check
          %p2997 = pneg %p191
        $region66: #{tpu_custom_call.1} parent=63 // pred_check_branch
          %2999 = sbr.rel (%p2997) target = $region68
        $region67: #{tpu_custom_call.1} parent=63 // pred_region
          %s3000 = sand.u32 %s176, 1
          %s3001 = scalar_lea.sflag [#allocation4], %s3000
          %s3002 = sand.u32 %s176, 1
          %s3003 = smul.addr %s3002, 64
          %s3004 = scalar_lea.vmem [#allocation7], %s3003
          %3005 = dma.done %s3001, 1024
        $region68: #{tpu_custom_call.1} parent=63 // pred_fallthru
          _
        // Predicated region
        $region69: #{tpu_custom_call.1} parent=63 // pred_check
          %p3006 = pneg %p217
        $region70: #{tpu_custom_call.1} parent=63 // pred_check_branch
          %3008 = sbr.rel (%p3006) target = $region72
        $region71: #{tpu_custom_call.1} parent=63 // pred_region
          %s3009 = sand.u32 %s202, 1
          %s3010 = scalar_lea.sflag [#allocation9], %s3009
          %s3011 = sand.u32 %s202, 1
          %s3012 = smul.addr %s3011, 192
          %s3013 = scalar_lea.vmem [#allocation8], %s3012
          %3014 = dma.done %s3010, 3072
        $region72: #{tpu_custom_call.1} parent=63 // pred_fallthru
          _
      $region64: #{tpu_custom_call.1} parent=5 // pred_fallthru
        _
    $region6: #{tpu_custom_call.1} parent=1 // loop_footer
      %s30 = sadd.s32 1, %s26
    $region7: #{tpu_custom_call.1} parent=1 // loop_footer_branch
      %25 = sbr.rel target = $region3
    $region8: #{tpu_custom_call.1} parent=1 // loop_exit
      _
    %3015 = vsyncpa [#allocation3], 1
    %s3016 = scalar_lea.sflag [#allocation3], 1
    %3017 = vsyncpa %s3016, 1
    %3018 = vsyncpa [#allocation6], 1
    %s3019 = scalar_lea.sflag [#allocation6], 1
    %3020 = vsyncpa %s3019, 1
    %3021 = vsyncpa [#allocation4], 1
    %s3022 = scalar_lea.sflag [#allocation4], 1
    %3023 = vsyncpa %s3022, 1
    %3024 = vsyncpa [#allocation9], 1
    %s3025 = scalar_lea.sflag [#allocation9], 1
    %3026 = vsyncpa %s3025, 1

</llo_original>
